<compile_context>
chip_gen: v5e
topology: v5e:2x2
jax: 0.10.0
libtpu: 0.0.40
codegen_flags: <defaults>
</compile_context>

<pallas_src>
import jax
import jax.numpy as jnp
import numpy as np
from jax.experimental import pallas as pl
from jax.experimental.pallas import tpu as pltpu

K = 5                 # conv kernel size
PAD = 2               # conv padding
C1 = 16               # conv1 out channels
C2 = 32               # conv2 out channels
HIMG = 28             # input spatial size
HP = HIMG // 2        # 14: spatial after conv1+pool
HQ = HP // 2          # 7 : spatial after conv2+pool
NB = 8                # default images per grid block (multiple of 8)
NCOL1 = K * 31        # 155: conv1 im2col columns (ky, u)
W1COLS = HP * C1      # 224: conv1 output columns (x, c1)
XPAR = 256            # per-x-parity conv2 column block (7*32 data + 32 zero pad)
W2COLS = 2 * XPAR     # 512: conv2 output columns (x-parity, xh, c2), lane dense
LINCOLS = HQ * XPAR   # 1792: packed linear-input columns (yi, xh, c2)
OUTPAD = 128          # padded logits width (lane-dense output store)


# ----------------------------------------------------------------------------
# Fused kernel: conv1+pool -> conv2+pool -> linear, all on VMEM-resident data.
# ----------------------------------------------------------------------------
def _make_kernel(nb):
    R = HP * nb   # rows of real h1 / conv2 data per block (y-major, image-minor)

    def kernel(cols1_ref, w1_ref, b1_ref, w2_ref, b2_ref, wo_ref, bo_ref,
               o_ref, band_s, lin_s):
        f32 = jnp.float32

        # conv1: 4 per-parity bf16 matmuls, 2x2 maxpool folded in as an
        # incremental max; shared bias + ReLU applied once at the end.
        w1 = w1_ref[...]
        band = jnp.dot(cols1_ref[0:R, :], w1, preferred_element_type=f32)
        for p in range(1, 4):
            band = jnp.maximum(
                band,
                jnp.dot(cols1_ref[p * R:(p + 1) * R, :], w1,
                        preferred_element_type=f32))
        band = jnp.maximum(band + b1_ref[...], 0.0)                  # (R, 224) f32
        # band[y*nb + n, x*16 + c1] = h1[n, y, x, c1],  y in 0..13

        # Stage h1 in a zero-margined scratch so every conv2 ky tap is a
        # static 8-aligned slice (no XLU rolls, no wrap-around hazard).
        zeros_margin = jnp.zeros((2 * nb, W1COLS), f32)
        band_s[0:2 * nb, :] = zeros_margin
        band_s[(2 + HP) * nb:, :] = zeros_margin
        band_s[2 * nb:2 * nb + R, :] = band

        # conv2: 5 ky taps = 5 bf16 matmuls against x-banded weights.
        acc = None
        for ky in range(K):
            tap = band_s[ky * nb:ky * nb + R, :].astype(jnp.bfloat16)
            part = jnp.dot(tap, w2_ref[ky], preferred_element_type=f32)
            acc = part if acc is None else acc + part
        acc = jnp.maximum(acc + b2_ref[...], 0.0)                    # (R, 512) f32
        # acc[y*nb + n, p*256 + xh*32 + c2] = conv2relu[n, y, 2*xh + p, c2]

        # 2x2 maxpool: x-pool = max of the two aligned 256-lane parity slabs;
        # y-pool = static row-slice max, packed lane-wise into lin_s so the
        # linear layer is a single matmul.
        accx = jnp.maximum(acc[:, 0:XPAR], acc[:, XPAR:2 * XPAR])    # (R, 256)
        for yi in range(HQ):
            lin_s[:, yi * XPAR:(yi + 1) * XPAR] = jnp.maximum(
                accx[(2 * yi) * nb:(2 * yi + 1) * nb, :],
                accx[(2 * yi + 1) * nb:(2 * yi + 2) * nb, :])

        out = jnp.dot(lin_s[...].astype(jnp.bfloat16), wo_ref[...],
                      preferred_element_type=f32)
        o_ref[...] = (out + bo_ref[...]).astype(o_ref.dtype)

    return kernel


# ----------------------------------------------------------------------------
# Static repacking (runs ONCE per params) + per-call im2col of the input.
# ----------------------------------------------------------------------------
def _build_cols1(x_nchw, nblk, nb):
    """conv1 im2col: row = (parity, y, image), 155 (ky,u) columns, bf16."""
    n = x_nchw.shape[0]
    xp = jnp.pad(x_nchw[:, 0], ((0, 0), (PAD, PAD), (PAD, PAD)))     # (N, 32, 32)
    per_parity = []
    for a in range(2):
        for b in range(2):
            taps = [xp[:, a + ky:a + ky + 2 * HP - 1:2, b:b + 31]    # (N, 14, 31)
                    for ky in range(K)]
            per_parity.append(jnp.stack(taps, axis=2).reshape(n, HP, NCOL1))
    cols = jnp.stack(per_parity, axis=1)                             # (N, 4, 14, 155)
    cols = cols.reshape(nblk, nb, 4, HP, NCOL1).transpose(0, 2, 3, 1, 4)
    return cols.reshape(nblk * 4 * HP * nb, NCOL1).astype(jnp.bfloat16)


def _build_w1(w1):
    """(155, 224) banded conv1 weight: row (ky, u), col (x, c1), bf16."""
    ky = np.arange(K)[:, None, None, None]
    u = np.arange(31)[None, :, None, None]
    x = np.arange(HP)[None, None, :, None]
    co = np.arange(C1)[None, None, None, :]
    kx = u - 2 * x
    mask = (kx >= 0) & (kx < K)
    vals = w1[ky, np.clip(kx, 0, K - 1), 0, co] * mask               # (5, 31, 14, 16)
    return vals.reshape(NCOL1, W1COLS).astype(jnp.bfloat16)


def _build_w2(w2):
    """(5, 224, 512) banded conv2 weight: [ky] x (x_in, c1) x (p, xh, c2), bf16."""
    ky = np.arange(K)[:, None, None, None, None, None]
    xi = np.arange(HP)[None, :, None, None, None, None]
    ci = np.arange(C1)[None, None, :, None, None, None]
    p = np.arange(2)[None, None, None, :, None, None]
    xh = np.arange(HQ)[None, None, None, None, :, None]
    co = np.arange(C2)[None, None, None, None, None, :]
    kx = xi - (2 * xh + p) + PAD
    mask = (kx >= 0) & (kx < K)
    vals = w2[ky, np.clip(kx, 0, K - 1), ci, co] * mask              # (5,14,16,2,7,32)
    vals = vals.reshape(K, W1COLS, 2, HQ * C2)                       # (5,224,2,224)
    vals = jnp.pad(vals, ((0, 0), (0, 0), (0, 0), (0, XPAR - HQ * C2)))
    return vals.reshape(K, W1COLS, W2COLS).astype(jnp.bfloat16)


def _build_b2(b2):
    """(1, 512) conv2 bias tiled to the (p, xh, c2) lane layout, f32."""
    blk = jnp.pad(jnp.tile(b2, HQ), (0, XPAR - HQ * C2))             # (256,)
    return jnp.tile(blk, 2)[None, :].astype(jnp.float32)             # (1, 512)


def _build_wo(w_out):
    """(1792, 128) linear weight matching the packed (yi, xh, c2) layout, bf16.

    PyTorch's NCHW flatten order (c2*49 + yi*7 + xh) is absorbed here; the
    32 pad columns per yi block and the padded logits get zero weights.
    """
    dout = w_out.shape[1]
    wr = w_out.reshape(C2, HQ, HQ, dout)                             # [c2, yi, xh, f]
    a = jnp.transpose(wr, (1, 2, 0, 3)).reshape(HQ, HQ * C2, dout)   # [yi, xh*32+c2, f]
    a = jnp.pad(a, ((0, 0), (0, XPAR - HQ * C2), (0, OUTPAD - dout)))
    return a.reshape(LINCOLS, OUTPAD).astype(jnp.bfloat16)


def make_cnn_forward(params, block_images=NB):
    """Pack the static weights once; return a jitted forward(x_nchw) -> logits."""
    nb = int(block_images)
    assert nb % 8 == 0, "block_images must be a multiple of 8 (sublane tile)"

    w1b = _build_w1(params['w1'])                                    # (155,224) bf16
    b1t = jnp.tile(params['b1'], HP)[None, :].astype(jnp.float32)    # (1,224)  f32
    w2b = _build_w2(params['w2'])                                    # (5,224,512) bf16
    b2t = _build_b2(params['b2'])                                    # (1,512)  f32
    wob = _build_wo(params['w_out'])                                 # (1792,128) bf16
    dout = int(params['b_out'].shape[0])
    bot = jnp.pad(params['b_out'], (0, OUTPAD - dout))[None, :].astype(jnp.float32)

    kernel = _make_kernel(nb)

    @jax.jit
    def forward(x_nchw):
        n = x_nchw.shape[0]
        nblk = -(-n // nb)
        if nblk * nb != n:
            x_nchw = jnp.pad(x_nchw, ((0, nblk * nb - n), (0, 0), (0, 0), (0, 0)))
        cols1 = _build_cols1(x_nchw, nblk, nb)
        out = pl.pallas_call(
            kernel,
            out_shape=jax.ShapeDtypeStruct((nblk * nb, OUTPAD), jnp.float32),
            grid=(nblk,),
            in_specs=[
                pl.BlockSpec((4 * HP * nb, NCOL1), lambda b: (b, 0)),    # im2col block
                pl.BlockSpec((NCOL1, W1COLS), lambda b: (0, 0)),         # conv1 weight
                pl.BlockSpec((1, W1COLS), lambda b: (0, 0)),             # conv1 bias
                pl.BlockSpec((K, W1COLS, W2COLS), lambda b: (0, 0, 0)),  # conv2 weight
                pl.BlockSpec((1, W2COLS), lambda b: (0, 0)),             # conv2 bias
                pl.BlockSpec((LINCOLS, OUTPAD), lambda b: (0, 0)),       # linear weight
                pl.BlockSpec((1, OUTPAD), lambda b: (0, 0)),             # linear bias
            ],
            out_specs=pl.BlockSpec((nb, OUTPAD), lambda b: (b, 0)),
            scratch_shapes=[
                pltpu.VMEM(((HP + 4) * nb, W1COLS), jnp.float32),        # zero-margined h1
                pltpu.VMEM((nb, LINCOLS), jnp.float32),                  # packed linear in
            ],
            compiler_params=pltpu.CompilerParams(
                dimension_semantics=("parallel",)),
        )(cols1, w1b, b1t, w2b, b2t, wob, bot)
        return out[:n, :dout]

    return forward


# ----------------------------------------------------------------------------
# Params / pure-JAX reference (verification only).
# ----------------------------------------------------------------------------
def init_params(key):
    k1, k2, k3, k4, k5, k6 = jax.random.split(key, 6)
    return {
        'w1': jax.random.normal(k1, (K, K, 1, C1), jnp.float32) * 0.10,   # HWIO
        'b1': jax.random.normal(k2, (C1,), jnp.float32) * 0.10,
        'w2': jax.random.normal(k3, (K, K, C1, C2), jnp.float32) * 0.05,  # HWIO
        'b2': jax.random.normal(k4, (C2,), jnp.float32) * 0.05,
        'w_out': jax.random.normal(k5, (C2 * HQ * HQ, 10), jnp.float32) * 0.02,
        'b_out': jax.random.normal(k6, (10,), jnp.float32) * 0.02,
    }


def reference_forward(x_nchw, params):
    def layer(x, w, b):
        y = jax.lax.conv_general_dilated(
            x, w, window_strides=(1, 1), padding=((PAD, PAD), (PAD, PAD)),
            dimension_numbers=('NHWC', 'HWIO', 'NHWC'))
        y = jnp.maximum(y + b, 0.0)
        return jax.lax.reduce_window(y, -jnp.inf, jax.lax.max,
                                     (1, 2, 2, 1), (1, 2, 2, 1), 'VALID')
    x = jnp.transpose(x_nchw, (0, 2, 3, 1))
    h1 = layer(x, params['w1'], params['b1'])
    h2 = layer(h1, params['w2'], params['b2'])
    flat = jnp.transpose(h2, (0, 3, 1, 2)).reshape(x.shape[0], -1)  # NCHW flatten
    return flat @ params['w_out'] + params['b_out']


if __name__ == "__main__":
    key = jax.random.PRNGKey(0)
    pkey, xkey = jax.random.split(key)
    params = init_params(pkey)
    # PyTorch-style NCHW input; 28x28 is required by the 32*7*7 Linear.
    x = jax.random.normal(xkey, (16, 1, 28, 28), jnp.float32)

    forward = make_cnn_forward(params)          # packs weights once
    out = jax.block_until_ready(forward(x))
    assert out.shape == (16, 10)

    ref = reference_forward(x, params)
    # bf16 matmul inputs (f32 accumulation) vs. the f32 reference.
    np.testing.assert_allclose(np.asarray(out), np.asarray(ref),
                               rtol=5e-2, atol=5e-2)
    print("KERNEL_OK")
</pallas_src>

<mosaic_0001>
module attributes {stable_mosaic.version = 11 : i64} {
  func.func @kernel(%arg0: i32, %arg1: memref<448x155xbf16, #tpu.memory_space<vmem>>, %arg2: memref<155x224xbf16, #tpu.memory_space<vmem>>, %arg3: memref<1x224xf32, #tpu.memory_space<vmem>>, %arg4: memref<5x224x512xbf16, #tpu.memory_space<vmem>>, %arg5: memref<1x512xf32, #tpu.memory_space<vmem>>, %arg6: memref<1792x128xbf16, #tpu.memory_space<vmem>>, %arg7: memref<1x128xf32, #tpu.memory_space<vmem>>, %arg8: memref<8x128xf32, #tpu.memory_space<vmem>>, %arg9: memref<144x224xf32, #tpu.memory_space<vmem>>, %arg10: memref<8x1792xf32, #tpu.memory_space<vmem>>) attributes {dimension_semantics = [#tpu.dimension_semantics<parallel>], iteration_bounds = array<i64: 2>, scalar_prefetch = 0 : i64, scratch_operands = 2 : i64, tpu.core_type = #tpu.core_type<tc>, window_params = [{transform_indices = @transform_0, window_bounds = array<i64: 448, 155>}, {pipeline_mode = #tpu.pipeline_mode<synchronous>, transform_indices = @transform_1, window_bounds = array<i64: 155, 224>}, {pipeline_mode = #tpu.pipeline_mode<synchronous>, transform_indices = @transform_2, window_bounds = array<i64: 1, 224>}, {pipeline_mode = #tpu.pipeline_mode<synchronous>, transform_indices = @transform_3, window_bounds = array<i64: 5, 224, 512>}, {pipeline_mode = #tpu.pipeline_mode<synchronous>, transform_indices = @transform_4, window_bounds = array<i64: 1, 512>}, {pipeline_mode = #tpu.pipeline_mode<synchronous>, transform_indices = @transform_5, window_bounds = array<i64: 1792, 128>}, {pipeline_mode = #tpu.pipeline_mode<synchronous>, transform_indices = @transform_6, window_bounds = array<i64: 1, 128>}, {transform_indices = @transform_7, window_bounds = array<i64: 8, 128>}]} {
    %c0 = arith.constant 0 : index
    %c0_0 = arith.constant 0 : index
    %0 = vector.load %arg2[%c0, %c0_0] : memref<155x224xbf16, #tpu.memory_space<vmem>>, vector<155x224xbf16>
    %c0_1 = arith.constant 0 : index
    %c0_2 = arith.constant 0 : index
    %1 = vector.load %arg1[%c0_1, %c0_2] : memref<448x155xbf16, #tpu.memory_space<vmem>>, vector<112x155xbf16>
    %cst = arith.constant dense<0.000000e+00> : vector<112x224xf32>
    %2 = tpu.matmul %1, %0, %cst {dimension_numbers = #tpu.dot_dimension_numbers<[1], [0], [0], [1], [0, 0, 1, 1], [], []>} : vector<112x155xbf16>, vector<155x224xbf16>, vector<112x224xf32> -> vector<112x224xf32>
    %c112 = arith.constant 112 : index
    %c0_3 = arith.constant 0 : index
    %3 = vector.load %arg1[%c112, %c0_3] : memref<448x155xbf16, #tpu.memory_space<vmem>>, vector<112x155xbf16>
    %cst_4 = arith.constant dense<0.000000e+00> : vector<112x224xf32>
    %4 = tpu.matmul %3, %0, %cst_4 {dimension_numbers = #tpu.dot_dimension_numbers<[1], [0], [0], [1], [0, 0, 1, 1], [], []>} : vector<112x155xbf16>, vector<155x224xbf16>, vector<112x224xf32> -> vector<112x224xf32>
    %5 = arith.maximumf %2, %4 : vector<112x224xf32>
    %c224 = arith.constant 224 : index
    %c0_5 = arith.constant 0 : index
    %6 = vector.load %arg1[%c224, %c0_5] : memref<448x155xbf16, #tpu.memory_space<vmem>>, vector<112x155xbf16>
    %cst_6 = arith.constant dense<0.000000e+00> : vector<112x224xf32>
    %7 = tpu.matmul %6, %0, %cst_6 {dimension_numbers = #tpu.dot_dimension_numbers<[1], [0], [0], [1], [0, 0, 1, 1], [], []>} : vector<112x155xbf16>, vector<155x224xbf16>, vector<112x224xf32> -> vector<112x224xf32>
    %8 = arith.maximumf %5, %7 : vector<112x224xf32>
    %c336 = arith.constant 336 : index
    %c0_7 = arith.constant 0 : index
    %9 = vector.load %arg1[%c336, %c0_7] : memref<448x155xbf16, #tpu.memory_space<vmem>>, vector<112x155xbf16>
    %cst_8 = arith.constant dense<0.000000e+00> : vector<112x224xf32>
    %10 = tpu.matmul %9, %0, %cst_8 {dimension_numbers = #tpu.dot_dimension_numbers<[1], [0], [0], [1], [0, 0, 1, 1], [], []>} : vector<112x155xbf16>, vector<155x224xbf16>, vector<112x224xf32> -> vector<112x224xf32>
    %11 = arith.maximumf %8, %10 : vector<112x224xf32>
    %c0_9 = arith.constant 0 : index
    %c0_10 = arith.constant 0 : index
    %12 = vector.load %arg3[%c0_9, %c0_10] : memref<1x224xf32, #tpu.memory_space<vmem>>, vector<1x224xf32>
    %13 = vector.broadcast %12 : vector<1x224xf32> to vector<112x224xf32>
    %14 = arith.addf %11, %13 : vector<112x224xf32>
    %cst_11 = arith.constant 0.000000e+00 : f32
    %15 = vector.broadcast %cst_11 : f32 to vector<112x224xf32>
    %16 = arith.maximumf %14, %15 : vector<112x224xf32>
    %cst_12 = arith.constant 0.000000e+00 : f32
    %17 = vector.broadcast %cst_12 : f32 to vector<16x224xf32>
    %c0_13 = arith.constant 0 : index
    %c0_14 = arith.constant 0 : index
    %18 = vector.load %arg9[%c0_13, %c0_14] : memref<144x224xf32, #tpu.memory_space<vmem>>, vector<16x224xf32>
    tpu.vector_store %arg9[%c0_13, %c0_14], %17 {strides = array<i32>} : memref<144x224xf32, #tpu.memory_space<vmem>>, vector<16x224xf32>,
    %c128 = arith.constant 128 : index
    %c0_15 = arith.constant 0 : index
    %19 = vector.load %arg9[%c128, %c0_15] : memref<144x224xf32, #tpu.memory_space<vmem>>, vector<16x224xf32>
    tpu.vector_store %arg9[%c128, %c0_15], %17 {strides = array<i32>} : memref<144x224xf32, #tpu.memory_space<vmem>>, vector<16x224xf32>,
    %c16 = arith.constant 16 : index
    %c0_16 = arith.constant 0 : index
    %20 = vector.load %arg9[%c16, %c0_16] : memref<144x224xf32, #tpu.memory_space<vmem>>, vector<112x224xf32>
    tpu.vector_store %arg9[%c16, %c0_16], %16 {strides = array<i32>} : memref<144x224xf32, #tpu.memory_space<vmem>>, vector<112x224xf32>,
    %c0_17 = arith.constant 0 : index
    %c0_18 = arith.constant 0 : index
    %21 = vector.load %arg9[%c0_17, %c0_18] : memref<144x224xf32, #tpu.memory_space<vmem>>, vector<112x224xf32>
    %22 = arith.truncf %21 : vector<112x224xf32> to vector<112x224xbf16>
    %c0_19 = arith.constant 0 : index
    %c0_20 = arith.constant 0 : index
    %c0_21 = arith.constant 0 : index
    %23 = vector.load %arg4[%c0_19, %c0_20, %c0_21] : memref<5x224x512xbf16, #tpu.memory_space<vmem>>, vector<1x224x512xbf16>
    %24 = vector.shape_cast %23 : vector<1x224x512xbf16> to vector<224x512xbf16>
    %cst_22 = arith.constant dense<0.000000e+00> : vector<112x512xf32>
    %25 = tpu.matmul %22, %24, %cst_22 {dimension_numbers = #tpu.dot_dimension_numbers<[1], [0], [0], [1], [0, 0, 1, 1], [], []>} : vector<112x224xbf16>, vector<224x512xbf16>, vector<112x512xf32> -> vector<112x512xf32>
    %c8 = arith.constant 8 : index
    %c0_23 = arith.constant 0 : index
    %26 = vector.load %arg9[%c8, %c0_23] : memref<144x224xf32, #tpu.memory_space<vmem>>, vector<112x224xf32>
    %27 = arith.truncf %26 : vector<112x224xf32> to vector<112x224xbf16>
    %c1 = arith.constant 1 : index
    %c0_24 = arith.constant 0 : index
    %c0_25 = arith.constant 0 : index
    %28 = vector.load %arg4[%c1, %c0_24, %c0_25] : memref<5x224x512xbf16, #tpu.memory_space<vmem>>, vector<1x224x512xbf16>
    %29 = vector.shape_cast %28 : vector<1x224x512xbf16> to vector<224x512xbf16>
    %cst_26 = arith.constant dense<0.000000e+00> : vector<112x512xf32>
    %30 = tpu.matmul %27, %29, %cst_26 {dimension_numbers = #tpu.dot_dimension_numbers<[1], [0], [0], [1], [0, 0, 1, 1], [], []>} : vector<112x224xbf16>, vector<224x512xbf16>, vector<112x512xf32> -> vector<112x512xf32>
    %31 = arith.addf %25, %30 : vector<112x512xf32>
    %c16_27 = arith.constant 16 : index
    %c0_28 = arith.constant 0 : index
    %32 = vector.load %arg9[%c16_27, %c0_28] : memref<144x224xf32, #tpu.memory_space<vmem>>, vector<112x224xf32>
    %33 = arith.truncf %32 : vector<112x224xf32> to vector<112x224xbf16>
    %c2 = arith.constant 2 : index
    %c0_29 = arith.constant 0 : index
    %c0_30 = arith.constant 0 : index
    %34 = vector.load %arg4[%c2, %c0_29, %c0_30] : memref<5x224x512xbf16, #tpu.memory_space<vmem>>, vector<1x224x512xbf16>
    %35 = vector.shape_cast %34 : vector<1x224x512xbf16> to vector<224x512xbf16>
    %cst_31 = arith.constant dense<0.000000e+00> : vector<112x512xf32>
    %36 = tpu.matmul %33, %35, %cst_31 {dimension_numbers = #tpu.dot_dimension_numbers<[1], [0], [0], [1], [0, 0, 1, 1], [], []>} : vector<112x224xbf16>, vector<224x512xbf16>, vector<112x512xf32> -> vector<112x512xf32>
    %37 = arith.addf %31, %36 : vector<112x512xf32>
    %c24 = arith.constant 24 : index
    %c0_32 = arith.constant 0 : index
    %38 = vector.load %arg9[%c24, %c0_32] : memref<144x224xf32, #tpu.memory_space<vmem>>, vector<112x224xf32>
    %39 = arith.truncf %38 : vector<112x224xf32> to vector<112x224xbf16>
    %c3 = arith.constant 3 : index
    %c0_33 = arith.constant 0 : index
    %c0_34 = arith.constant 0 : index
    %40 = vector.load %arg4[%c3, %c0_33, %c0_34] : memref<5x224x512xbf16, #tpu.memory_space<vmem>>, vector<1x224x512xbf16>
    %41 = vector.shape_cast %40 : vector<1x224x512xbf16> to vector<224x512xbf16>
    %cst_35 = arith.constant dense<0.000000e+00> : vector<112x512xf32>
    %42 = tpu.matmul %39, %41, %cst_35 {dimension_numbers = #tpu.dot_dimension_numbers<[1], [0], [0], [1], [0, 0, 1, 1], [], []>} : vector<112x224xbf16>, vector<224x512xbf16>, vector<112x512xf32> -> vector<112x512xf32>
    %43 = arith.addf %37, %42 : vector<112x512xf32>
    %c32 = arith.constant 32 : index
    %c0_36 = arith.constant 0 : index
    %44 = vector.load %arg9[%c32, %c0_36] : memref<144x224xf32, #tpu.memory_space<vmem>>, vector<112x224xf32>
    %45 = arith.truncf %44 : vector<112x224xf32> to vector<112x224xbf16>
    %c4 = arith.constant 4 : index
    %c0_37 = arith.constant 0 : index
    %c0_38 = arith.constant 0 : index
    %46 = vector.load %arg4[%c4, %c0_37, %c0_38] : memref<5x224x512xbf16, #tpu.memory_space<vmem>>, vector<1x224x512xbf16>
    %47 = vector.shape_cast %46 : vector<1x224x512xbf16> to vector<224x512xbf16>
    %cst_39 = arith.constant dense<0.000000e+00> : vector<112x512xf32>
    %48 = tpu.matmul %45, %47, %cst_39 {dimension_numbers = #tpu.dot_dimension_numbers<[1], [0], [0], [1], [0, 0, 1, 1], [], []>} : vector<112x224xbf16>, vector<224x512xbf16>, vector<112x512xf32> -> vector<112x512xf32>
    %49 = arith.addf %43, %48 : vector<112x512xf32>
    %c0_40 = arith.constant 0 : index
    %c0_41 = arith.constant 0 : index
    %50 = vector.load %arg5[%c0_40, %c0_41] : memref<1x512xf32, #tpu.memory_space<vmem>>, vector<1x512xf32>
    %51 = vector.broadcast %50 : vector<1x512xf32> to vector<112x512xf32>
    %52 = arith.addf %49, %51 : vector<112x512xf32>
    %cst_42 = arith.constant 0.000000e+00 : f32
    %53 = vector.broadcast %cst_42 : f32 to vector<112x512xf32>
    %54 = arith.maximumf %52, %53 : vector<112x512xf32>
    %55 = vector.extract_strided_slice %54 {offsets = [0, 0], sizes = [112, 256], strides = [1, 1]} : vector<112x512xf32> to vector<112x256xf32>
    %56 = vector.extract_strided_slice %54 {offsets = [0, 256], sizes = [112, 256], strides = [1, 1]} : vector<112x512xf32> to vector<112x256xf32>
    %57 = arith.maximumf %55, %56 : vector<112x256xf32>
    %58 = vector.extract_strided_slice %57 {offsets = [0, 0], sizes = [8, 256], strides = [1, 1]} : vector<112x256xf32> to vector<8x256xf32>
    %59 = vector.extract_strided_slice %57 {offsets = [8, 0], sizes = [8, 256], strides = [1, 1]} : vector<112x256xf32> to vector<8x256xf32>
    %60 = arith.maximumf %58, %59 : vector<8x256xf32>
    %c0_43 = arith.constant 0 : index
    %c0_44 = arith.constant 0 : index
    %61 = vector.load %arg10[%c0_43, %c0_44] : memref<8x1792xf32, #tpu.memory_space<vmem>>, vector<8x256xf32>
    tpu.vector_store %arg10[%c0_43, %c0_44], %60 {strides = array<i32>} : memref<8x1792xf32, #tpu.memory_space<vmem>>, vector<8x256xf32>,
    %62 = vector.extract_strided_slice %57 {offsets = [16, 0], sizes = [8, 256], strides = [1, 1]} : vector<112x256xf32> to vector<8x256xf32>
    %63 = vector.extract_strided_slice %57 {offsets = [24, 0], sizes = [8, 256], strides = [1, 1]} : vector<112x256xf32> to vector<8x256xf32>
    %64 = arith.maximumf %62, %63 : vector<8x256xf32>
    %c0_45 = arith.constant 0 : index
    %c256 = arith.constant 256 : index
    %65 = vector.load %arg10[%c0_45, %c256] : memref<8x1792xf32, #tpu.memory_space<vmem>>, vector<8x256xf32>
    tpu.vector_store %arg10[%c0_45, %c256], %64 {strides = array<i32>} : memref<8x1792xf32, #tpu.memory_space<vmem>>, vector<8x256xf32>,
    %66 = vector.extract_strided_slice %57 {offsets = [32, 0], sizes = [8, 256], strides = [1, 1]} : vector<112x256xf32> to vector<8x256xf32>
    %67 = vector.extract_strided_slice %57 {offsets = [40, 0], sizes = [8, 256], strides = [1, 1]} : vector<112x256xf32> to vector<8x256xf32>
    %68 = arith.maximumf %66, %67 : vector<8x256xf32>
    %c0_46 = arith.constant 0 : index
    %c512 = arith.constant 512 : index
    %69 = vector.load %arg10[%c0_46, %c512] : memref<8x1792xf32, #tpu.memory_space<vmem>>, vector<8x256xf32>
    tpu.vector_store %arg10[%c0_46, %c512], %68 {strides = array<i32>} : memref<8x1792xf32, #tpu.memory_space<vmem>>, vector<8x256xf32>,
    %70 = vector.extract_strided_slice %57 {offsets = [48, 0], sizes = [8, 256], strides = [1, 1]} : vector<112x256xf32> to vector<8x256xf32>
    %71 = vector.extract_strided_slice %57 {offsets = [56, 0], sizes = [8, 256], strides = [1, 1]} : vector<112x256xf32> to vector<8x256xf32>
    %72 = arith.maximumf %70, %71 : vector<8x256xf32>
    %c0_47 = arith.constant 0 : index
    %c768 = arith.constant 768 : index
    %73 = vector.load %arg10[%c0_47, %c768] : memref<8x1792xf32, #tpu.memory_space<vmem>>, vector<8x256xf32>
    tpu.vector_store %arg10[%c0_47, %c768], %72 {strides = array<i32>} : memref<8x1792xf32, #tpu.memory_space<vmem>>, vector<8x256xf32>,
    %74 = vector.extract_strided_slice %57 {offsets = [64, 0], sizes = [8, 256], strides = [1, 1]} : vector<112x256xf32> to vector<8x256xf32>
    %75 = vector.extract_strided_slice %57 {offsets = [72, 0], sizes = [8, 256], strides = [1, 1]} : vector<112x256xf32> to vector<8x256xf32>
    %76 = arith.maximumf %74, %75 : vector<8x256xf32>
    %c0_48 = arith.constant 0 : index
    %c1024 = arith.constant 1024 : index
    %77 = vector.load %arg10[%c0_48, %c1024] : memref<8x1792xf32, #tpu.memory_space<vmem>>, vector<8x256xf32>
    tpu.vector_store %arg10[%c0_48, %c1024], %76 {strides = array<i32>} : memref<8x1792xf32, #tpu.memory_space<vmem>>, vector<8x256xf32>,
    %78 = vector.extract_strided_slice %57 {offsets = [80, 0], sizes = [8, 256], strides = [1, 1]} : vector<112x256xf32> to vector<8x256xf32>
    %79 = vector.extract_strided_slice %57 {offsets = [88, 0], sizes = [8, 256], strides = [1, 1]} : vector<112x256xf32> to vector<8x256xf32>
    %80 = arith.maximumf %78, %79 : vector<8x256xf32>
    %c0_49 = arith.constant 0 : index
    %c1280 = arith.constant 1280 : index
    %81 = vector.load %arg10[%c0_49, %c1280] : memref<8x1792xf32, #tpu.memory_space<vmem>>, vector<8x256xf32>
    tpu.vector_store %arg10[%c0_49, %c1280], %80 {strides = array<i32>} : memref<8x1792xf32, #tpu.memory_space<vmem>>, vector<8x256xf32>,
    %82 = vector.extract_strided_slice %57 {offsets = [96, 0], sizes = [8, 256], strides = [1, 1]} : vector<112x256xf32> to vector<8x256xf32>
    %83 = vector.extract_strided_slice %57 {offsets = [104, 0], sizes = [8, 256], strides = [1, 1]} : vector<112x256xf32> to vector<8x256xf32>
    %84 = arith.maximumf %82, %83 : vector<8x256xf32>
    %c0_50 = arith.constant 0 : index
    %c1536 = arith.constant 1536 : index
    %85 = vector.load %arg10[%c0_50, %c1536] : memref<8x1792xf32, #tpu.memory_space<vmem>>, vector<8x256xf32>
    tpu.vector_store %arg10[%c0_50, %c1536], %84 {strides = array<i32>} : memref<8x1792xf32, #tpu.memory_space<vmem>>, vector<8x256xf32>,
    %c0_51 = arith.constant 0 : index
    %c0_52 = arith.constant 0 : index
    %86 = vector.load %arg10[%c0_51, %c0_52] : memref<8x1792xf32, #tpu.memory_space<vmem>>, vector<8x1792xf32>
    %87 = arith.truncf %86 : vector<8x1792xf32> to vector<8x1792xbf16>
    %c0_53 = arith.constant 0 : index
    %c0_54 = arith.constant 0 : index
    %88 = vector.load %arg6[%c0_53, %c0_54] : memref<1792x128xbf16, #tpu.memory_space<vmem>>, vector<1792x128xbf16>
    %cst_55 = arith.constant dense<0.000000e+00> : vector<8x128xf32>
    %89 = tpu.matmul %87, %88, %cst_55 {dimension_numbers = #tpu.dot_dimension_numbers<[1], [0], [0], [1], [0, 0, 1, 1], [], []>} : vector<8x1792xbf16>, vector<1792x128xbf16>, vector<8x128xf32> -> vector<8x128xf32>
    %c0_56 = arith.constant 0 : index
    %c0_57 = arith.constant 0 : index
    %90 = vector.load %arg7[%c0_56, %c0_57] : memref<1x128xf32, #tpu.memory_space<vmem>>, vector<1x128xf32>
    %91 = vector.broadcast %90 : vector<1x128xf32> to vector<8x128xf32>
    %92 = arith.addf %89, %91 : vector<8x128xf32>
    %c0_58 = arith.constant 0 : index
    %c0_59 = arith.constant 0 : index
    %93 = vector.load %arg8[%c0_58, %c0_59] : memref<8x128xf32, #tpu.memory_space<vmem>>, vector<8x128xf32>
    tpu.vector_store %arg8[%c0_58, %c0_59], %92 {strides = array<i32>} : memref<8x128xf32, #tpu.memory_space<vmem>>, vector<8x128xf32>,
    return
  }
  func.func @transform_0(%arg0: i32) -> (i32, i32) {
    %c0_i32 = arith.constant 0 : i32
    %c0_i32_0 = arith.constant 0 : i32
    return %arg0, %c0_i32 : i32, i32
  }
  func.func @transform_1(%arg0: i32) -> (i32, i32) {
    %c0_i32 = arith.constant 0 : i32
    %c0_i32_0 = arith.constant 0 : i32
    %c0_i32_1 = arith.constant 0 : i32
    return %c0_i32, %c0_i32_0 : i32, i32
  }
  func.func @transform_2(%arg0: i32) -> (i32, i32) {
    %c0_i32 = arith.constant 0 : i32
    %c0_i32_0 = arith.constant 0 : i32
    %c0_i32_1 = arith.constant 0 : i32
    return %c0_i32, %c0_i32_0 : i32, i32
  }
  func.func @transform_3(%arg0: i32) -> (i32, i32, i32) {
    %c0_i32 = arith.constant 0 : i32
    %c0_i32_0 = arith.constant 0 : i32
    %c0_i32_1 = arith.constant 0 : i32
    %c0_i32_2 = arith.constant 0 : i32
    return %c0_i32, %c0_i32_0, %c0_i32_1 : i32, i32, i32
  }
  func.func @transform_4(%arg0: i32) -> (i32, i32) {
    %c0_i32 = arith.constant 0 : i32
    %c0_i32_0 = arith.constant 0 : i32
    %c0_i32_1 = arith.constant 0 : i32
    return %c0_i32, %c0_i32_0 : i32, i32
  }
  func.func @transform_5(%arg0: i32) -> (i32, i32) {
    %c0_i32 = arith.constant 0 : i32
    %c0_i32_0 = arith.constant 0 : i32
    %c0_i32_1 = arith.constant 0 : i32
    return %c0_i32, %c0_i32_0 : i32, i32
  }
  func.func @transform_6(%arg0: i32) -> (i32, i32) {
    %c0_i32 = arith.constant 0 : i32
    %c0_i32_0 = arith.constant 0 : i32
    %c0_i32_1 = arith.constant 0 : i32
    return %c0_i32, %c0_i32_0 : i32, i32
  }
  func.func @transform_7(%arg0: i32) -> (i32, i32) {
    %c0_i32 = arith.constant 0 : i32
    %c0_i32_0 = arith.constant 0 : i32
    return %arg0, %c0_i32 : i32, i32
  }
}

</mosaic_0001>

<llo_original>
// kernel: forward.1
$region0: #{forward.1}
  #allocation0 [shape = 'u32[]', space=smem, size = 0x4, offset = 0x4, fixed_abs, tag = 'smem constant byte address 0x4 - core index']
  #allocation1 [shape = 'u32[72,128]{1,0:T(1,128)}', space=vmem, size = 0x9000, scoped, tag = 'internal scratch']
  #allocation2 [shape = 'f32[144,224]{1,0:T(8,128)}', space=vmem, size = 0x24000, scoped, tag = 'scratch operand']
  #allocation3 [shape = 'f32[8,1792]{1,0:T(8,128)}', space=vmem, size = 0xe000, scoped, tag = 'scratch operand']
  %s0 = inlined_call_operand.vmem [shape: bf16[896,155], index: 0, kind: input, shape index: {}]
  %s1 = inlined_call_operand.vmem [shape: bf16[155,224], index: 1, kind: input, shape index: {}]
  %s2 = inlined_call_operand.vmem [shape: f32[1,224], index: 2, kind: input, shape index: {}]
  %s3 = inlined_call_operand.vmem [shape: bf16[5,224,512], index: 3, kind: input, shape index: {}]
  %s4 = inlined_call_operand.vmem [shape: f32[1,512], index: 4, kind: input, shape index: {}]
  %s5 = inlined_call_operand.vmem [shape: bf16[1792,128], index: 5, kind: input, shape index: {}]
  %s6 = inlined_call_operand.vmem [shape: f32[1,128], index: 6, kind: input, shape index: {}]
  %s7 = inlined_call_operand.hbm [shape: f32[16,128], index: 7, kind: output, shape index: {}]
  %s8 = sld [smem:[#allocation0]]
  $region61: #{forward.1} parent=0
    _
  %s10 = ssub.s32 1, %s8
  %s11 = scalar_select 0, %s10, %s8
  $region1: #{forward.1} parent=0
    #allocation4 [shape = 'u8[8192]{0}', space=vmem, size = 0x2000, scoped, tag = 'output window, operand 0']
    #allocation5 [shape = 's32[2]{0}', space=sflag, size = 0x8, scoped, tag = 'scoped memory for forward.1']
    %12 = vsyncpa [#allocation5], 0
    %s13 = scalar_lea.sflag [#allocation5], 1
    %14 = vsyncpa %s13, 0
    loop: start=0, step=1, limit=4
    $region2: #{forward.1} parent=1 // loop_pre_header
      _
    $region3: #{forward.1} parent=1 // loop_header
      %s16 = sphi 0, %s20
      %p17 = scmp.ge.s32.totalorder %s16, 4
      %s26 = sphi 0, %s28
      %s29 = sphi 0, %s26
      %s30 = sphi 0, %s29
      %s46 = sphi 0, %s30
      %s50 = sphi 0, %s50
      %s52 = sphi 0, %s50
      %s53 = sphi 0, %s52
      %s67 = sphi 0, %s53
      %s71 = sphi 0, %s71
      %s73 = sphi 0, %s71
      %s74 = sphi 0, %s73
      %s88 = sphi 0, %s74
      %s92 = sphi 0, %s92
      %s94 = sphi 0, %s92
      %s95 = sphi 0, %s94
      %s109 = sphi 0, %s95
      %s113 = sphi 0, %s113
      %s115 = sphi 0, %s113
      %s116 = sphi 0, %s115
      %s130 = sphi 0, %s116
      %s134 = sphi 0, %s134
      %s136 = sphi 0, %s134
      %s137 = sphi 0, %s136
      %s151 = sphi 0, %s137
      %s155 = sphi 0, %s155
      %s157 = sphi 0, %s155
      %s158 = sphi 0, %s157
      %s172 = sphi 0, %s158
      %s178 = sphi 0, %s180
      %s181 = sphi 0, %s178
      %s182 = sphi 0, %s181
      %s198 = sphi 0, %s182
    $region4: #{forward.1} parent=1 // loop_header_branch
      %19 = sbr.rel (%p17) target = $region8
    $region5: #{forward.1} parent=1 // loop_body
      %s21 = ssub.s32 %s16, 1
      %s22 = ssub.s32 %s16, 2
      %s23 = sadd.s32 %s16, 1
      %s24 = ssub.s32 %s16, %s23
      %p25 = scmp.eq.s32.totalorder %s24, 0
      %s27 = sadd.s32 %s26, 1
      %s28 = scalar_select %p25, %s26, %s27
      %p31 = pneg %p25
      %p32 = scmp.eq.s32.totalorder %s16, 1
      %p33 = por %p31, %p32
      %p34 = scmp.ne.s32.totalorder %s26, %s29
      %p35 = scmp.eq.s32.totalorder %s16, 0
      %p36 = por %p34, %p35
      %p37 = scmp.ne.s32.totalorder %s26, %s29
      %p38 = scmp.eq.s32.totalorder %s21, 1
      %p39 = por %p37, %p38
      %p40 = scmp.ne.s32.totalorder %s29, %s30
      %p41 = scmp.eq.s32.totalorder %s21, 0
      %p42 = por %p40, %p41
      %p43 = scmp.ne.s32.totalorder %s29, %s30
      %p44 = scmp.eq.s32.totalorder %s22, 1
      %p45 = por %p43, %p44
      %p47 = scmp.ne.s32.totalorder %s30, %s46
      %p48 = scmp.eq.s32.totalorder %s22, 0
      %p49 = por %p47, %p48
      %s51 = sadd.s32 %s50, 1
      %p54 = scmp.eq.s32.totalorder %s16, 1
      %p55 = scmp.ne.s32.totalorder %s50, %s52
      %p56 = scmp.eq.s32.totalorder %s16, 0
      %p57 = por %p55, %p56
      %p58 = scmp.ne.s32.totalorder %s50, %s52
      %p59 = scmp.eq.s32.totalorder %s21, 1
      %p60 = por %p58, %p59
      %p61 = scmp.ne.s32.totalorder %s52, %s53
      %p62 = scmp.eq.s32.totalorder %s21, 0
      %p63 = por %p61, %p62
      %p64 = scmp.ne.s32.totalorder %s52, %s53
      %p65 = scmp.eq.s32.totalorder %s22, 1
      %p66 = por %p64, %p65
      %p68 = scmp.ne.s32.totalorder %s53, %s67
      %p69 = scmp.eq.s32.totalorder %s22, 0
      %p70 = por %p68, %p69
      %s72 = sadd.s32 %s71, 1
      %p75 = scmp.eq.s32.totalorder %s16, 1
      %p76 = scmp.ne.s32.totalorder %s71, %s73
      %p77 = scmp.eq.s32.totalorder %s16, 0
      %p78 = por %p76, %p77
      %p79 = scmp.ne.s32.totalorder %s71, %s73
      %p80 = scmp.eq.s32.totalorder %s21, 1
      %p81 = por %p79, %p80
      %p82 = scmp.ne.s32.totalorder %s73, %s74
      %p83 = scmp.eq.s32.totalorder %s21, 0
      %p84 = por %p82, %p83
      %p85 = scmp.ne.s32.totalorder %s73, %s74
      %p86 = scmp.eq.s32.totalorder %s22, 1
      %p87 = por %p85, %p86
      %p89 = scmp.ne.s32.totalorder %s74, %s88
      %p90 = scmp.eq.s32.totalorder %s22, 0
      %p91 = por %p89, %p90
      %s93 = sadd.s32 %s92, 1
      %p96 = scmp.eq.s32.totalorder %s16, 1
      %p97 = scmp.ne.s32.totalorder %s92, %s94
      %p98 = scmp.eq.s32.totalorder %s16, 0
      %p99 = por %p97, %p98
      %p100 = scmp.ne.s32.totalorder %s92, %s94
      %p101 = scmp.eq.s32.totalorder %s21, 1
      %p102 = por %p100, %p101
      %p103 = scmp.ne.s32.totalorder %s94, %s95
      %p104 = scmp.eq.s32.totalorder %s21, 0
      %p105 = por %p103, %p104
      %p106 = scmp.ne.s32.totalorder %s94, %s95
      %p107 = scmp.eq.s32.totalorder %s22, 1
      %p108 = por %p106, %p107
      %p110 = scmp.ne.s32.totalorder %s95, %s109
      %p111 = scmp.eq.s32.totalorder %s22, 0
      %p112 = por %p110, %p111
      %s114 = sadd.s32 %s113, 1
      %p117 = scmp.eq.s32.totalorder %s16, 1
      %p118 = scmp.ne.s32.totalorder %s113, %s115
      %p119 = scmp.eq.s32.totalorder %s16, 0
      %p120 = por %p118, %p119
      %p121 = scmp.ne.s32.totalorder %s113, %s115
      %p122 = scmp.eq.s32.totalorder %s21, 1
      %p123 = por %p121, %p122
      %p124 = scmp.ne.s32.totalorder %s115, %s116
      %p125 = scmp.eq.s32.totalorder %s21, 0
      %p126 = por %p124, %p125
      %p127 = scmp.ne.s32.totalorder %s115, %s116
      %p128 = scmp.eq.s32.totalorder %s22, 1
      %p129 = por %p127, %p128
      %p131 = scmp.ne.s32.totalorder %s116, %s130
      %p132 = scmp.eq.s32.totalorder %s22, 0
      %p133 = por %p131, %p132
      %s135 = sadd.s32 %s134, 1
      %p138 = scmp.eq.s32.totalorder %s16, 1
      %p139 = scmp.ne.s32.totalorder %s134, %s136
      %p140 = scmp.eq.s32.totalorder %s16, 0
      %p141 = por %p139, %p140
      %p142 = scmp.ne.s32.totalorder %s134, %s136
      %p143 = scmp.eq.s32.totalorder %s21, 1
      %p144 = por %p142, %p143
      %p145 = scmp.ne.s32.totalorder %s136, %s137
      %p146 = scmp.eq.s32.totalorder %s21, 0
      %p147 = por %p145, %p146
      %p148 = scmp.ne.s32.totalorder %s136, %s137
      %p149 = scmp.eq.s32.totalorder %s22, 1
      %p150 = por %p148, %p149
      %p152 = scmp.ne.s32.totalorder %s137, %s151
      %p153 = scmp.eq.s32.totalorder %s22, 0
      %p154 = por %p152, %p153
      %s156 = sadd.s32 %s155, 1
      %p159 = scmp.eq.s32.totalorder %s16, 1
      %p160 = scmp.ne.s32.totalorder %s155, %s157
      %p161 = scmp.eq.s32.totalorder %s16, 0
      %p162 = por %p160, %p161
      %p163 = scmp.ne.s32.totalorder %s155, %s157
      %p164 = scmp.eq.s32.totalorder %s21, 1
      %p165 = por %p163, %p164
      %p166 = scmp.ne.s32.totalorder %s157, %s158
      %p167 = scmp.eq.s32.totalorder %s21, 0
      %p168 = por %p166, %p167
      %p169 = scmp.ne.s32.totalorder %s157, %s158
      %p170 = scmp.eq.s32.totalorder %s22, 1
      %p171 = por %p169, %p170
      %p173 = scmp.ne.s32.totalorder %s158, %s172
      %p174 = scmp.eq.s32.totalorder %s22, 0
      %p175 = por %p173, %p174
      %s176 = ssub.s32 %s16, %s23
      %p177 = scmp.eq.s32.totalorder %s176, 0
      %s179 = sadd.s32 %s178, 1
      %s180 = scalar_select %p177, %s178, %s179
      %p183 = pneg %p177
      %p184 = scmp.eq.s32.totalorder %s16, 1
      %p185 = por %p183, %p184
      %p186 = scmp.ne.s32.totalorder %s178, %s181
      %p187 = scmp.eq.s32.totalorder %s16, 0
      %p188 = por %p186, %p187
      %p189 = scmp.ne.s32.totalorder %s178, %s181
      %p190 = scmp.eq.s32.totalorder %s21, 1
      %p191 = por %p189, %p190
      %p192 = scmp.ne.s32.totalorder %s181, %s182
      %p193 = scmp.eq.s32.totalorder %s21, 0
      %p194 = por %p192, %p193
      %p195 = scmp.ne.s32.totalorder %s181, %s182
      %p196 = scmp.eq.s32.totalorder %s22, 1
      %p197 = por %p195, %p196
      %p199 = scmp.ne.s32.totalorder %s182, %s198
      %p200 = scmp.eq.s32.totalorder %s22, 0
      %p201 = por %p199, %p200
      %p202 = scmp.le.s32.totalorder 1, %s16
      %p203 = scmp.lt.s32.totalorder %s16, 3
      %p204 = pnand %p202, %p203
      %p205 = pneg %p204
      // Predicated region
      $region9: #{forward.1} parent=5 // pred_check
        _
      $region10: #{forward.1} parent=5 // pred_check_branch
        %207 = sbr.rel (%p204) target = $region12
      $region11: #{forward.1} parent=5 // pred_region
        %s208 = ssub.s32 %s16, 1
        // Predicated region
        $region13: #{forward.1} parent=11 // pred_check
          %p209 = pneg %p63
        $region14: #{forward.1} parent=11 // pred_check_branch
          %211 = sbr.rel (%p209) target = $region16
        $region15: #{forward.1} parent=11 // pred_region
          _
        $region16: #{forward.1} parent=11 // pred_fallthru
          _
        // Predicated region
        $region17: #{forward.1} parent=11 // pred_check
          %p212 = pneg %p84
        $region18: #{forward.1} parent=11 // pred_check_branch
          %214 = sbr.rel (%p212) target = $region20
        $region19: #{forward.1} parent=11 // pred_region
          _
        $region20: #{forward.1} parent=11 // pred_fallthru
          _
        // Predicated region
        $region21: #{forward.1} parent=11 // pred_check
          %p215 = pneg %p105
        $region22: #{forward.1} parent=11 // pred_check_branch
          %217 = sbr.rel (%p215) target = $region24
        $region23: #{forward.1} parent=11 // pred_region
          _
        $region24: #{forward.1} parent=11 // pred_fallthru
          _
        // Predicated region
        $region25: #{forward.1} parent=11 // pred_check
          %p218 = pneg %p126
        $region26: #{forward.1} parent=11 // pred_check_branch
          %220 = sbr.rel (%p218) target = $region28
        $region27: #{forward.1} parent=11 // pred_region
          _
        $region28: #{forward.1} parent=11 // pred_fallthru
          _
        // Predicated region
        $region29: #{forward.1} parent=11 // pred_check
          %p221 = pneg %p147
        $region30: #{forward.1} parent=11 // pred_check_branch
          %223 = sbr.rel (%p221) target = $region32
        $region31: #{forward.1} parent=11 // pred_region
          _
        $region32: #{forward.1} parent=11 // pred_fallthru
          _
        // Predicated region
        $region33: #{forward.1} parent=11 // pred_check
          %p224 = pneg %p168
        $region34: #{forward.1} parent=11 // pred_check_branch
          %226 = sbr.rel (%p224) target = $region36
        $region35: #{forward.1} parent=11 // pred_region
          _
        $region36: #{forward.1} parent=11 // pred_fallthru
          _
      $region12: #{forward.1} parent=5 // pred_fallthru
        _
      %p227 = scmp.lt.s32.totalorder %s16, 2
      // Predicated region
      $region37: #{forward.1} parent=5 // pred_check
        %p228 = pneg %p227
      $region38: #{forward.1} parent=5 // pred_check_branch
        %230 = sbr.rel (%p228) target = $region40
      $region39: #{forward.1} parent=5 // pred_region
        // Predicated region
        $region41: #{forward.1} parent=39 // pred_check
          %p231 = pneg %p36
        $region42: #{forward.1} parent=39 // pred_check_branch
          %233 = sbr.rel (%p231) target = $region44
        $region43: #{forward.1} parent=39 // pred_region
          %s234 = smul.u32 56, %s16
          %p235 = scmp.lt.s32.totalorder %s234, 111
          %s236 = scalar_select %p235, %s234, 111
          %s237 = smul.addr %s236, 2
          %s238 = smul.addr %s237, 4
          %s239 = scalar_lea.vmem %s0, %s238
          %s240 = smul.u32 56, %s16
        $region44: #{forward.1} parent=39 // pred_fallthru
          _
      $region40: #{forward.1} parent=5 // pred_fallthru
        _
      %p241 = scmp.le.s32.totalorder 1, %s16
      %p242 = scmp.lt.s32.totalorder %s16, 3
      %p243 = pnand %p241, %p242
      %p244 = pneg %p243
      // Predicated region
      $region45: #{forward.1} parent=5 // pred_check
        _
      $region46: #{forward.1} parent=5 // pred_check_branch
        %246 = sbr.rel (%p243) target = $region48
      $region47: #{forward.1} parent=5 // pred_region
        %s247 = ssub.s32 %s16, 1
        %s248 = smul.u32 56, %s21
        %p249 = scmp.lt.s32.totalorder %s248, 111
        %s250 = scalar_select %p249, %s248, 111
        %s251 = smul.addr %s250, 2
        %s252 = smul.addr %s251, 4
        %s253 = scalar_lea.vmem %s0, %s252
        %p254 = pneg %p42
        %p255 = pneg %p39
        %p256 = pneg %p63
        %p257 = pneg %p60
        %p258 = pneg %p84
        %p259 = pneg %p81
        %p260 = pneg %p105
        %p261 = pneg %p102
        %p262 = pneg %p126
        %p263 = pneg %p123
        %p264 = pneg %p147
        %p265 = pneg %p144
        %p266 = pneg %p168
        %p267 = pneg %p165
        %p268 = pneg %p194
        %p269 = pneg %p191
        %s270 = sand.u32 %s181, 1
        %s271 = scalar_lea.sflag [#allocation5], %s270
        %s272 = sand.u32 %s181, 1
        %s273 = smul.addr %s272, 8
        %s274 = scalar_lea.vmem [#allocation4], %s273
        %s275 = smul.u32 56, %s21
        %p276 = scmp.lt.s32.totalorder %s275, 111
        %s277 = scalar_select %p276, %s275, 111
        %s278 = smul.addr %s277, 2
        %s279 = smul.addr %s278, 4
        %s280 = scalar_lea.vmem %s0, %s279
        %s281 = smul.u32 56, %s21
        %v283 = vld [vmem:[%s1] sm:$0xff]
        %v284 = vld [vmem:[%s1 + $0x8] sm:$0xff]
        %v285 = vld [vmem:[%s1 + $0x10] sm:$0xff]
        %v286 = vld [vmem:[%s1 + $0x18] sm:$0xff]
        %v287 = vld [vmem:[%s1 + $0x20] sm:$0xff]
        %v288 = vld [vmem:[%s1 + $0x28] sm:$0xff]
        %v289 = vld [vmem:[%s1 + $0x30] sm:$0xff]
        %v290 = vld [vmem:[%s1 + $0x38] sm:$0xff]
        %v291 = vld [vmem:[%s1 + $0x40] sm:$0xff]
        %v292 = vld [vmem:[%s1 + $0x48] sm:$0xff]
        %v293 = vld [vmem:[%s1 + $0x50] sm:$0xff]
        %v294 = vld [vmem:[%s1 + $0x58] sm:$0xff]
        %v295 = vld [vmem:[%s1 + $0x60] sm:$0xff]
        %v296 = vld [vmem:[%s1 + $0x68] sm:$0xff]
        %v297 = vld [vmem:[%s1 + $0x70] sm:$0xff]
        %v298 = vld [vmem:[%s1 + $0x78] sm:$0xff]
        %v299 = vld [vmem:[%s1 + $0x80] sm:$0xff]
        %v300 = vld [vmem:[%s1 + $0x88] sm:$0xff]
        %v301 = vld [vmem:[%s1 + $0x90] sm:$0xff]
        %v302 = vld [vmem:[%s1 + $0x98] sm:$0x33]
        %v303 = vld [vmem:[%s280] sm:$0xff]
        %v304 = vld [vmem:[%s280 + $0x8] sm:$0xff]
        %v305 = vld [vmem:[%s280 + $0x10] sm:$0xff]
        %v306 = vld [vmem:[%s280 + $0x18] sm:$0xff]
        %v307 = vld [vmem:[%s280 + $0x20] sm:$0xff]
        %v308 = vld [vmem:[%s280 + $0x28] sm:$0xff]
        %v309 = vld [vmem:[%s280 + $0x30] sm:$0xff]
        %v310 = vld [vmem:[%s280 + $0x38] sm:$0xff]
        %v311 = vld [vmem:[%s280 + $0x40] sm:$0xff]
        %v312 = vld [vmem:[%s280 + $0x48] sm:$0xff]
        %v313 = vld [vmem:[%s280 + $0x50] sm:$0xff]
        %v314 = vld [vmem:[%s280 + $0x58] sm:$0xff]
        %v315 = vld [vmem:[%s280 + $0x60] sm:$0xff]
        %v316 = vld [vmem:[%s280 + $0x68] sm:$0xff]
        %v331 = vunpack.c.l.b16 %v303
        %v332 = vunpack.c.h.b16 %v303
        %v333 = vunpack.c.l.b16 %v304
        %v334 = vunpack.c.h.b16 %v304
        %v335 = vunpack.c.l.b16 %v305
        %v336 = vunpack.c.h.b16 %v305
        %v337 = vunpack.c.l.b16 %v306
        %v338 = vunpack.c.h.b16 %v306
        %v339 = vunpack.c.l.b16 %v307
        %v340 = vunpack.c.h.b16 %v307
        %v341 = vunpack.c.l.b16 %v308
        %v342 = vunpack.c.h.b16 %v308
        %v343 = vunpack.c.l.b16 %v309
        %v344 = vunpack.c.h.b16 %v309
        %v345 = vunpack.c.l.b16 %v310
        %v346 = vunpack.c.h.b16 %v310
        %v347 = vunpack.c.l.b16 %v311
        %v348 = vunpack.c.h.b16 %v311
        %v349 = vunpack.c.l.b16 %v312
        %v350 = vunpack.c.h.b16 %v312
        %v351 = vunpack.c.l.b16 %v313
        %v352 = vunpack.c.h.b16 %v313
        %v353 = vunpack.c.l.b16 %v314
        %v354 = vunpack.c.h.b16 %v314
        %v355 = vunpack.c.l.b16 %v315
        %v356 = vunpack.c.h.b16 %v315
        %v357 = vunpack.c.l.b16 %v316
        %v358 = vunpack.c.h.b16 %v316
        %v359 = vpack.c.b16 %v333, %v331
        %v360 = vpack.c.b16 %v334, %v332
        %v361 = vpack.c.b16 %v337, %v335
        %v362 = vpack.c.b16 %v338, %v336
        %v363 = vpack.c.b16 %v341, %v339
        %v364 = vpack.c.b16 %v342, %v340
        %v365 = vpack.c.b16 %v345, %v343
        %v366 = vpack.c.b16 %v346, %v344
        %v367 = vpack.c.b16 %v349, %v347
        %v368 = vpack.c.b16 %v350, %v348
        %v369 = vpack.c.b16 %v353, %v351
        %v370 = vpack.c.b16 %v354, %v352
        %v371 = vpack.c.b16 %v357, %v355
        %v372 = vpack.c.b16 %v358, %v356
        %v400 = vunpack.c.l.b16 %v283
        %v401 = vunpack.c.h.b16 %v283
        %v402 = vunpack.c.l.b16 %v284
        %v403 = vunpack.c.h.b16 %v284
        %v404 = vunpack.c.l.b16 %v285
        %v405 = vunpack.c.h.b16 %v285
        %v406 = vunpack.c.l.b16 %v286
        %v407 = vunpack.c.h.b16 %v286
        %v408 = vunpack.c.l.b16 %v287
        %v409 = vunpack.c.h.b16 %v287
        %v410 = vunpack.c.l.b16 %v288
        %v411 = vunpack.c.h.b16 %v288
        %v412 = vunpack.c.l.b16 %v289
        %v413 = vunpack.c.h.b16 %v289
        %v414 = vunpack.c.l.b16 %v290
        %v415 = vunpack.c.h.b16 %v290
        %v416 = vunpack.c.l.b16 %v291
        %v417 = vunpack.c.h.b16 %v291
        %v418 = vunpack.c.l.b16 %v292
        %v419 = vunpack.c.h.b16 %v292
        %v420 = vunpack.c.l.b16 %v293
        %v421 = vunpack.c.h.b16 %v293
        %v422 = vunpack.c.l.b16 %v294
        %v423 = vunpack.c.h.b16 %v294
        %v424 = vunpack.c.l.b16 %v295
        %v425 = vunpack.c.h.b16 %v295
        %v426 = vunpack.c.l.b16 %v296
        %v427 = vunpack.c.h.b16 %v296
        %v428 = vunpack.c.l.b16 %v297
        %v429 = vunpack.c.h.b16 %v297
        %v430 = vunpack.c.l.b16 %v298
        %v431 = vunpack.c.h.b16 %v298
        %v432 = vunpack.c.l.b16 %v299
        %v433 = vunpack.c.h.b16 %v299
        %v434 = vunpack.c.l.b16 %v300
        %v435 = vunpack.c.h.b16 %v300
        %v436 = vunpack.c.l.b16 %v301
        %v437 = vunpack.c.h.b16 %v301
        %v438 = vunpack.c.l.b16 %v302
        %v439 = vunpack.c.h.b16 %v302
        %v440 = vpack.c.b16 %v402, %v400
        %v441 = vpack.c.b16 %v403, %v401
        %v442 = vpack.c.b16 %v406, %v404
        %v443 = vpack.c.b16 %v407, %v405
        %v444 = vpack.c.b16 %v410, %v408
        %v445 = vpack.c.b16 %v411, %v409
        %v446 = vpack.c.b16 %v414, %v412
        %v447 = vpack.c.b16 %v415, %v413
        %v448 = vpack.c.b16 %v418, %v416
        %v449 = vpack.c.b16 %v419, %v417
        %v450 = vpack.c.b16 %v422, %v420
        %v451 = vpack.c.b16 %v423, %v421
        %v452 = vpack.c.b16 %v426, %v424
        %v453 = vpack.c.b16 %v427, %v425
        %v454 = vpack.c.b16 %v430, %v428
        %v455 = vpack.c.b16 %v431, %v429
        %v456 = vpack.c.b16 %v434, %v432
        %v457 = vpack.c.b16 %v435, %v433
        %v458 = vpack.c.b16 %v438, %v436
        %v459 = vpack.c.b16 %v439, %v437
        %vm478 = vcmask 220160
        %v480 = vsel %vm478, %v360, 0
        %v483 = vsel %vm478, %v362, 0
        %v486 = vsel %vm478, %v364, 0
        %v489 = vsel %vm478, %v366, 0
        %v492 = vsel %vm478, %v368, 0
        %v495 = vsel %vm478, %v370, 0
        %v498 = vsel %vm478, %v372, 0
        %vm500 = vcmask 1044480
        %vm501 = vcmask 1045504
        %v502 = vsel %vm500, 4294967295, 65535
        %v503 = vsel %vm501, %v502, 0
        %v505 = vand.u32 %v458, %v503
        %v508 = vand.u32 %v459, %v503
        %510 = vmatpush.bf16.msra.mxu0 %v454
        %511 = vmatpush.bf16.msra.mxu0 %v452
        %512 = vmatpush.bf16.msra.mxu0 %v450
        %513 = vmatpush.bf16.msra.mxu0 %v448
        %514 = vmatpush.bf16.msra.mxu0 %v446
        %515 = vmatpush.bf16.msra.mxu0 %v444
        %516 = vmatpush.bf16.msra.mxu0 %v442
        %517 = vmatpush.bf16.msra.mxu0 %v440
        %518 = vmatmul.bf16.gmra.mxu0 %v359
        %v519 = vpop.f32.mrf.mxu0
        %v520 = vadd.f32 0.0, %v519
        %v521 = vpop.f32.mrf.mxu0
        %v522 = vadd.f32 0.0, %v521
        %523 = vmatmul.bf16.gmra.mxu0 %v361
        %v524 = vpop.f32.mrf.mxu0
        %v525 = vadd.f32 0.0, %v524
        %v526 = vpop.f32.mrf.mxu0
        %v527 = vadd.f32 0.0, %v526
        %528 = vmatmul.bf16.gmra.mxu0 %v363
        %v529 = vpop.f32.mrf.mxu0
        %v530 = vadd.f32 0.0, %v529
        %v531 = vpop.f32.mrf.mxu0
        %v532 = vadd.f32 0.0, %v531
        %533 = vmatmul.bf16.gmra.mxu0 %v365
        %v534 = vpop.f32.mrf.mxu0
        %v535 = vadd.f32 0.0, %v534
        %v536 = vpop.f32.mrf.mxu0
        %v537 = vadd.f32 0.0, %v536
        %538 = vmatmul.bf16.gmra.mxu0 %v367
        %v539 = vpop.f32.mrf.mxu0
        %v540 = vadd.f32 0.0, %v539
        %v541 = vpop.f32.mrf.mxu0
        %v542 = vadd.f32 0.0, %v541
        %543 = vmatmul.bf16.gmra.mxu0 %v369
        %v544 = vpop.f32.mrf.mxu0
        %v545 = vadd.f32 0.0, %v544
        %v546 = vpop.f32.mrf.mxu0
        %v547 = vadd.f32 0.0, %v546
        %548 = vmatmul.bf16.gmra.mxu0 %v371
        %v549 = vpop.f32.mrf.mxu0
        %v550 = vadd.f32 0.0, %v549
        %v551 = vpop.f32.mrf.mxu0
        %v552 = vadd.f32 0.0, %v551
        %553 = vdwg.mxu0
        %554 = vmatpush.bf16.msra.mxu0 0
        %555 = vmatpush.bf16.msra.mxu0 0
        %556 = vmatpush.bf16.msra.mxu0 0
        %557 = vmatpush.bf16.msra.mxu0 0
        %558 = vmatpush.bf16.msra.mxu0 0
        %559 = vmatpush.bf16.msra.mxu0 0
        %560 = vmatpush.bf16.msra.mxu0 %v505
        %561 = vmatpush.bf16.msra.mxu0 %v456
        %562 = vmatmul.bf16.gmra.mxu0 %v480
        %v563 = vpop.f32.mrf.mxu0
        %v564 = vadd.f32 %v520, %v563
        %v565 = vpop.f32.mrf.mxu0
        %v566 = vadd.f32 %v522, %v565
        %567 = vmatmul.bf16.gmra.mxu0 %v483
        %v568 = vpop.f32.mrf.mxu0
        %v569 = vadd.f32 %v525, %v568
        %v570 = vpop.f32.mrf.mxu0
        %v571 = vadd.f32 %v527, %v570
        %572 = vmatmul.bf16.gmra.mxu0 %v486
        %v573 = vpop.f32.mrf.mxu0
        %v574 = vadd.f32 %v530, %v573
        %v575 = vpop.f32.mrf.mxu0
        %v576 = vadd.f32 %v532, %v575
        %577 = vmatmul.bf16.gmra.mxu0 %v489
        %v578 = vpop.f32.mrf.mxu0
        %v579 = vadd.f32 %v535, %v578
        %v580 = vpop.f32.mrf.mxu0
        %v581 = vadd.f32 %v537, %v580
        %582 = vmatmul.bf16.gmra.mxu0 %v492
        %v583 = vpop.f32.mrf.mxu0
        %v584 = vadd.f32 %v540, %v583
        %v585 = vpop.f32.mrf.mxu0
        %v586 = vadd.f32 %v542, %v585
        %587 = vmatmul.bf16.gmra.mxu0 %v495
        %v588 = vpop.f32.mrf.mxu0
        %v589 = vadd.f32 %v545, %v588
        %v590 = vpop.f32.mrf.mxu0
        %v591 = vadd.f32 %v547, %v590
        %592 = vmatmul.bf16.gmra.mxu0 %v498
        %v593 = vpop.f32.mrf.mxu0
        %v594 = vadd.f32 %v550, %v593
        %v595 = vpop.f32.mrf.mxu0
        %v596 = vadd.f32 %v552, %v595
        %597 = vdwg.mxu0
        %598 = vmatpush.bf16.msra.mxu0 %v455
        %599 = vmatpush.bf16.msra.mxu0 %v453
        %600 = vmatpush.bf16.msra.mxu0 %v451
        %601 = vmatpush.bf16.msra.mxu0 %v449
        %602 = vmatpush.bf16.msra.mxu0 %v447
        %603 = vmatpush.bf16.msra.mxu0 %v445
        %604 = vmatpush.bf16.msra.mxu0 %v443
        %605 = vmatpush.bf16.msra.mxu0 %v441
        %606 = vmatmul.bf16.gmra.mxu0 %v359
        %v607 = vpop.f32.mrf.mxu0
        %v608 = vadd.f32 0.0, %v607
        %v609 = vpop.f32.mrf.mxu0
        %v610 = vadd.f32 0.0, %v609
        %611 = vmatmul.bf16.gmra.mxu0 %v361
        %v612 = vpop.f32.mrf.mxu0
        %v613 = vadd.f32 0.0, %v612
        %v614 = vpop.f32.mrf.mxu0
        %v615 = vadd.f32 0.0, %v614
        %616 = vmatmul.bf16.gmra.mxu0 %v363
        %v617 = vpop.f32.mrf.mxu0
        %v618 = vadd.f32 0.0, %v617
        %v619 = vpop.f32.mrf.mxu0
        %v620 = vadd.f32 0.0, %v619
        %621 = vmatmul.bf16.gmra.mxu0 %v365
        %v622 = vpop.f32.mrf.mxu0
        %v623 = vadd.f32 0.0, %v622
        %v624 = vpop.f32.mrf.mxu0
        %v625 = vadd.f32 0.0, %v624
        %626 = vmatmul.bf16.gmra.mxu0 %v367
        %v627 = vpop.f32.mrf.mxu0
        %v628 = vadd.f32 0.0, %v627
        %v629 = vpop.f32.mrf.mxu0
        %v630 = vadd.f32 0.0, %v629
        %631 = vmatmul.bf16.gmra.mxu0 %v369
        %v632 = vpop.f32.mrf.mxu0
        %v633 = vadd.f32 0.0, %v632
        %v634 = vpop.f32.mrf.mxu0
        %v635 = vadd.f32 0.0, %v634
        %636 = vmatmul.bf16.gmra.mxu0 %v371
        %v637 = vpop.f32.mrf.mxu0
        %v638 = vadd.f32 0.0, %v637
        %v639 = vpop.f32.mrf.mxu0
        %v640 = vadd.f32 0.0, %v639
        %641 = vdwg.mxu0
        %642 = vmatpush.bf16.msra.mxu0 0
        %643 = vmatpush.bf16.msra.mxu0 0
        %644 = vmatpush.bf16.msra.mxu0 0
        %645 = vmatpush.bf16.msra.mxu0 0
        %646 = vmatpush.bf16.msra.mxu0 0
        %647 = vmatpush.bf16.msra.mxu0 0
        %648 = vmatpush.bf16.msra.mxu0 %v508
        %649 = vmatpush.bf16.msra.mxu0 %v457
        %650 = vmatmul.bf16.gmra.mxu0 %v480
        %v651 = vpop.f32.mrf.mxu0
        %v652 = vadd.f32 %v608, %v651
        %v653 = vpop.f32.mrf.mxu0
        %v654 = vadd.f32 %v610, %v653
        %655 = vmatmul.bf16.gmra.mxu0 %v483
        %v656 = vpop.f32.mrf.mxu0
        %v657 = vadd.f32 %v613, %v656
        %v658 = vpop.f32.mrf.mxu0
        %v659 = vadd.f32 %v615, %v658
        %660 = vmatmul.bf16.gmra.mxu0 %v486
        %v661 = vpop.f32.mrf.mxu0
        %v662 = vadd.f32 %v618, %v661
        %v663 = vpop.f32.mrf.mxu0
        %v664 = vadd.f32 %v620, %v663
        %665 = vmatmul.bf16.gmra.mxu0 %v489
        %v666 = vpop.f32.mrf.mxu0
        %v667 = vadd.f32 %v623, %v666
        %v668 = vpop.f32.mrf.mxu0
        %v669 = vadd.f32 %v625, %v668
        %670 = vmatmul.bf16.gmra.mxu0 %v492
        %v671 = vpop.f32.mrf.mxu0
        %v672 = vadd.f32 %v628, %v671
        %v673 = vpop.f32.mrf.mxu0
        %v674 = vadd.f32 %v630, %v673
        %675 = vmatmul.bf16.gmra.mxu0 %v495
        %v676 = vpop.f32.mrf.mxu0
        %v677 = vadd.f32 %v633, %v676
        %v678 = vpop.f32.mrf.mxu0
        %v679 = vadd.f32 %v635, %v678
        %680 = vmatmul.bf16.gmra.mxu0 %v498
        %v681 = vpop.f32.mrf.mxu0
        %v682 = vadd.f32 %v638, %v681
        %v683 = vpop.f32.mrf.mxu0
        %v684 = vadd.f32 %v640, %v683
        %685 = vdwg.mxu0
        %v686 = vld [vmem:[%s280 + $0x70] sm:$0xff]
        %v687 = vld [vmem:[%s280 + $0x78] sm:$0xff]
        %v688 = vld [vmem:[%s280 + $0x80] sm:$0xff]
        %v689 = vld [vmem:[%s280 + $0x88] sm:$0xff]
        %v690 = vld [vmem:[%s280 + $0x90] sm:$0xff]
        %v691 = vld [vmem:[%s280 + $0x98] sm:$0xff]
        %v692 = vld [vmem:[%s280 + $0xa0] sm:$0xff]
        %v693 = vld [vmem:[%s280 + $0xa8] sm:$0xff]
        %v694 = vld [vmem:[%s280 + $0xb0] sm:$0xff]
        %v695 = vld [vmem:[%s280 + $0xb8] sm:$0xff]
        %v696 = vld [vmem:[%s280 + $0xc0] sm:$0xff]
        %v697 = vld [vmem:[%s280 + $0xc8] sm:$0xff]
        %v698 = vld [vmem:[%s280 + $0xd0] sm:$0xff]
        %v699 = vld [vmem:[%s280 + $0xd8] sm:$0xff]
        %v714 = vunpack.c.l.b16 %v686
        %v715 = vunpack.c.h.b16 %v686
        %v716 = vunpack.c.l.b16 %v687
        %v717 = vunpack.c.h.b16 %v687
        %v718 = vunpack.c.l.b16 %v688
        %v719 = vunpack.c.h.b16 %v688
        %v720 = vunpack.c.l.b16 %v689
        %v721 = vunpack.c.h.b16 %v689
        %v722 = vunpack.c.l.b16 %v690
        %v723 = vunpack.c.h.b16 %v690
        %v724 = vunpack.c.l.b16 %v691
        %v725 = vunpack.c.h.b16 %v691
        %v726 = vunpack.c.l.b16 %v692
        %v727 = vunpack.c.h.b16 %v692
        %v728 = vunpack.c.l.b16 %v693
        %v729 = vunpack.c.h.b16 %v693
        %v730 = vunpack.c.l.b16 %v694
        %v731 = vunpack.c.h.b16 %v694
        %v732 = vunpack.c.l.b16 %v695
        %v733 = vunpack.c.h.b16 %v695
        %v734 = vunpack.c.l.b16 %v696
        %v735 = vunpack.c.h.b16 %v696
        %v736 = vunpack.c.l.b16 %v697
        %v737 = vunpack.c.h.b16 %v697
        %v738 = vunpack.c.l.b16 %v698
        %v739 = vunpack.c.h.b16 %v698
        %v740 = vunpack.c.l.b16 %v699
        %v741 = vunpack.c.h.b16 %v699
        %v742 = vpack.c.b16 %v716, %v714
        %v743 = vpack.c.b16 %v717, %v715
        %v744 = vpack.c.b16 %v720, %v718
        %v745 = vpack.c.b16 %v721, %v719
        %v746 = vpack.c.b16 %v724, %v722
        %v747 = vpack.c.b16 %v725, %v723
        %v748 = vpack.c.b16 %v728, %v726
        %v749 = vpack.c.b16 %v729, %v727
        %v750 = vpack.c.b16 %v732, %v730
        %v751 = vpack.c.b16 %v733, %v731
        %v752 = vpack.c.b16 %v736, %v734
        %v753 = vpack.c.b16 %v737, %v735
        %v754 = vpack.c.b16 %v740, %v738
        %v755 = vpack.c.b16 %v741, %v739
        %v764 = vsel %vm478, %v743, 0
        %v767 = vsel %vm478, %v745, 0
        %v770 = vsel %vm478, %v747, 0
        %v773 = vsel %vm478, %v749, 0
        %v776 = vsel %vm478, %v751, 0
        %v779 = vsel %vm478, %v753, 0
        %v782 = vsel %vm478, %v755, 0
        %784 = vmatpush.bf16.msra.mxu0 %v454
        %785 = vmatpush.bf16.msra.mxu0 %v452
        %786 = vmatpush.bf16.msra.mxu0 %v450
        %787 = vmatpush.bf16.msra.mxu0 %v448
        %788 = vmatpush.bf16.msra.mxu0 %v446
        %789 = vmatpush.bf16.msra.mxu0 %v444
        %790 = vmatpush.bf16.msra.mxu0 %v442
        %791 = vmatpush.bf16.msra.mxu0 %v440
        %792 = vmatmul.bf16.gmra.mxu0 %v742
        %v793 = vpop.f32.mrf.mxu0
        %v794 = vadd.f32 0.0, %v793
        %v795 = vpop.f32.mrf.mxu0
        %v796 = vadd.f32 0.0, %v795
        %797 = vmatmul.bf16.gmra.mxu0 %v744
        %v798 = vpop.f32.mrf.mxu0
        %v799 = vadd.f32 0.0, %v798
        %v800 = vpop.f32.mrf.mxu0
        %v801 = vadd.f32 0.0, %v800
        %802 = vmatmul.bf16.gmra.mxu0 %v746
        %v803 = vpop.f32.mrf.mxu0
        %v804 = vadd.f32 0.0, %v803
        %v805 = vpop.f32.mrf.mxu0
        %v806 = vadd.f32 0.0, %v805
        %807 = vmatmul.bf16.gmra.mxu0 %v748
        %v808 = vpop.f32.mrf.mxu0
        %v809 = vadd.f32 0.0, %v808
        %v810 = vpop.f32.mrf.mxu0
        %v811 = vadd.f32 0.0, %v810
        %812 = vmatmul.bf16.gmra.mxu0 %v750
        %v813 = vpop.f32.mrf.mxu0
        %v814 = vadd.f32 0.0, %v813
        %v815 = vpop.f32.mrf.mxu0
        %v816 = vadd.f32 0.0, %v815
        %817 = vmatmul.bf16.gmra.mxu0 %v752
        %v818 = vpop.f32.mrf.mxu0
        %v819 = vadd.f32 0.0, %v818
        %v820 = vpop.f32.mrf.mxu0
        %v821 = vadd.f32 0.0, %v820
        %822 = vmatmul.bf16.gmra.mxu0 %v754
        %v823 = vpop.f32.mrf.mxu0
        %v824 = vadd.f32 0.0, %v823
        %v825 = vpop.f32.mrf.mxu0
        %v826 = vadd.f32 0.0, %v825
        %827 = vdwg.mxu0
        %828 = vmatpush.bf16.msra.mxu0 0
        %829 = vmatpush.bf16.msra.mxu0 0
        %830 = vmatpush.bf16.msra.mxu0 0
        %831 = vmatpush.bf16.msra.mxu0 0
        %832 = vmatpush.bf16.msra.mxu0 0
        %833 = vmatpush.bf16.msra.mxu0 0
        %834 = vmatpush.bf16.msra.mxu0 %v505
        %835 = vmatpush.bf16.msra.mxu0 %v456
        %836 = vmatmul.bf16.gmra.mxu0 %v764
        %v837 = vpop.f32.mrf.mxu0
        %v838 = vadd.f32 %v794, %v837
        %v839 = vpop.f32.mrf.mxu0
        %v840 = vadd.f32 %v796, %v839
        %841 = vmatmul.bf16.gmra.mxu0 %v767
        %v842 = vpop.f32.mrf.mxu0
        %v843 = vadd.f32 %v799, %v842
        %v844 = vpop.f32.mrf.mxu0
        %v845 = vadd.f32 %v801, %v844
        %846 = vmatmul.bf16.gmra.mxu0 %v770
        %v847 = vpop.f32.mrf.mxu0
        %v848 = vadd.f32 %v804, %v847
        %v849 = vpop.f32.mrf.mxu0
        %v850 = vadd.f32 %v806, %v849
        %851 = vmatmul.bf16.gmra.mxu0 %v773
        %v852 = vpop.f32.mrf.mxu0
        %v853 = vadd.f32 %v809, %v852
        %v854 = vpop.f32.mrf.mxu0
        %v855 = vadd.f32 %v811, %v854
        %856 = vmatmul.bf16.gmra.mxu0 %v776
        %v857 = vpop.f32.mrf.mxu0
        %v858 = vadd.f32 %v814, %v857
        %v859 = vpop.f32.mrf.mxu0
        %v860 = vadd.f32 %v816, %v859
        %861 = vmatmul.bf16.gmra.mxu0 %v779
        %v862 = vpop.f32.mrf.mxu0
        %v863 = vadd.f32 %v819, %v862
        %v864 = vpop.f32.mrf.mxu0
        %v865 = vadd.f32 %v821, %v864
        %866 = vmatmul.bf16.gmra.mxu0 %v782
        %v867 = vpop.f32.mrf.mxu0
        %v868 = vadd.f32 %v824, %v867
        %v869 = vpop.f32.mrf.mxu0
        %v870 = vadd.f32 %v826, %v869
        %871 = vdwg.mxu0
        %872 = vmatpush.bf16.msra.mxu0 %v455
        %873 = vmatpush.bf16.msra.mxu0 %v453
        %874 = vmatpush.bf16.msra.mxu0 %v451
        %875 = vmatpush.bf16.msra.mxu0 %v449
        %876 = vmatpush.bf16.msra.mxu0 %v447
        %877 = vmatpush.bf16.msra.mxu0 %v445
        %878 = vmatpush.bf16.msra.mxu0 %v443
        %879 = vmatpush.bf16.msra.mxu0 %v441
        %880 = vmatmul.bf16.gmra.mxu0 %v742
        %v881 = vpop.f32.mrf.mxu0
        %v882 = vadd.f32 0.0, %v881
        %v883 = vpop.f32.mrf.mxu0
        %v884 = vadd.f32 0.0, %v883
        %885 = vmatmul.bf16.gmra.mxu0 %v744
        %v886 = vpop.f32.mrf.mxu0
        %v887 = vadd.f32 0.0, %v886
        %v888 = vpop.f32.mrf.mxu0
        %v889 = vadd.f32 0.0, %v888
        %890 = vmatmul.bf16.gmra.mxu0 %v746
        %v891 = vpop.f32.mrf.mxu0
        %v892 = vadd.f32 0.0, %v891
        %v893 = vpop.f32.mrf.mxu0
        %v894 = vadd.f32 0.0, %v893
        %895 = vmatmul.bf16.gmra.mxu0 %v748
        %v896 = vpop.f32.mrf.mxu0
        %v897 = vadd.f32 0.0, %v896
        %v898 = vpop.f32.mrf.mxu0
        %v899 = vadd.f32 0.0, %v898
        %900 = vmatmul.bf16.gmra.mxu0 %v750
        %v901 = vpop.f32.mrf.mxu0
        %v902 = vadd.f32 0.0, %v901
        %v903 = vpop.f32.mrf.mxu0
        %v904 = vadd.f32 0.0, %v903
        %905 = vmatmul.bf16.gmra.mxu0 %v752
        %v906 = vpop.f32.mrf.mxu0
        %v907 = vadd.f32 0.0, %v906
        %v908 = vpop.f32.mrf.mxu0
        %v909 = vadd.f32 0.0, %v908
        %910 = vmatmul.bf16.gmra.mxu0 %v754
        %v911 = vpop.f32.mrf.mxu0
        %v912 = vadd.f32 0.0, %v911
        %v913 = vpop.f32.mrf.mxu0
        %v914 = vadd.f32 0.0, %v913
        %915 = vdwg.mxu0
        %916 = vmatpush.bf16.msra.mxu0 0
        %917 = vmatpush.bf16.msra.mxu0 0
        %918 = vmatpush.bf16.msra.mxu0 0
        %919 = vmatpush.bf16.msra.mxu0 0
        %920 = vmatpush.bf16.msra.mxu0 0
        %921 = vmatpush.bf16.msra.mxu0 0
        %922 = vmatpush.bf16.msra.mxu0 %v508
        %923 = vmatpush.bf16.msra.mxu0 %v457
        %924 = vmatmul.bf16.gmra.mxu0 %v764
        %v925 = vpop.f32.mrf.mxu0
        %v926 = vadd.f32 %v882, %v925
        %v927 = vpop.f32.mrf.mxu0
        %v928 = vadd.f32 %v884, %v927
        %929 = vmatmul.bf16.gmra.mxu0 %v767
        %v930 = vpop.f32.mrf.mxu0
        %v931 = vadd.f32 %v887, %v930
        %v932 = vpop.f32.mrf.mxu0
        %v933 = vadd.f32 %v889, %v932
        %934 = vmatmul.bf16.gmra.mxu0 %v770
        %v935 = vpop.f32.mrf.mxu0
        %v936 = vadd.f32 %v892, %v935
        %v937 = vpop.f32.mrf.mxu0
        %v938 = vadd.f32 %v894, %v937
        %939 = vmatmul.bf16.gmra.mxu0 %v773
        %v940 = vpop.f32.mrf.mxu0
        %v941 = vadd.f32 %v897, %v940
        %v942 = vpop.f32.mrf.mxu0
        %v943 = vadd.f32 %v899, %v942
        %944 = vmatmul.bf16.gmra.mxu0 %v776
        %v945 = vpop.f32.mrf.mxu0
        %v946 = vadd.f32 %v902, %v945
        %v947 = vpop.f32.mrf.mxu0
        %v948 = vadd.f32 %v904, %v947
        %949 = vmatmul.bf16.gmra.mxu0 %v779
        %v950 = vpop.f32.mrf.mxu0
        %v951 = vadd.f32 %v907, %v950
        %v952 = vpop.f32.mrf.mxu0
        %v953 = vadd.f32 %v909, %v952
        %954 = vmatmul.bf16.gmra.mxu0 %v782
        %v955 = vpop.f32.mrf.mxu0
        %v956 = vadd.f32 %v912, %v955
        %v957 = vpop.f32.mrf.mxu0
        %v958 = vadd.f32 %v914, %v957
        %959 = vdwg.mxu0
        %v960 = vmax.f32 %v564, %v838
        %v961 = vmax.f32 %v652, %v926
        %v962 = vmax.f32 %v566, %v840
        %v963 = vmax.f32 %v654, %v928
        %v964 = vmax.f32 %v569, %v843
        %v965 = vmax.f32 %v657, %v931
        %v966 = vmax.f32 %v571, %v845
        %v967 = vmax.f32 %v659, %v933
        %v968 = vmax.f32 %v574, %v848
        %v969 = vmax.f32 %v662, %v936
        %v970 = vmax.f32 %v576, %v850
        %v971 = vmax.f32 %v664, %v938
        %v972 = vmax.f32 %v579, %v853
        %v973 = vmax.f32 %v667, %v941
        %v974 = vmax.f32 %v581, %v855
        %v975 = vmax.f32 %v669, %v943
        %v976 = vmax.f32 %v584, %v858
        %v977 = vmax.f32 %v672, %v946
        %v978 = vmax.f32 %v586, %v860
        %v979 = vmax.f32 %v674, %v948
        %v980 = vmax.f32 %v589, %v863
        %v981 = vmax.f32 %v677, %v951
        %v982 = vmax.f32 %v591, %v865
        %v983 = vmax.f32 %v679, %v953
        %v984 = vmax.f32 %v594, %v868
        %v985 = vmax.f32 %v682, %v956
        %v986 = vmax.f32 %v596, %v870
        %v987 = vmax.f32 %v684, %v958
        %v988 = vld [vmem:[%s280 + $0xe0] sm:$0xff]
        %v989 = vld [vmem:[%s280 + $0xe8] sm:$0xff]
        %v990 = vld [vmem:[%s280 + $0xf0] sm:$0xff]
        %v991 = vld [vmem:[%s280 + $0xf8] sm:$0xff]
        %v992 = vld [vmem:[%s280 + $0x100] sm:$0xff]
        %v993 = vld [vmem:[%s280 + $0x108] sm:$0xff]
        %v994 = vld [vmem:[%s280 + $0x110] sm:$0xff]
        %v995 = vld [vmem:[%s280 + $0x118] sm:$0xff]
        %v996 = vld [vmem:[%s280 + $0x120] sm:$0xff]
        %v997 = vld [vmem:[%s280 + $0x128] sm:$0xff]
        %v998 = vld [vmem:[%s280 + $0x130] sm:$0xff]
        %v999 = vld [vmem:[%s280 + $0x138] sm:$0xff]
        %v1000 = vld [vmem:[%s280 + $0x140] sm:$0xff]
        %v1001 = vld [vmem:[%s280 + $0x148] sm:$0xff]
        %v1016 = vunpack.c.l.b16 %v988
        %v1017 = vunpack.c.h.b16 %v988
        %v1018 = vunpack.c.l.b16 %v989
        %v1019 = vunpack.c.h.b16 %v989
        %v1020 = vunpack.c.l.b16 %v990
        %v1021 = vunpack.c.h.b16 %v990
        %v1022 = vunpack.c.l.b16 %v991
        %v1023 = vunpack.c.h.b16 %v991
        %v1024 = vunpack.c.l.b16 %v992
        %v1025 = vunpack.c.h.b16 %v992
        %v1026 = vunpack.c.l.b16 %v993
        %v1027 = vunpack.c.h.b16 %v993
        %v1028 = vunpack.c.l.b16 %v994
        %v1029 = vunpack.c.h.b16 %v994
        %v1030 = vunpack.c.l.b16 %v995
        %v1031 = vunpack.c.h.b16 %v995
        %v1032 = vunpack.c.l.b16 %v996
        %v1033 = vunpack.c.h.b16 %v996
        %v1034 = vunpack.c.l.b16 %v997
        %v1035 = vunpack.c.h.b16 %v997
        %v1036 = vunpack.c.l.b16 %v998
        %v1037 = vunpack.c.h.b16 %v998
        %v1038 = vunpack.c.l.b16 %v999
        %v1039 = vunpack.c.h.b16 %v999
        %v1040 = vunpack.c.l.b16 %v1000
        %v1041 = vunpack.c.h.b16 %v1000
        %v1042 = vunpack.c.l.b16 %v1001
        %v1043 = vunpack.c.h.b16 %v1001
        %v1044 = vpack.c.b16 %v1018, %v1016
        %v1045 = vpack.c.b16 %v1019, %v1017
        %v1046 = vpack.c.b16 %v1022, %v1020
        %v1047 = vpack.c.b16 %v1023, %v1021
        %v1048 = vpack.c.b16 %v1026, %v1024
        %v1049 = vpack.c.b16 %v1027, %v1025
        %v1050 = vpack.c.b16 %v1030, %v1028
        %v1051 = vpack.c.b16 %v1031, %v1029
        %v1052 = vpack.c.b16 %v1034, %v1032
        %v1053 = vpack.c.b16 %v1035, %v1033
        %v1054 = vpack.c.b16 %v1038, %v1036
        %v1055 = vpack.c.b16 %v1039, %v1037
        %v1056 = vpack.c.b16 %v1042, %v1040
        %v1057 = vpack.c.b16 %v1043, %v1041
        %v1066 = vsel %vm478, %v1045, 0
        %v1069 = vsel %vm478, %v1047, 0
        %v1072 = vsel %vm478, %v1049, 0
        %v1075 = vsel %vm478, %v1051, 0
        %v1078 = vsel %vm478, %v1053, 0
        %v1081 = vsel %vm478, %v1055, 0
        %v1084 = vsel %vm478, %v1057, 0
        %1086 = vmatpush.bf16.msra.mxu0 %v454
        %1087 = vmatpush.bf16.msra.mxu0 %v452
        %1088 = vmatpush.bf16.msra.mxu0 %v450
        %1089 = vmatpush.bf16.msra.mxu0 %v448
        %1090 = vmatpush.bf16.msra.mxu0 %v446
        %1091 = vmatpush.bf16.msra.mxu0 %v444
        %1092 = vmatpush.bf16.msra.mxu0 %v442
        %1093 = vmatpush.bf16.msra.mxu0 %v440
        %1094 = vmatmul.bf16.gmra.mxu0 %v1044
        %v1095 = vpop.f32.mrf.mxu0
        %v1096 = vadd.f32 0.0, %v1095
        %v1097 = vpop.f32.mrf.mxu0
        %v1098 = vadd.f32 0.0, %v1097
        %1099 = vmatmul.bf16.gmra.mxu0 %v1046
        %v1100 = vpop.f32.mrf.mxu0
        %v1101 = vadd.f32 0.0, %v1100
        %v1102 = vpop.f32.mrf.mxu0
        %v1103 = vadd.f32 0.0, %v1102
        %1104 = vmatmul.bf16.gmra.mxu0 %v1048
        %v1105 = vpop.f32.mrf.mxu0
        %v1106 = vadd.f32 0.0, %v1105
        %v1107 = vpop.f32.mrf.mxu0
        %v1108 = vadd.f32 0.0, %v1107
        %1109 = vmatmul.bf16.gmra.mxu0 %v1050
        %v1110 = vpop.f32.mrf.mxu0
        %v1111 = vadd.f32 0.0, %v1110
        %v1112 = vpop.f32.mrf.mxu0
        %v1113 = vadd.f32 0.0, %v1112
        %1114 = vmatmul.bf16.gmra.mxu0 %v1052
        %v1115 = vpop.f32.mrf.mxu0
        %v1116 = vadd.f32 0.0, %v1115
        %v1117 = vpop.f32.mrf.mxu0
        %v1118 = vadd.f32 0.0, %v1117
        %1119 = vmatmul.bf16.gmra.mxu0 %v1054
        %v1120 = vpop.f32.mrf.mxu0
        %v1121 = vadd.f32 0.0, %v1120
        %v1122 = vpop.f32.mrf.mxu0
        %v1123 = vadd.f32 0.0, %v1122
        %1124 = vmatmul.bf16.gmra.mxu0 %v1056
        %v1125 = vpop.f32.mrf.mxu0
        %v1126 = vadd.f32 0.0, %v1125
        %v1127 = vpop.f32.mrf.mxu0
        %v1128 = vadd.f32 0.0, %v1127
        %1129 = vdwg.mxu0
        %1130 = vmatpush.bf16.msra.mxu0 0
        %1131 = vmatpush.bf16.msra.mxu0 0
        %1132 = vmatpush.bf16.msra.mxu0 0
        %1133 = vmatpush.bf16.msra.mxu0 0
        %1134 = vmatpush.bf16.msra.mxu0 0
        %1135 = vmatpush.bf16.msra.mxu0 0
        %1136 = vmatpush.bf16.msra.mxu0 %v505
        %1137 = vmatpush.bf16.msra.mxu0 %v456
        %1138 = vmatmul.bf16.gmra.mxu0 %v1066
        %v1139 = vpop.f32.mrf.mxu0
        %v1140 = vadd.f32 %v1096, %v1139
        %v1141 = vpop.f32.mrf.mxu0
        %v1142 = vadd.f32 %v1098, %v1141
        %1143 = vmatmul.bf16.gmra.mxu0 %v1069
        %v1144 = vpop.f32.mrf.mxu0
        %v1145 = vadd.f32 %v1101, %v1144
        %v1146 = vpop.f32.mrf.mxu0
        %v1147 = vadd.f32 %v1103, %v1146
        %1148 = vmatmul.bf16.gmra.mxu0 %v1072
        %v1149 = vpop.f32.mrf.mxu0
        %v1150 = vadd.f32 %v1106, %v1149
        %v1151 = vpop.f32.mrf.mxu0
        %v1152 = vadd.f32 %v1108, %v1151
        %1153 = vmatmul.bf16.gmra.mxu0 %v1075
        %v1154 = vpop.f32.mrf.mxu0
        %v1155 = vadd.f32 %v1111, %v1154
        %v1156 = vpop.f32.mrf.mxu0
        %v1157 = vadd.f32 %v1113, %v1156
        %1158 = vmatmul.bf16.gmra.mxu0 %v1078
        %v1159 = vpop.f32.mrf.mxu0
        %v1160 = vadd.f32 %v1116, %v1159
        %v1161 = vpop.f32.mrf.mxu0
        %v1162 = vadd.f32 %v1118, %v1161
        %1163 = vmatmul.bf16.gmra.mxu0 %v1081
        %v1164 = vpop.f32.mrf.mxu0
        %v1165 = vadd.f32 %v1121, %v1164
        %v1166 = vpop.f32.mrf.mxu0
        %v1167 = vadd.f32 %v1123, %v1166
        %1168 = vmatmul.bf16.gmra.mxu0 %v1084
        %v1169 = vpop.f32.mrf.mxu0
        %v1170 = vadd.f32 %v1126, %v1169
        %v1171 = vpop.f32.mrf.mxu0
        %v1172 = vadd.f32 %v1128, %v1171
        %1173 = vdwg.mxu0
        %1174 = vmatpush.bf16.msra.mxu0 %v455
        %1175 = vmatpush.bf16.msra.mxu0 %v453
        %1176 = vmatpush.bf16.msra.mxu0 %v451
        %1177 = vmatpush.bf16.msra.mxu0 %v449
        %1178 = vmatpush.bf16.msra.mxu0 %v447
        %1179 = vmatpush.bf16.msra.mxu0 %v445
        %1180 = vmatpush.bf16.msra.mxu0 %v443
        %1181 = vmatpush.bf16.msra.mxu0 %v441
        %1182 = vmatmul.bf16.gmra.mxu0 %v1044
        %v1183 = vpop.f32.mrf.mxu0
        %v1184 = vadd.f32 0.0, %v1183
        %v1185 = vpop.f32.mrf.mxu0
        %v1186 = vadd.f32 0.0, %v1185
        %1187 = vmatmul.bf16.gmra.mxu0 %v1046
        %v1188 = vpop.f32.mrf.mxu0
        %v1189 = vadd.f32 0.0, %v1188
        %v1190 = vpop.f32.mrf.mxu0
        %v1191 = vadd.f32 0.0, %v1190
        %1192 = vmatmul.bf16.gmra.mxu0 %v1048
        %v1193 = vpop.f32.mrf.mxu0
        %v1194 = vadd.f32 0.0, %v1193
        %v1195 = vpop.f32.mrf.mxu0
        %v1196 = vadd.f32 0.0, %v1195
        %1197 = vmatmul.bf16.gmra.mxu0 %v1050
        %v1198 = vpop.f32.mrf.mxu0
        %v1199 = vadd.f32 0.0, %v1198
        %v1200 = vpop.f32.mrf.mxu0
        %v1201 = vadd.f32 0.0, %v1200
        %1202 = vmatmul.bf16.gmra.mxu0 %v1052
        %v1203 = vpop.f32.mrf.mxu0
        %v1204 = vadd.f32 0.0, %v1203
        %v1205 = vpop.f32.mrf.mxu0
        %v1206 = vadd.f32 0.0, %v1205
        %1207 = vmatmul.bf16.gmra.mxu0 %v1054
        %v1208 = vpop.f32.mrf.mxu0
        %v1209 = vadd.f32 0.0, %v1208
        %v1210 = vpop.f32.mrf.mxu0
        %v1211 = vadd.f32 0.0, %v1210
        %1212 = vmatmul.bf16.gmra.mxu0 %v1056
        %v1213 = vpop.f32.mrf.mxu0
        %v1214 = vadd.f32 0.0, %v1213
        %v1215 = vpop.f32.mrf.mxu0
        %v1216 = vadd.f32 0.0, %v1215
        %1217 = vdwg.mxu0
        %1218 = vmatpush.bf16.msra.mxu0 0
        %1219 = vmatpush.bf16.msra.mxu0 0
        %1220 = vmatpush.bf16.msra.mxu0 0
        %1221 = vmatpush.bf16.msra.mxu0 0
        %1222 = vmatpush.bf16.msra.mxu0 0
        %1223 = vmatpush.bf16.msra.mxu0 0
        %1224 = vmatpush.bf16.msra.mxu0 %v508
        %1225 = vmatpush.bf16.msra.mxu0 %v457
        %1226 = vmatmul.bf16.gmra.mxu0 %v1066
        %v1227 = vpop.f32.mrf.mxu0
        %v1228 = vadd.f32 %v1184, %v1227
        %v1229 = vpop.f32.mrf.mxu0
        %v1230 = vadd.f32 %v1186, %v1229
        %1231 = vmatmul.bf16.gmra.mxu0 %v1069
        %v1232 = vpop.f32.mrf.mxu0
        %v1233 = vadd.f32 %v1189, %v1232
        %v1234 = vpop.f32.mrf.mxu0
        %v1235 = vadd.f32 %v1191, %v1234
        %1236 = vmatmul.bf16.gmra.mxu0 %v1072
        %v1237 = vpop.f32.mrf.mxu0
        %v1238 = vadd.f32 %v1194, %v1237
        %v1239 = vpop.f32.mrf.mxu0
        %v1240 = vadd.f32 %v1196, %v1239
        %1241 = vmatmul.bf16.gmra.mxu0 %v1075
        %v1242 = vpop.f32.mrf.mxu0
        %v1243 = vadd.f32 %v1199, %v1242
        %v1244 = vpop.f32.mrf.mxu0
        %v1245 = vadd.f32 %v1201, %v1244
        %1246 = vmatmul.bf16.gmra.mxu0 %v1078
        %v1247 = vpop.f32.mrf.mxu0
        %v1248 = vadd.f32 %v1204, %v1247
        %v1249 = vpop.f32.mrf.mxu0
        %v1250 = vadd.f32 %v1206, %v1249
        %1251 = vmatmul.bf16.gmra.mxu0 %v1081
        %v1252 = vpop.f32.mrf.mxu0
        %v1253 = vadd.f32 %v1209, %v1252
        %v1254 = vpop.f32.mrf.mxu0
        %v1255 = vadd.f32 %v1211, %v1254
        %1256 = vmatmul.bf16.gmra.mxu0 %v1084
        %v1257 = vpop.f32.mrf.mxu0
        %v1258 = vadd.f32 %v1214, %v1257
        %v1259 = vpop.f32.mrf.mxu0
        %v1260 = vadd.f32 %v1216, %v1259
        %1261 = vdwg.mxu0
        %v1262 = vmax.f32 %v960, %v1140
        %v1263 = vmax.f32 %v961, %v1228
        %v1264 = vmax.f32 %v962, %v1142
        %v1265 = vmax.f32 %v963, %v1230
        %v1266 = vmax.f32 %v964, %v1145
        %v1267 = vmax.f32 %v965, %v1233
        %v1268 = vmax.f32 %v966, %v1147
        %v1269 = vmax.f32 %v967, %v1235
        %v1270 = vmax.f32 %v968, %v1150
        %v1271 = vmax.f32 %v969, %v1238
        %v1272 = vmax.f32 %v970, %v1152
        %v1273 = vmax.f32 %v971, %v1240
        %v1274 = vmax.f32 %v972, %v1155
        %v1275 = vmax.f32 %v973, %v1243
        %v1276 = vmax.f32 %v974, %v1157
        %v1277 = vmax.f32 %v975, %v1245
        %v1278 = vmax.f32 %v976, %v1160
        %v1279 = vmax.f32 %v977, %v1248
        %v1280 = vmax.f32 %v978, %v1162
        %v1281 = vmax.f32 %v979, %v1250
        %v1282 = vmax.f32 %v980, %v1165
        %v1283 = vmax.f32 %v981, %v1253
        %v1284 = vmax.f32 %v982, %v1167
        %v1285 = vmax.f32 %v983, %v1255
        %v1286 = vmax.f32 %v984, %v1170
        %v1287 = vmax.f32 %v985, %v1258
        %v1288 = vmax.f32 %v986, %v1172
        %v1289 = vmax.f32 %v987, %v1260
        %v1290 = vld [vmem:[%s280 + $0x150] sm:$0xff]
        %v1291 = vld [vmem:[%s280 + $0x158] sm:$0xff]
        %v1292 = vld [vmem:[%s280 + $0x160] sm:$0xff]
        %v1293 = vld [vmem:[%s280 + $0x168] sm:$0xff]
        %v1294 = vld [vmem:[%s280 + $0x170] sm:$0xff]
        %v1295 = vld [vmem:[%s280 + $0x178] sm:$0xff]
        %v1296 = vld [vmem:[%s280 + $0x180] sm:$0xff]
        %v1297 = vld [vmem:[%s280 + $0x188] sm:$0xff]
        %v1298 = vld [vmem:[%s280 + $0x190] sm:$0xff]
        %v1299 = vld [vmem:[%s280 + $0x198] sm:$0xff]
        %v1300 = vld [vmem:[%s280 + $0x1a0] sm:$0xff]
        %v1301 = vld [vmem:[%s280 + $0x1a8] sm:$0xff]
        %v1302 = vld [vmem:[%s280 + $0x1b0] sm:$0xff]
        %v1303 = vld [vmem:[%s280 + $0x1b8] sm:$0xff]
        %v1318 = vunpack.c.l.b16 %v1290
        %v1319 = vunpack.c.h.b16 %v1290
        %v1320 = vunpack.c.l.b16 %v1291
        %v1321 = vunpack.c.h.b16 %v1291
        %v1322 = vunpack.c.l.b16 %v1292
        %v1323 = vunpack.c.h.b16 %v1292
        %v1324 = vunpack.c.l.b16 %v1293
        %v1325 = vunpack.c.h.b16 %v1293
        %v1326 = vunpack.c.l.b16 %v1294
        %v1327 = vunpack.c.h.b16 %v1294
        %v1328 = vunpack.c.l.b16 %v1295
        %v1329 = vunpack.c.h.b16 %v1295
        %v1330 = vunpack.c.l.b16 %v1296
        %v1331 = vunpack.c.h.b16 %v1296
        %v1332 = vunpack.c.l.b16 %v1297
        %v1333 = vunpack.c.h.b16 %v1297
        %v1334 = vunpack.c.l.b16 %v1298
        %v1335 = vunpack.c.h.b16 %v1298
        %v1336 = vunpack.c.l.b16 %v1299
        %v1337 = vunpack.c.h.b16 %v1299
        %v1338 = vunpack.c.l.b16 %v1300
        %v1339 = vunpack.c.h.b16 %v1300
        %v1340 = vunpack.c.l.b16 %v1301
        %v1341 = vunpack.c.h.b16 %v1301
        %v1342 = vunpack.c.l.b16 %v1302
        %v1343 = vunpack.c.h.b16 %v1302
        %v1344 = vunpack.c.l.b16 %v1303
        %v1345 = vunpack.c.h.b16 %v1303
        %v1346 = vpack.c.b16 %v1320, %v1318
        %v1347 = vpack.c.b16 %v1321, %v1319
        %v1348 = vpack.c.b16 %v1324, %v1322
        %v1349 = vpack.c.b16 %v1325, %v1323
        %v1350 = vpack.c.b16 %v1328, %v1326
        %v1351 = vpack.c.b16 %v1329, %v1327
        %v1352 = vpack.c.b16 %v1332, %v1330
        %v1353 = vpack.c.b16 %v1333, %v1331
        %v1354 = vpack.c.b16 %v1336, %v1334
        %v1355 = vpack.c.b16 %v1337, %v1335
        %v1356 = vpack.c.b16 %v1340, %v1338
        %v1357 = vpack.c.b16 %v1341, %v1339
        %v1358 = vpack.c.b16 %v1344, %v1342
        %v1359 = vpack.c.b16 %v1345, %v1343
        %v1368 = vsel %vm478, %v1347, 0
        %v1371 = vsel %vm478, %v1349, 0
        %v1374 = vsel %vm478, %v1351, 0
        %v1377 = vsel %vm478, %v1353, 0
        %v1380 = vsel %vm478, %v1355, 0
        %v1383 = vsel %vm478, %v1357, 0
        %v1386 = vsel %vm478, %v1359, 0
        %1388 = vmatpush.bf16.msra.mxu0 %v454
        %1389 = vmatpush.bf16.msra.mxu0 %v452
        %1390 = vmatpush.bf16.msra.mxu0 %v450
        %1391 = vmatpush.bf16.msra.mxu0 %v448
        %1392 = vmatpush.bf16.msra.mxu0 %v446
        %1393 = vmatpush.bf16.msra.mxu0 %v444
        %1394 = vmatpush.bf16.msra.mxu0 %v442
        %1395 = vmatpush.bf16.msra.mxu0 %v440
        %1396 = vmatmul.bf16.gmra.mxu0 %v1346
        %v1397 = vpop.f32.mrf.mxu0
        %v1398 = vadd.f32 0.0, %v1397
        %v1399 = vpop.f32.mrf.mxu0
        %v1400 = vadd.f32 0.0, %v1399
        %1401 = vmatmul.bf16.gmra.mxu0 %v1348
        %v1402 = vpop.f32.mrf.mxu0
        %v1403 = vadd.f32 0.0, %v1402
        %v1404 = vpop.f32.mrf.mxu0
        %v1405 = vadd.f32 0.0, %v1404
        %1406 = vmatmul.bf16.gmra.mxu0 %v1350
        %v1407 = vpop.f32.mrf.mxu0
        %v1408 = vadd.f32 0.0, %v1407
        %v1409 = vpop.f32.mrf.mxu0
        %v1410 = vadd.f32 0.0, %v1409
        %1411 = vmatmul.bf16.gmra.mxu0 %v1352
        %v1412 = vpop.f32.mrf.mxu0
        %v1413 = vadd.f32 0.0, %v1412
        %v1414 = vpop.f32.mrf.mxu0
        %v1415 = vadd.f32 0.0, %v1414
        %1416 = vmatmul.bf16.gmra.mxu0 %v1354
        %v1417 = vpop.f32.mrf.mxu0
        %v1418 = vadd.f32 0.0, %v1417
        %v1419 = vpop.f32.mrf.mxu0
        %v1420 = vadd.f32 0.0, %v1419
        %1421 = vmatmul.bf16.gmra.mxu0 %v1356
        %v1422 = vpop.f32.mrf.mxu0
        %v1423 = vadd.f32 0.0, %v1422
        %v1424 = vpop.f32.mrf.mxu0
        %v1425 = vadd.f32 0.0, %v1424
        %1426 = vmatmul.bf16.gmra.mxu0 %v1358
        %v1427 = vpop.f32.mrf.mxu0
        %v1428 = vadd.f32 0.0, %v1427
        %v1429 = vpop.f32.mrf.mxu0
        %v1430 = vadd.f32 0.0, %v1429
        %1431 = vdwg.mxu0
        %1432 = vmatpush.bf16.msra.mxu0 0
        %1433 = vmatpush.bf16.msra.mxu0 0
        %1434 = vmatpush.bf16.msra.mxu0 0
        %1435 = vmatpush.bf16.msra.mxu0 0
        %1436 = vmatpush.bf16.msra.mxu0 0
        %1437 = vmatpush.bf16.msra.mxu0 0
        %1438 = vmatpush.bf16.msra.mxu0 %v505
        %1439 = vmatpush.bf16.msra.mxu0 %v456
        %1440 = vmatmul.bf16.gmra.mxu0 %v1368
        %v1441 = vpop.f32.mrf.mxu0
        %v1442 = vadd.f32 %v1398, %v1441
        %v1443 = vpop.f32.mrf.mxu0
        %v1444 = vadd.f32 %v1400, %v1443
        %1445 = vmatmul.bf16.gmra.mxu0 %v1371
        %v1446 = vpop.f32.mrf.mxu0
        %v1447 = vadd.f32 %v1403, %v1446
        %v1448 = vpop.f32.mrf.mxu0
        %v1449 = vadd.f32 %v1405, %v1448
        %1450 = vmatmul.bf16.gmra.mxu0 %v1374
        %v1451 = vpop.f32.mrf.mxu0
        %v1452 = vadd.f32 %v1408, %v1451
        %v1453 = vpop.f32.mrf.mxu0
        %v1454 = vadd.f32 %v1410, %v1453
        %1455 = vmatmul.bf16.gmra.mxu0 %v1377
        %v1456 = vpop.f32.mrf.mxu0
        %v1457 = vadd.f32 %v1413, %v1456
        %v1458 = vpop.f32.mrf.mxu0
        %v1459 = vadd.f32 %v1415, %v1458
        %1460 = vmatmul.bf16.gmra.mxu0 %v1380
        %v1461 = vpop.f32.mrf.mxu0
        %v1462 = vadd.f32 %v1418, %v1461
        %v1463 = vpop.f32.mrf.mxu0
        %v1464 = vadd.f32 %v1420, %v1463
        %1465 = vmatmul.bf16.gmra.mxu0 %v1383
        %v1466 = vpop.f32.mrf.mxu0
        %v1467 = vadd.f32 %v1423, %v1466
        %v1468 = vpop.f32.mrf.mxu0
        %v1469 = vadd.f32 %v1425, %v1468
        %1470 = vmatmul.bf16.gmra.mxu0 %v1386
        %v1471 = vpop.f32.mrf.mxu0
        %v1472 = vadd.f32 %v1428, %v1471
        %v1473 = vpop.f32.mrf.mxu0
        %v1474 = vadd.f32 %v1430, %v1473
        %1475 = vdwg.mxu0
        %1476 = vmatpush.bf16.msra.mxu0 %v455
        %1477 = vmatpush.bf16.msra.mxu0 %v453
        %1478 = vmatpush.bf16.msra.mxu0 %v451
        %1479 = vmatpush.bf16.msra.mxu0 %v449
        %1480 = vmatpush.bf16.msra.mxu0 %v447
        %1481 = vmatpush.bf16.msra.mxu0 %v445
        %1482 = vmatpush.bf16.msra.mxu0 %v443
        %1483 = vmatpush.bf16.msra.mxu0 %v441
        %1484 = vmatmul.bf16.gmra.mxu0 %v1346
        %v1485 = vpop.f32.mrf.mxu0
        %v1486 = vadd.f32 0.0, %v1485
        %v1487 = vpop.f32.mrf.mxu0
        %v1488 = vadd.f32 0.0, %v1487
        %1489 = vmatmul.bf16.gmra.mxu0 %v1348
        %v1490 = vpop.f32.mrf.mxu0
        %v1491 = vadd.f32 0.0, %v1490
        %v1492 = vpop.f32.mrf.mxu0
        %v1493 = vadd.f32 0.0, %v1492
        %1494 = vmatmul.bf16.gmra.mxu0 %v1350
        %v1495 = vpop.f32.mrf.mxu0
        %v1496 = vadd.f32 0.0, %v1495
        %v1497 = vpop.f32.mrf.mxu0
        %v1498 = vadd.f32 0.0, %v1497
        %1499 = vmatmul.bf16.gmra.mxu0 %v1352
        %v1500 = vpop.f32.mrf.mxu0
        %v1501 = vadd.f32 0.0, %v1500
        %v1502 = vpop.f32.mrf.mxu0
        %v1503 = vadd.f32 0.0, %v1502
        %1504 = vmatmul.bf16.gmra.mxu0 %v1354
        %v1505 = vpop.f32.mrf.mxu0
        %v1506 = vadd.f32 0.0, %v1505
        %v1507 = vpop.f32.mrf.mxu0
        %v1508 = vadd.f32 0.0, %v1507
        %1509 = vmatmul.bf16.gmra.mxu0 %v1356
        %v1510 = vpop.f32.mrf.mxu0
        %v1511 = vadd.f32 0.0, %v1510
        %v1512 = vpop.f32.mrf.mxu0
        %v1513 = vadd.f32 0.0, %v1512
        %1514 = vmatmul.bf16.gmra.mxu0 %v1358
        %v1515 = vpop.f32.mrf.mxu0
        %v1516 = vadd.f32 0.0, %v1515
        %v1517 = vpop.f32.mrf.mxu0
        %v1518 = vadd.f32 0.0, %v1517
        %1519 = vdwg.mxu0
        %1520 = vmatpush.bf16.msra.mxu0 0
        %1521 = vmatpush.bf16.msra.mxu0 0
        %1522 = vmatpush.bf16.msra.mxu0 0
        %1523 = vmatpush.bf16.msra.mxu0 0
        %1524 = vmatpush.bf16.msra.mxu0 0
        %1525 = vmatpush.bf16.msra.mxu0 0
        %1526 = vmatpush.bf16.msra.mxu0 %v508
        %1527 = vmatpush.bf16.msra.mxu0 %v457
        %1528 = vmatmul.bf16.gmra.mxu0 %v1368
        %v1529 = vpop.f32.mrf.mxu0
        %v1530 = vadd.f32 %v1486, %v1529
        %v1531 = vpop.f32.mrf.mxu0
        %v1532 = vadd.f32 %v1488, %v1531
        %1533 = vmatmul.bf16.gmra.mxu0 %v1371
        %v1534 = vpop.f32.mrf.mxu0
        %v1535 = vadd.f32 %v1491, %v1534
        %v1536 = vpop.f32.mrf.mxu0
        %v1537 = vadd.f32 %v1493, %v1536
        %1538 = vmatmul.bf16.gmra.mxu0 %v1374
        %v1539 = vpop.f32.mrf.mxu0
        %v1540 = vadd.f32 %v1496, %v1539
        %v1541 = vpop.f32.mrf.mxu0
        %v1542 = vadd.f32 %v1498, %v1541
        %1543 = vmatmul.bf16.gmra.mxu0 %v1377
        %v1544 = vpop.f32.mrf.mxu0
        %v1545 = vadd.f32 %v1501, %v1544
        %v1546 = vpop.f32.mrf.mxu0
        %v1547 = vadd.f32 %v1503, %v1546
        %1548 = vmatmul.bf16.gmra.mxu0 %v1380
        %v1549 = vpop.f32.mrf.mxu0
        %v1550 = vadd.f32 %v1506, %v1549
        %v1551 = vpop.f32.mrf.mxu0
        %v1552 = vadd.f32 %v1508, %v1551
        %1553 = vmatmul.bf16.gmra.mxu0 %v1383
        %v1554 = vpop.f32.mrf.mxu0
        %v1555 = vadd.f32 %v1511, %v1554
        %v1556 = vpop.f32.mrf.mxu0
        %v1557 = vadd.f32 %v1513, %v1556
        %1558 = vmatmul.bf16.gmra.mxu0 %v1386
        %v1559 = vpop.f32.mrf.mxu0
        %v1560 = vadd.f32 %v1516, %v1559
        %v1561 = vpop.f32.mrf.mxu0
        %v1562 = vadd.f32 %v1518, %v1561
        %1563 = vdwg.mxu0
        %v1564 = vmax.f32 %v1262, %v1442
        %v1565 = vmax.f32 %v1263, %v1530
        %v1566 = vmax.f32 %v1264, %v1444
        %v1567 = vmax.f32 %v1265, %v1532
        %v1568 = vmax.f32 %v1266, %v1447
        %v1569 = vmax.f32 %v1267, %v1535
        %v1570 = vmax.f32 %v1268, %v1449
        %v1571 = vmax.f32 %v1269, %v1537
        %v1572 = vmax.f32 %v1270, %v1452
        %v1573 = vmax.f32 %v1271, %v1540
        %v1574 = vmax.f32 %v1272, %v1454
        %v1575 = vmax.f32 %v1273, %v1542
        %v1576 = vmax.f32 %v1274, %v1457
        %v1577 = vmax.f32 %v1275, %v1545
        %v1578 = vmax.f32 %v1276, %v1459
        %v1579 = vmax.f32 %v1277, %v1547
        %v1580 = vmax.f32 %v1278, %v1462
        %v1581 = vmax.f32 %v1279, %v1550
        %v1582 = vmax.f32 %v1280, %v1464
        %v1583 = vmax.f32 %v1281, %v1552
        %v1584 = vmax.f32 %v1282, %v1467
        %v1585 = vmax.f32 %v1283, %v1555
        %v1586 = vmax.f32 %v1284, %v1469
        %v1587 = vmax.f32 %v1285, %v1557
        %v1588 = vmax.f32 %v1286, %v1472
        %v1589 = vmax.f32 %v1287, %v1560
        %v1590 = vmax.f32 %v1288, %v1474
        %v1591 = vmax.f32 %v1289, %v1562
        %v1592 = vld [vmem:[%s2] sm:$0x3]
        %v1594 = vperm.slane %v1592, 0
        %v1595 = vperm.slane %v1592, 1
        %v1598 = vadd.f32 %v1564, %v1594
        %v1599 = vadd.f32 %v1565, %v1595
        %v1600 = vadd.f32 %v1566, %v1594
        %v1601 = vadd.f32 %v1567, %v1595
        %v1602 = vadd.f32 %v1568, %v1594
        %v1603 = vadd.f32 %v1569, %v1595
        %v1604 = vadd.f32 %v1570, %v1594
        %v1605 = vadd.f32 %v1571, %v1595
        %v1606 = vadd.f32 %v1572, %v1594
        %v1607 = vadd.f32 %v1573, %v1595
        %v1608 = vadd.f32 %v1574, %v1594
        %v1609 = vadd.f32 %v1575, %v1595
        %v1610 = vadd.f32 %v1576, %v1594
        %v1611 = vadd.f32 %v1577, %v1595
        %v1612 = vadd.f32 %v1578, %v1594
        %v1613 = vadd.f32 %v1579, %v1595
        %v1614 = vadd.f32 %v1580, %v1594
        %v1615 = vadd.f32 %v1581, %v1595
        %v1616 = vadd.f32 %v1582, %v1594
        %v1617 = vadd.f32 %v1583, %v1595
        %v1618 = vadd.f32 %v1584, %v1594
        %v1619 = vadd.f32 %v1585, %v1595
        %v1620 = vadd.f32 %v1586, %v1594
        %v1621 = vadd.f32 %v1587, %v1595
        %v1622 = vadd.f32 %v1588, %v1594
        %v1623 = vadd.f32 %v1589, %v1595
        %v1624 = vadd.f32 %v1590, %v1594
        %v1625 = vadd.f32 %v1591, %v1595
        %v1626 = vmax.f32 %v1598, 0.0
        %v1627 = vmax.f32 %v1599, 0.0
        %v1628 = vmax.f32 %v1600, 0.0
        %v1629 = vmax.f32 %v1601, 0.0
        %v1630 = vmax.f32 %v1602, 0.0
        %v1631 = vmax.f32 %v1603, 0.0
        %v1632 = vmax.f32 %v1604, 0.0
        %v1633 = vmax.f32 %v1605, 0.0
        %v1634 = vmax.f32 %v1606, 0.0
        %v1635 = vmax.f32 %v1607, 0.0
        %v1636 = vmax.f32 %v1608, 0.0
        %v1637 = vmax.f32 %v1609, 0.0
        %v1638 = vmax.f32 %v1610, 0.0
        %v1639 = vmax.f32 %v1611, 0.0
        %v1640 = vmax.f32 %v1612, 0.0
        %v1641 = vmax.f32 %v1613, 0.0
        %v1642 = vmax.f32 %v1614, 0.0
        %v1643 = vmax.f32 %v1615, 0.0
        %v1644 = vmax.f32 %v1616, 0.0
        %v1645 = vmax.f32 %v1617, 0.0
        %v1646 = vmax.f32 %v1618, 0.0
        %v1647 = vmax.f32 %v1619, 0.0
        %v1648 = vmax.f32 %v1620, 0.0
        %v1649 = vmax.f32 %v1621, 0.0
        %v1650 = vmax.f32 %v1622, 0.0
        %v1651 = vmax.f32 %v1623, 0.0
        %v1652 = vmax.f32 %v1624, 0.0
        %v1653 = vmax.f32 %v1625, 0.0
        %1654 = vst [vmem:[#allocation2] sm:$0xff] 0.0
        %vm1655 = vcmask 785408
        %1656 = vst.msk [vmem:[#allocation2 + $0x8] sm:$0xff] %vm1655, 0.0
        %1657 = vst [vmem:[#allocation2 + $0x10] sm:$0xff] 0.0
        %1658 = vst.msk [vmem:[#allocation2 + $0x18] sm:$0xff] %vm1655, 0.0
        %1659 = vst [vmem:[#allocation2 + $0x100] sm:$0xff] 0.0
        %1660 = vst.msk [vmem:[#allocation2 + $0x108] sm:$0xff] %vm1655, 0.0
        %1661 = vst [vmem:[#allocation2 + $0x110] sm:$0xff] 0.0
        %1662 = vst.msk [vmem:[#allocation2 + $0x118] sm:$0xff] %vm1655, 0.0
        %1663 = vst [vmem:[#allocation2 + $0x20] sm:$0xff] %v1626
        %1664 = vst.msk [vmem:[#allocation2 + $0x28] sm:$0xff] %vm1655, %v1627
        %1665 = vst [vmem:[#allocation2 + $0x30] sm:$0xff] %v1628
        %1666 = vst.msk [vmem:[#allocation2 + $0x38] sm:$0xff] %vm1655, %v1629
        %1667 = vst [vmem:[#allocation2 + $0x40] sm:$0xff] %v1630
        %1668 = vst.msk [vmem:[#allocation2 + $0x48] sm:$0xff] %vm1655, %v1631
        %1669 = vst [vmem:[#allocation2 + $0x50] sm:$0xff] %v1632
        %1670 = vst.msk [vmem:[#allocation2 + $0x58] sm:$0xff] %vm1655, %v1633
        %1671 = vst [vmem:[#allocation2 + $0x60] sm:$0xff] %v1634
        %1672 = vst.msk [vmem:[#allocation2 + $0x68] sm:$0xff] %vm1655, %v1635
        %1673 = vst [vmem:[#allocation2 + $0x70] sm:$0xff] %v1636
        %1674 = vst.msk [vmem:[#allocation2 + $0x78] sm:$0xff] %vm1655, %v1637
        %1675 = vst [vmem:[#allocation2 + $0x80] sm:$0xff] %v1638
        %1676 = vst.msk [vmem:[#allocation2 + $0x88] sm:$0xff] %vm1655, %v1639
        %1677 = vst [vmem:[#allocation2 + $0x90] sm:$0xff] %v1640
        %1678 = vst.msk [vmem:[#allocation2 + $0x98] sm:$0xff] %vm1655, %v1641
        %1679 = vst [vmem:[#allocation2 + $0xa0] sm:$0xff] %v1642
        %1680 = vst.msk [vmem:[#allocation2 + $0xa8] sm:$0xff] %vm1655, %v1643
        %1681 = vst [vmem:[#allocation2 + $0xb0] sm:$0xff] %v1644
        %1682 = vst.msk [vmem:[#allocation2 + $0xb8] sm:$0xff] %vm1655, %v1645
        %1683 = vst [vmem:[#allocation2 + $0xc0] sm:$0xff] %v1646
        %1684 = vst.msk [vmem:[#allocation2 + $0xc8] sm:$0xff] %vm1655, %v1647
        %1685 = vst [vmem:[#allocation2 + $0xd0] sm:$0xff] %v1648
        %1686 = vst.msk [vmem:[#allocation2 + $0xd8] sm:$0xff] %vm1655, %v1649
        %1687 = vst [vmem:[#allocation2 + $0xe0] sm:$0xff] %v1650
        %1688 = vst.msk [vmem:[#allocation2 + $0xe8] sm:$0xff] %vm1655, %v1651
        %1689 = vst [vmem:[#allocation2 + $0xf0] sm:$0xff] %v1652
        %1690 = vst.msk [vmem:[#allocation2 + $0xf8] sm:$0xff] %vm1655, %v1653
        %v1691 = vld [vmem:[#allocation2] sm:$0xff]
        %v1692 = vld [vmem:[#allocation2 + $0x8] sm:$0xff]
        %v1693 = vld [vmem:[#allocation2 + $0x10] sm:$0xff]
        %v1694 = vld [vmem:[#allocation2 + $0x18] sm:$0xff]
        %v1695 = vld [vmem:[#allocation2 + $0x20] sm:$0xff]
        %v1696 = vld [vmem:[#allocation2 + $0x28] sm:$0xff]
        %v1697 = vld [vmem:[#allocation2 + $0x30] sm:$0xff]
        %v1698 = vld [vmem:[#allocation2 + $0x38] sm:$0xff]
        %v1699 = vld [vmem:[#allocation2 + $0x40] sm:$0xff]
        %v1700 = vld [vmem:[#allocation2 + $0x48] sm:$0xff]
        %v1701 = vld [vmem:[#allocation2 + $0x50] sm:$0xff]
        %v1702 = vld [vmem:[#allocation2 + $0x58] sm:$0xff]
        %v1703 = vld [vmem:[#allocation2 + $0x60] sm:$0xff]
        %v1704 = vld [vmem:[#allocation2 + $0x68] sm:$0xff]
        %v1705 = vld [vmem:[#allocation2 + $0x70] sm:$0xff]
        %v1706 = vld [vmem:[#allocation2 + $0x78] sm:$0xff]
        %v1707 = vld [vmem:[#allocation2 + $0x80] sm:$0xff]
        %v1708 = vld [vmem:[#allocation2 + $0x88] sm:$0xff]
        %v1709 = vld [vmem:[#allocation2 + $0x90] sm:$0xff]
        %v1710 = vld [vmem:[#allocation2 + $0x98] sm:$0xff]
        %v1711 = vld [vmem:[#allocation2 + $0xa0] sm:$0xff]
        %v1712 = vld [vmem:[#allocation2 + $0xa8] sm:$0xff]
        %v1713 = vld [vmem:[#allocation2 + $0xb0] sm:$0xff]
        %v1714 = vld [vmem:[#allocation2 + $0xb8] sm:$0xff]
        %v1715 = vld [vmem:[#allocation2 + $0xc0] sm:$0xff]
        %v1716 = vld [vmem:[#allocation2 + $0xc8] sm:$0xff]
        %v1717 = vld [vmem:[#allocation2 + $0xd0] sm:$0xff]
        %v1718 = vld [vmem:[#allocation2 + $0xd8] sm:$0xff]
        %v1719 = vpack.c.bf16 %v1693, %v1691
        %v1720 = vpack.c.bf16 %v1694, %v1692
        %v1721 = vpack.c.bf16 %v1697, %v1695
        %v1722 = vpack.c.bf16 %v1698, %v1696
        %v1723 = vpack.c.bf16 %v1701, %v1699
        %v1724 = vpack.c.bf16 %v1702, %v1700
        %v1725 = vpack.c.bf16 %v1705, %v1703
        %v1726 = vpack.c.bf16 %v1706, %v1704
        %v1727 = vpack.c.bf16 %v1709, %v1707
        %v1728 = vpack.c.bf16 %v1710, %v1708
        %v1729 = vpack.c.bf16 %v1713, %v1711
        %v1730 = vpack.c.bf16 %v1714, %v1712
        %v1731 = vpack.c.bf16 %v1717, %v1715
        %v1732 = vpack.c.bf16 %v1718, %v1716
        %v1733 = vld [vmem:[%s3] sm:$0xff]
        %v1734 = vld [vmem:[%s3 + $0x8] sm:$0xff]
        %v1735 = vld [vmem:[%s3 + $0x10] sm:$0xff]
        %v1736 = vld [vmem:[%s3 + $0x18] sm:$0xff]
        %v1737 = vld [vmem:[%s3 + $0x20] sm:$0xff]
        %v1738 = vld [vmem:[%s3 + $0x28] sm:$0xff]
        %v1739 = vld [vmem:[%s3 + $0x30] sm:$0xff]
        %v1740 = vld [vmem:[%s3 + $0x38] sm:$0xff]
        %v1741 = vld [vmem:[%s3 + $0x40] sm:$0xff]
        %v1742 = vld [vmem:[%s3 + $0x48] sm:$0xff]
        %v1743 = vld [vmem:[%s3 + $0x50] sm:$0xff]
        %v1744 = vld [vmem:[%s3 + $0x58] sm:$0xff]
        %v1745 = vld [vmem:[%s3 + $0x60] sm:$0xff]
        %v1746 = vld [vmem:[%s3 + $0x68] sm:$0xff]
        %v1747 = vld [vmem:[%s3 + $0x70] sm:$0xff]
        %v1748 = vld [vmem:[%s3 + $0x78] sm:$0xff]
        %v1749 = vld [vmem:[%s3 + $0x80] sm:$0xff]
        %v1750 = vld [vmem:[%s3 + $0x88] sm:$0xff]
        %v1751 = vld [vmem:[%s3 + $0x90] sm:$0xff]
        %v1752 = vld [vmem:[%s3 + $0x98] sm:$0xff]
        %v1753 = vld [vmem:[%s3 + $0xa0] sm:$0xff]
        %v1754 = vld [vmem:[%s3 + $0xa8] sm:$0xff]
        %v1755 = vld [vmem:[%s3 + $0xb0] sm:$0xff]
        %v1756 = vld [vmem:[%s3 + $0xb8] sm:$0xff]
        %v1757 = vld [vmem:[%s3 + $0xc0] sm:$0xff]
        %v1758 = vld [vmem:[%s3 + $0xc8] sm:$0xff]
        %v1759 = vld [vmem:[%s3 + $0xd0] sm:$0xff]
        %v1760 = vld [vmem:[%s3 + $0xd8] sm:$0xff]
        %v1761 = vld [vmem:[%s3 + $0xe0] sm:$0xff]
        %v1762 = vld [vmem:[%s3 + $0xe8] sm:$0xff]
        %v1763 = vld [vmem:[%s3 + $0xf0] sm:$0xff]
        %v1764 = vld [vmem:[%s3 + $0xf8] sm:$0xff]
        %v1765 = vld [vmem:[%s3 + $0x100] sm:$0xff]
        %v1766 = vld [vmem:[%s3 + $0x108] sm:$0xff]
        %v1767 = vld [vmem:[%s3 + $0x110] sm:$0xff]
        %v1768 = vld [vmem:[%s3 + $0x118] sm:$0xff]
        %v1769 = vld [vmem:[%s3 + $0x120] sm:$0xff]
        %v1770 = vld [vmem:[%s3 + $0x128] sm:$0xff]
        %v1771 = vld [vmem:[%s3 + $0x130] sm:$0xff]
        %v1772 = vld [vmem:[%s3 + $0x138] sm:$0xff]
        %v1773 = vld [vmem:[%s3 + $0x140] sm:$0xff]
        %v1774 = vld [vmem:[%s3 + $0x148] sm:$0xff]
        %v1775 = vld [vmem:[%s3 + $0x150] sm:$0xff]
        %v1776 = vld [vmem:[%s3 + $0x158] sm:$0xff]
        %v1777 = vld [vmem:[%s3 + $0x160] sm:$0xff]
        %v1778 = vld [vmem:[%s3 + $0x168] sm:$0xff]
        %v1779 = vld [vmem:[%s3 + $0x170] sm:$0xff]
        %v1780 = vld [vmem:[%s3 + $0x178] sm:$0xff]
        %v1781 = vld [vmem:[%s3 + $0x180] sm:$0xff]
        %v1782 = vld [vmem:[%s3 + $0x188] sm:$0xff]
        %v1783 = vld [vmem:[%s3 + $0x190] sm:$0xff]
        %v1784 = vld [vmem:[%s3 + $0x198] sm:$0xff]
        %v1785 = vld [vmem:[%s3 + $0x1a0] sm:$0xff]
        %v1786 = vld [vmem:[%s3 + $0x1a8] sm:$0xff]
        %v1787 = vld [vmem:[%s3 + $0x1b0] sm:$0xff]
        %v1788 = vld [vmem:[%s3 + $0x1b8] sm:$0xff]
        %v1789 = vld [vmem:[#allocation2 + $0xe0] sm:$0xff]
        %v1790 = vld [vmem:[#allocation2 + $0xe8] sm:$0xff]
        %v1791 = vpack.c.bf16 %v1695, %v1693
        %v1792 = vpack.c.bf16 %v1696, %v1694
        %v1793 = vpack.c.bf16 %v1699, %v1697
        %v1794 = vpack.c.bf16 %v1700, %v1698
        %v1795 = vpack.c.bf16 %v1703, %v1701
        %v1796 = vpack.c.bf16 %v1704, %v1702
        %v1797 = vpack.c.bf16 %v1707, %v1705
        %v1798 = vpack.c.bf16 %v1708, %v1706
        %v1799 = vpack.c.bf16 %v1711, %v1709
        %v1800 = vpack.c.bf16 %v1712, %v1710
        %v1801 = vpack.c.bf16 %v1715, %v1713
        %v1802 = vpack.c.bf16 %v1716, %v1714
        %v1803 = vpack.c.bf16 %v1789, %v1717
        %v1804 = vpack.c.bf16 %v1790, %v1718
        %s1805 = scalar_lea.vmem %s3, 448
        %v1806 = vld [vmem:[%s1805] sm:$0xff]
        %v1807 = vld [vmem:[%s1805 + $0x8] sm:$0xff]
        %v1808 = vld [vmem:[%s1805 + $0x10] sm:$0xff]
        %v1809 = vld [vmem:[%s1805 + $0x18] sm:$0xff]
        %v1810 = vld [vmem:[%s1805 + $0x20] sm:$0xff]
        %v1811 = vld [vmem:[%s1805 + $0x28] sm:$0xff]
        %v1812 = vld [vmem:[%s1805 + $0x30] sm:$0xff]
        %v1813 = vld [vmem:[%s1805 + $0x38] sm:$0xff]
        %v1814 = vld [vmem:[%s1805 + $0x40] sm:$0xff]
        %v1815 = vld [vmem:[%s1805 + $0x48] sm:$0xff]
        %v1816 = vld [vmem:[%s1805 + $0x50] sm:$0xff]
        %v1817 = vld [vmem:[%s1805 + $0x58] sm:$0xff]
        %v1818 = vld [vmem:[%s1805 + $0x60] sm:$0xff]
        %v1819 = vld [vmem:[%s1805 + $0x68] sm:$0xff]
        %v1820 = vld [vmem:[%s1805 + $0x70] sm:$0xff]
        %v1821 = vld [vmem:[%s1805 + $0x78] sm:$0xff]
        %v1822 = vld [vmem:[%s1805 + $0x80] sm:$0xff]
        %v1823 = vld [vmem:[%s1805 + $0x88] sm:$0xff]
        %v1824 = vld [vmem:[%s1805 + $0x90] sm:$0xff]
        %v1825 = vld [vmem:[%s1805 + $0x98] sm:$0xff]
        %v1826 = vld [vmem:[%s1805 + $0xa0] sm:$0xff]
        %v1827 = vld [vmem:[%s1805 + $0xa8] sm:$0xff]
        %v1828 = vld [vmem:[%s1805 + $0xb0] sm:$0xff]
        %v1829 = vld [vmem:[%s1805 + $0xb8] sm:$0xff]
        %v1830 = vld [vmem:[%s1805 + $0xc0] sm:$0xff]
        %v1831 = vld [vmem:[%s1805 + $0xc8] sm:$0xff]
        %v1832 = vld [vmem:[%s1805 + $0xd0] sm:$0xff]
        %v1833 = vld [vmem:[%s1805 + $0xd8] sm:$0xff]
        %v1834 = vld [vmem:[%s1805 + $0xe0] sm:$0xff]
        %v1835 = vld [vmem:[%s1805 + $0xe8] sm:$0xff]
        %v1836 = vld [vmem:[%s1805 + $0xf0] sm:$0xff]
        %v1837 = vld [vmem:[%s1805 + $0xf8] sm:$0xff]
        %v1838 = vld [vmem:[%s1805 + $0x100] sm:$0xff]
        %v1839 = vld [vmem:[%s1805 + $0x108] sm:$0xff]
        %v1840 = vld [vmem:[%s1805 + $0x110] sm:$0xff]
        %v1841 = vld [vmem:[%s1805 + $0x118] sm:$0xff]
        %v1842 = vld [vmem:[%s1805 + $0x120] sm:$0xff]
        %v1843 = vld [vmem:[%s1805 + $0x128] sm:$0xff]
        %v1844 = vld [vmem:[%s1805 + $0x130] sm:$0xff]
        %v1845 = vld [vmem:[%s1805 + $0x138] sm:$0xff]
        %v1846 = vld [vmem:[%s1805 + $0x140] sm:$0xff]
        %v1847 = vld [vmem:[%s1805 + $0x148] sm:$0xff]
        %v1848 = vld [vmem:[%s1805 + $0x150] sm:$0xff]
        %v1849 = vld [vmem:[%s1805 + $0x158] sm:$0xff]
        %v1850 = vld [vmem:[%s1805 + $0x160] sm:$0xff]
        %v1851 = vld [vmem:[%s1805 + $0x168] sm:$0xff]
        %v1852 = vld [vmem:[%s1805 + $0x170] sm:$0xff]
        %v1853 = vld [vmem:[%s1805 + $0x178] sm:$0xff]
        %v1854 = vld [vmem:[%s1805 + $0x180] sm:$0xff]
        %v1855 = vld [vmem:[%s1805 + $0x188] sm:$0xff]
        %v1856 = vld [vmem:[%s1805 + $0x190] sm:$0xff]
        %v1857 = vld [vmem:[%s1805 + $0x198] sm:$0xff]
        %v1858 = vld [vmem:[%s1805 + $0x1a0] sm:$0xff]
        %v1859 = vld [vmem:[%s1805 + $0x1a8] sm:$0xff]
        %v1860 = vld [vmem:[%s1805 + $0x1b0] sm:$0xff]
        %v1861 = vld [vmem:[%s1805 + $0x1b8] sm:$0xff]
        %v1918 = vunpack.c.l.b16 %v1806
        %v1919 = vunpack.c.h.b16 %v1806
        %v1920 = vunpack.c.l.b16 %v1807
        %v1921 = vunpack.c.h.b16 %v1807
        %v1922 = vunpack.c.l.b16 %v1808
        %v1923 = vunpack.c.h.b16 %v1808
        %v1924 = vunpack.c.l.b16 %v1809
        %v1925 = vunpack.c.h.b16 %v1809
        %v1926 = vunpack.c.l.b16 %v1810
        %v1927 = vunpack.c.h.b16 %v1810
        %v1928 = vunpack.c.l.b16 %v1811
        %v1929 = vunpack.c.h.b16 %v1811
        %v1930 = vunpack.c.l.b16 %v1812
        %v1931 = vunpack.c.h.b16 %v1812
        %v1932 = vunpack.c.l.b16 %v1813
        %v1933 = vunpack.c.h.b16 %v1813
        %v1934 = vunpack.c.l.b16 %v1814
        %v1935 = vunpack.c.h.b16 %v1814
        %v1936 = vunpack.c.l.b16 %v1815
        %v1937 = vunpack.c.h.b16 %v1815
        %v1938 = vunpack.c.l.b16 %v1816
        %v1939 = vunpack.c.h.b16 %v1816
        %v1940 = vunpack.c.l.b16 %v1817
        %v1941 = vunpack.c.h.b16 %v1817
        %v1942 = vunpack.c.l.b16 %v1818
        %v1943 = vunpack.c.h.b16 %v1818
        %v1944 = vunpack.c.l.b16 %v1819
        %v1945 = vunpack.c.h.b16 %v1819
        %v1946 = vunpack.c.l.b16 %v1820
        %v1947 = vunpack.c.h.b16 %v1820
        %v1948 = vunpack.c.l.b16 %v1821
        %v1949 = vunpack.c.h.b16 %v1821
        %v1950 = vunpack.c.l.b16 %v1822
        %v1951 = vunpack.c.h.b16 %v1822
        %v1952 = vunpack.c.l.b16 %v1823
        %v1953 = vunpack.c.h.b16 %v1823
        %v1954 = vunpack.c.l.b16 %v1824
        %v1955 = vunpack.c.h.b16 %v1824
        %v1956 = vunpack.c.l.b16 %v1825
        %v1957 = vunpack.c.h.b16 %v1825
        %v1958 = vunpack.c.l.b16 %v1826
        %v1959 = vunpack.c.h.b16 %v1826
        %v1960 = vunpack.c.l.b16 %v1827
        %v1961 = vunpack.c.h.b16 %v1827
        %v1962 = vunpack.c.l.b16 %v1828
        %v1963 = vunpack.c.h.b16 %v1828
        %v1964 = vunpack.c.l.b16 %v1829
        %v1965 = vunpack.c.h.b16 %v1829
        %v1966 = vunpack.c.l.b16 %v1830
        %v1967 = vunpack.c.h.b16 %v1830
        %v1968 = vunpack.c.l.b16 %v1831
        %v1969 = vunpack.c.h.b16 %v1831
        %v1970 = vunpack.c.l.b16 %v1832
        %v1971 = vunpack.c.h.b16 %v1832
        %v1972 = vunpack.c.l.b16 %v1833
        %v1973 = vunpack.c.h.b16 %v1833
        %v1974 = vunpack.c.l.b16 %v1834
        %v1975 = vunpack.c.h.b16 %v1834
        %v1976 = vunpack.c.l.b16 %v1835
        %v1977 = vunpack.c.h.b16 %v1835
        %v1978 = vunpack.c.l.b16 %v1836
        %v1979 = vunpack.c.h.b16 %v1836
        %v1980 = vunpack.c.l.b16 %v1837
        %v1981 = vunpack.c.h.b16 %v1837
        %v1982 = vunpack.c.l.b16 %v1838
        %v1983 = vunpack.c.h.b16 %v1838
        %v1984 = vunpack.c.l.b16 %v1839
        %v1985 = vunpack.c.h.b16 %v1839
        %v1986 = vunpack.c.l.b16 %v1840
        %v1987 = vunpack.c.h.b16 %v1840
        %v1988 = vunpack.c.l.b16 %v1841
        %v1989 = vunpack.c.h.b16 %v1841
        %v1990 = vunpack.c.l.b16 %v1842
        %v1991 = vunpack.c.h.b16 %v1842
        %v1992 = vunpack.c.l.b16 %v1843
        %v1993 = vunpack.c.h.b16 %v1843
        %v1994 = vunpack.c.l.b16 %v1844
        %v1995 = vunpack.c.h.b16 %v1844
        %v1996 = vunpack.c.l.b16 %v1845
        %v1997 = vunpack.c.h.b16 %v1845
        %v1998 = vunpack.c.l.b16 %v1846
        %v1999 = vunpack.c.h.b16 %v1846
        %v2000 = vunpack.c.l.b16 %v1847
        %v2001 = vunpack.c.h.b16 %v1847
        %v2002 = vunpack.c.l.b16 %v1848
        %v2003 = vunpack.c.h.b16 %v1848
        %v2004 = vunpack.c.l.b16 %v1849
        %v2005 = vunpack.c.h.b16 %v1849
        %v2006 = vunpack.c.l.b16 %v1850
        %v2007 = vunpack.c.h.b16 %v1850
        %v2008 = vunpack.c.l.b16 %v1851
        %v2009 = vunpack.c.h.b16 %v1851
        %v2010 = vunpack.c.l.b16 %v1852
        %v2011 = vunpack.c.h.b16 %v1852
        %v2012 = vunpack.c.l.b16 %v1853
        %v2013 = vunpack.c.h.b16 %v1853
        %v2014 = vunpack.c.l.b16 %v1854
        %v2015 = vunpack.c.h.b16 %v1854
        %v2016 = vunpack.c.l.b16 %v1855
        %v2017 = vunpack.c.h.b16 %v1855
        %v2018 = vunpack.c.l.b16 %v1856
        %v2019 = vunpack.c.h.b16 %v1856
        %v2020 = vunpack.c.l.b16 %v1857
        %v2021 = vunpack.c.h.b16 %v1857
        %v2022 = vunpack.c.l.b16 %v1858
        %v2023 = vunpack.c.h.b16 %v1858
        %v2024 = vunpack.c.l.b16 %v1859
        %v2025 = vunpack.c.h.b16 %v1859
        %v2026 = vunpack.c.l.b16 %v1860
        %v2027 = vunpack.c.h.b16 %v1860
        %v2028 = vunpack.c.l.b16 %v1861
        %v2029 = vunpack.c.h.b16 %v1861
        %v2030 = vpack.c.b16 %v1922, %v1918
        %v2031 = vpack.c.b16 %v1923, %v1919
        %v2032 = vpack.c.b16 %v1924, %v1920
        %v2033 = vpack.c.b16 %v1925, %v1921
        %v2034 = vpack.c.b16 %v1930, %v1926
        %v2035 = vpack.c.b16 %v1931, %v1927
        %v2036 = vpack.c.b16 %v1932, %v1928
        %v2037 = vpack.c.b16 %v1933, %v1929
        %v2038 = vpack.c.b16 %v1938, %v1934
        %v2039 = vpack.c.b16 %v1939, %v1935
        %v2040 = vpack.c.b16 %v1940, %v1936
        %v2041 = vpack.c.b16 %v1941, %v1937
        %v2042 = vpack.c.b16 %v1946, %v1942
        %v2043 = vpack.c.b16 %v1947, %v1943
        %v2044 = vpack.c.b16 %v1948, %v1944
        %v2045 = vpack.c.b16 %v1949, %v1945
        %v2046 = vpack.c.b16 %v1954, %v1950
        %v2047 = vpack.c.b16 %v1955, %v1951
        %v2048 = vpack.c.b16 %v1956, %v1952
        %v2049 = vpack.c.b16 %v1957, %v1953
        %v2050 = vpack.c.b16 %v1962, %v1958
        %v2051 = vpack.c.b16 %v1963, %v1959
        %v2052 = vpack.c.b16 %v1964, %v1960
        %v2053 = vpack.c.b16 %v1965, %v1961
        %v2054 = vpack.c.b16 %v1970, %v1966
        %v2055 = vpack.c.b16 %v1971, %v1967
        %v2056 = vpack.c.b16 %v1972, %v1968
        %v2057 = vpack.c.b16 %v1973, %v1969
        %v2058 = vpack.c.b16 %v1978, %v1974
        %v2059 = vpack.c.b16 %v1979, %v1975
        %v2060 = vpack.c.b16 %v1980, %v1976
        %v2061 = vpack.c.b16 %v1981, %v1977
        %v2062 = vpack.c.b16 %v1986, %v1982
        %v2063 = vpack.c.b16 %v1987, %v1983
        %v2064 = vpack.c.b16 %v1988, %v1984
        %v2065 = vpack.c.b16 %v1989, %v1985
        %v2066 = vpack.c.b16 %v1994, %v1990
        %v2067 = vpack.c.b16 %v1995, %v1991
        %v2068 = vpack.c.b16 %v1996, %v1992
        %v2069 = vpack.c.b16 %v1997, %v1993
        %v2070 = vpack.c.b16 %v2002, %v1998
        %v2071 = vpack.c.b16 %v2003, %v1999
        %v2072 = vpack.c.b16 %v2004, %v2000
        %v2073 = vpack.c.b16 %v2005, %v2001
        %v2074 = vpack.c.b16 %v2010, %v2006
        %v2075 = vpack.c.b16 %v2011, %v2007
        %v2076 = vpack.c.b16 %v2012, %v2008
        %v2077 = vpack.c.b16 %v2013, %v2009
        %v2078 = vpack.c.b16 %v2018, %v2014
        %v2079 = vpack.c.b16 %v2019, %v2015
        %v2080 = vpack.c.b16 %v2020, %v2016
        %v2081 = vpack.c.b16 %v2021, %v2017
        %v2082 = vpack.c.b16 %v2026, %v2022
        %v2083 = vpack.c.b16 %v2027, %v2023
        %v2084 = vpack.c.b16 %v2028, %v2024
        %v2085 = vpack.c.b16 %v2029, %v2025
        %v2143 = vsel %vm1655, %v1792, 0
        %v2146 = vsel %vm1655, %v1794, 0
        %v2149 = vsel %vm1655, %v1796, 0
        %v2152 = vsel %vm1655, %v1798, 0
        %v2155 = vsel %vm1655, %v1800, 0
        %v2158 = vsel %vm1655, %v1802, 0
        %v2161 = vsel %vm1655, %v1804, 0
        %2163 = vmatpush.bf16.msra.mxu0 %v2058
        %2164 = vmatpush.bf16.msra.mxu0 %v2054
        %2165 = vmatpush.bf16.msra.mxu0 %v2050
        %2166 = vmatpush.bf16.msra.mxu0 %v2046
        %2167 = vmatpush.bf16.msra.mxu0 %v2042
        %2168 = vmatpush.bf16.msra.mxu0 %v2038
        %2169 = vmatpush.bf16.msra.mxu0 %v2034
        %2170 = vmatpush.bf16.msra.mxu0 %v2030
        %2171 = vmatmul.bf16.gmra.mxu0 %v1791
        %v2172 = vpop.f32.mrf.mxu0
        %v2173 = vadd.f32 0.0, %v2172
        %v2174 = vpop.f32.mrf.mxu0
        %v2175 = vadd.f32 0.0, %v2174
        %2176 = vmatmul.bf16.gmra.mxu0 %v1793
        %v2177 = vpop.f32.mrf.mxu0
        %v2178 = vadd.f32 0.0, %v2177
        %v2179 = vpop.f32.mrf.mxu0
        %v2180 = vadd.f32 0.0, %v2179
        %2181 = vmatmul.bf16.gmra.mxu0 %v1795
        %v2182 = vpop.f32.mrf.mxu0
        %v2183 = vadd.f32 0.0, %v2182
        %v2184 = vpop.f32.mrf.mxu0
        %v2185 = vadd.f32 0.0, %v2184
        %2186 = vmatmul.bf16.gmra.mxu0 %v1797
        %v2187 = vpop.f32.mrf.mxu0
        %v2188 = vadd.f32 0.0, %v2187
        %v2189 = vpop.f32.mrf.mxu0
        %v2190 = vadd.f32 0.0, %v2189
        %2191 = vmatmul.bf16.gmra.mxu0 %v1799
        %v2192 = vpop.f32.mrf.mxu0
        %v2193 = vadd.f32 0.0, %v2192
        %v2194 = vpop.f32.mrf.mxu0
        %v2195 = vadd.f32 0.0, %v2194
        %2196 = vmatmul.bf16.gmra.mxu0 %v1801
        %v2197 = vpop.f32.mrf.mxu0
        %v2198 = vadd.f32 0.0, %v2197
        %v2199 = vpop.f32.mrf.mxu0
        %v2200 = vadd.f32 0.0, %v2199
        %2201 = vmatmul.bf16.gmra.mxu0 %v1803
        %v2202 = vpop.f32.mrf.mxu0
        %v2203 = vadd.f32 0.0, %v2202
        %v2204 = vpop.f32.mrf.mxu0
        %v2205 = vadd.f32 0.0, %v2204
        %2206 = vdwg.mxu0
        %2207 = vmatpush.bf16.msra.mxu0 0
        %2208 = vmatpush.bf16.msra.mxu0 0
        %2209 = vmatpush.bf16.msra.mxu0 %v2082
        %2210 = vmatpush.bf16.msra.mxu0 %v2078
        %2211 = vmatpush.bf16.msra.mxu0 %v2074
        %2212 = vmatpush.bf16.msra.mxu0 %v2070
        %2213 = vmatpush.bf16.msra.mxu0 %v2066
        %2214 = vmatpush.bf16.msra.mxu0 %v2062
        %2215 = vmatmul.bf16.gmra.mxu0 %v2143
        %v2216 = vpop.f32.mrf.mxu0
        %v2217 = vadd.f32 %v2173, %v2216
        %v2218 = vpop.f32.mrf.mxu0
        %v2219 = vadd.f32 %v2175, %v2218
        %2220 = vmatmul.bf16.gmra.mxu0 %v2146
        %v2221 = vpop.f32.mrf.mxu0
        %v2222 = vadd.f32 %v2178, %v2221
        %v2223 = vpop.f32.mrf.mxu0
        %v2224 = vadd.f32 %v2180, %v2223
        %2225 = vmatmul.bf16.gmra.mxu0 %v2149
        %v2226 = vpop.f32.mrf.mxu0
        %v2227 = vadd.f32 %v2183, %v2226
        %v2228 = vpop.f32.mrf.mxu0
        %v2229 = vadd.f32 %v2185, %v2228
        %2230 = vmatmul.bf16.gmra.mxu0 %v2152
        %v2231 = vpop.f32.mrf.mxu0
        %v2232 = vadd.f32 %v2188, %v2231
        %v2233 = vpop.f32.mrf.mxu0
        %v2234 = vadd.f32 %v2190, %v2233
        %2235 = vmatmul.bf16.gmra.mxu0 %v2155
        %v2236 = vpop.f32.mrf.mxu0
        %v2237 = vadd.f32 %v2193, %v2236
        %v2238 = vpop.f32.mrf.mxu0
        %v2239 = vadd.f32 %v2195, %v2238
        %2240 = vmatmul.bf16.gmra.mxu0 %v2158
        %v2241 = vpop.f32.mrf.mxu0
        %v2242 = vadd.f32 %v2198, %v2241
        %v2243 = vpop.f32.mrf.mxu0
        %v2244 = vadd.f32 %v2200, %v2243
        %2245 = vmatmul.bf16.gmra.mxu0 %v2161
        %v2246 = vpop.f32.mrf.mxu0
        %v2247 = vadd.f32 %v2203, %v2246
        %v2248 = vpop.f32.mrf.mxu0
        %v2249 = vadd.f32 %v2205, %v2248
        %2250 = vdwg.mxu0
        %2251 = vmatpush.bf16.msra.mxu0 %v2059
        %2252 = vmatpush.bf16.msra.mxu0 %v2055
        %2253 = vmatpush.bf16.msra.mxu0 %v2051
        %2254 = vmatpush.bf16.msra.mxu0 %v2047
        %2255 = vmatpush.bf16.msra.mxu0 %v2043
        %2256 = vmatpush.bf16.msra.mxu0 %v2039
        %2257 = vmatpush.bf16.msra.mxu0 %v2035
        %2258 = vmatpush.bf16.msra.mxu0 %v2031
        %2259 = vmatmul.bf16.gmra.mxu0 %v1791
        %v2260 = vpop.f32.mrf.mxu0
        %v2261 = vadd.f32 0.0, %v2260
        %v2262 = vpop.f32.mrf.mxu0
        %v2263 = vadd.f32 0.0, %v2262
        %2264 = vmatmul.bf16.gmra.mxu0 %v1793
        %v2265 = vpop.f32.mrf.mxu0
        %v2266 = vadd.f32 0.0, %v2265
        %v2267 = vpop.f32.mrf.mxu0
        %v2268 = vadd.f32 0.0, %v2267
        %2269 = vmatmul.bf16.gmra.mxu0 %v1795
        %v2270 = vpop.f32.mrf.mxu0
        %v2271 = vadd.f32 0.0, %v2270
        %v2272 = vpop.f32.mrf.mxu0
        %v2273 = vadd.f32 0.0, %v2272
        %2274 = vmatmul.bf16.gmra.mxu0 %v1797
        %v2275 = vpop.f32.mrf.mxu0
        %v2276 = vadd.f32 0.0, %v2275
        %v2277 = vpop.f32.mrf.mxu0
        %v2278 = vadd.f32 0.0, %v2277
        %2279 = vmatmul.bf16.gmra.mxu0 %v1799
        %v2280 = vpop.f32.mrf.mxu0
        %v2281 = vadd.f32 0.0, %v2280
        %v2282 = vpop.f32.mrf.mxu0
        %v2283 = vadd.f32 0.0, %v2282
        %2284 = vmatmul.bf16.gmra.mxu0 %v1801
        %v2285 = vpop.f32.mrf.mxu0
        %v2286 = vadd.f32 0.0, %v2285
        %v2287 = vpop.f32.mrf.mxu0
        %v2288 = vadd.f32 0.0, %v2287
        %2289 = vmatmul.bf16.gmra.mxu0 %v1803
        %v2290 = vpop.f32.mrf.mxu0
        %v2291 = vadd.f32 0.0, %v2290
        %v2292 = vpop.f32.mrf.mxu0
        %v2293 = vadd.f32 0.0, %v2292
        %2294 = vdwg.mxu0
        %2295 = vmatpush.bf16.msra.mxu0 0
        %2296 = vmatpush.bf16.msra.mxu0 0
        %2297 = vmatpush.bf16.msra.mxu0 %v2083
        %2298 = vmatpush.bf16.msra.mxu0 %v2079
        %2299 = vmatpush.bf16.msra.mxu0 %v2075
        %2300 = vmatpush.bf16.msra.mxu0 %v2071
        %2301 = vmatpush.bf16.msra.mxu0 %v2067
        %2302 = vmatpush.bf16.msra.mxu0 %v2063
        %2303 = vmatmul.bf16.gmra.mxu0 %v2143
        %v2304 = vpop.f32.mrf.mxu0
        %v2305 = vadd.f32 %v2261, %v2304
        %v2306 = vpop.f32.mrf.mxu0
        %v2307 = vadd.f32 %v2263, %v2306
        %2308 = vmatmul.bf16.gmra.mxu0 %v2146
        %v2309 = vpop.f32.mrf.mxu0
        %v2310 = vadd.f32 %v2266, %v2309
        %v2311 = vpop.f32.mrf.mxu0
        %v2312 = vadd.f32 %v2268, %v2311
        %2313 = vmatmul.bf16.gmra.mxu0 %v2149
        %v2314 = vpop.f32.mrf.mxu0
        %v2315 = vadd.f32 %v2271, %v2314
        %v2316 = vpop.f32.mrf.mxu0
        %v2317 = vadd.f32 %v2273, %v2316
        %2318 = vmatmul.bf16.gmra.mxu0 %v2152
        %v2319 = vpop.f32.mrf.mxu0
        %v2320 = vadd.f32 %v2276, %v2319
        %v2321 = vpop.f32.mrf.mxu0
        %v2322 = vadd.f32 %v2278, %v2321
        %2323 = vmatmul.bf16.gmra.mxu0 %v2155
        %v2324 = vpop.f32.mrf.mxu0
        %v2325 = vadd.f32 %v2281, %v2324
        %v2326 = vpop.f32.mrf.mxu0
        %v2327 = vadd.f32 %v2283, %v2326
        %2328 = vmatmul.bf16.gmra.mxu0 %v2158
        %v2329 = vpop.f32.mrf.mxu0
        %v2330 = vadd.f32 %v2286, %v2329
        %v2331 = vpop.f32.mrf.mxu0
        %v2332 = vadd.f32 %v2288, %v2331
        %2333 = vmatmul.bf16.gmra.mxu0 %v2161
        %v2334 = vpop.f32.mrf.mxu0
        %v2335 = vadd.f32 %v2291, %v2334
        %v2336 = vpop.f32.mrf.mxu0
        %v2337 = vadd.f32 %v2293, %v2336
        %2338 = vdwg.mxu0
        %2339 = vmatpush.bf16.msra.mxu0 %v2060
        %2340 = vmatpush.bf16.msra.mxu0 %v2056
        %2341 = vmatpush.bf16.msra.mxu0 %v2052
        %2342 = vmatpush.bf16.msra.mxu0 %v2048
        %2343 = vmatpush.bf16.msra.mxu0 %v2044
        %2344 = vmatpush.bf16.msra.mxu0 %v2040
        %2345 = vmatpush.bf16.msra.mxu0 %v2036
        %2346 = vmatpush.bf16.msra.mxu0 %v2032
        %2347 = vmatmul.bf16.gmra.mxu0 %v1791
        %v2348 = vpop.f32.mrf.mxu0
        %v2349 = vadd.f32 0.0, %v2348
        %v2350 = vpop.f32.mrf.mxu0
        %v2351 = vadd.f32 0.0, %v2350
        %2352 = vmatmul.bf16.gmra.mxu0 %v1793
        %v2353 = vpop.f32.mrf.mxu0
        %v2354 = vadd.f32 0.0, %v2353
        %v2355 = vpop.f32.mrf.mxu0
        %v2356 = vadd.f32 0.0, %v2355
        %2357 = vmatmul.bf16.gmra.mxu0 %v1795
        %v2358 = vpop.f32.mrf.mxu0
        %v2359 = vadd.f32 0.0, %v2358
        %v2360 = vpop.f32.mrf.mxu0
        %v2361 = vadd.f32 0.0, %v2360
        %2362 = vmatmul.bf16.gmra.mxu0 %v1797
        %v2363 = vpop.f32.mrf.mxu0
        %v2364 = vadd.f32 0.0, %v2363
        %v2365 = vpop.f32.mrf.mxu0
        %v2366 = vadd.f32 0.0, %v2365
        %2367 = vmatmul.bf16.gmra.mxu0 %v1799
        %v2368 = vpop.f32.mrf.mxu0
        %v2369 = vadd.f32 0.0, %v2368
        %v2370 = vpop.f32.mrf.mxu0
        %v2371 = vadd.f32 0.0, %v2370
        %2372 = vmatmul.bf16.gmra.mxu0 %v1801
        %v2373 = vpop.f32.mrf.mxu0
        %v2374 = vadd.f32 0.0, %v2373
        %v2375 = vpop.f32.mrf.mxu0
        %v2376 = vadd.f32 0.0, %v2375
        %2377 = vmatmul.bf16.gmra.mxu0 %v1803
        %v2378 = vpop.f32.mrf.mxu0
        %v2379 = vadd.f32 0.0, %v2378
        %v2380 = vpop.f32.mrf.mxu0
        %v2381 = vadd.f32 0.0, %v2380
        %2382 = vdwg.mxu0
        %2383 = vmatpush.bf16.msra.mxu0 0
        %2384 = vmatpush.bf16.msra.mxu0 0
        %2385 = vmatpush.bf16.msra.mxu0 %v2084
        %2386 = vmatpush.bf16.msra.mxu0 %v2080
        %2387 = vmatpush.bf16.msra.mxu0 %v2076
        %2388 = vmatpush.bf16.msra.mxu0 %v2072
        %2389 = vmatpush.bf16.msra.mxu0 %v2068
        %2390 = vmatpush.bf16.msra.mxu0 %v2064
        %2391 = vmatmul.bf16.gmra.mxu0 %v2143
        %v2392 = vpop.f32.mrf.mxu0
        %v2393 = vadd.f32 %v2349, %v2392
        %v2394 = vpop.f32.mrf.mxu0
        %v2395 = vadd.f32 %v2351, %v2394
        %2396 = vmatmul.bf16.gmra.mxu0 %v2146
        %v2397 = vpop.f32.mrf.mxu0
        %v2398 = vadd.f32 %v2354, %v2397
        %v2399 = vpop.f32.mrf.mxu0
        %v2400 = vadd.f32 %v2356, %v2399
        %2401 = vmatmul.bf16.gmra.mxu0 %v2149
        %v2402 = vpop.f32.mrf.mxu0
        %v2403 = vadd.f32 %v2359, %v2402
        %v2404 = vpop.f32.mrf.mxu0
        %v2405 = vadd.f32 %v2361, %v2404
        %2406 = vmatmul.bf16.gmra.mxu0 %v2152
        %v2407 = vpop.f32.mrf.mxu0
        %v2408 = vadd.f32 %v2364, %v2407
        %v2409 = vpop.f32.mrf.mxu0
        %v2410 = vadd.f32 %v2366, %v2409
        %2411 = vmatmul.bf16.gmra.mxu0 %v2155
        %v2412 = vpop.f32.mrf.mxu0
        %v2413 = vadd.f32 %v2369, %v2412
        %v2414 = vpop.f32.mrf.mxu0
        %v2415 = vadd.f32 %v2371, %v2414
        %2416 = vmatmul.bf16.gmra.mxu0 %v2158
        %v2417 = vpop.f32.mrf.mxu0
        %v2418 = vadd.f32 %v2374, %v2417
        %v2419 = vpop.f32.mrf.mxu0
        %v2420 = vadd.f32 %v2376, %v2419
        %2421 = vmatmul.bf16.gmra.mxu0 %v2161
        %v2422 = vpop.f32.mrf.mxu0
        %v2423 = vadd.f32 %v2379, %v2422
        %v2424 = vpop.f32.mrf.mxu0
        %v2425 = vadd.f32 %v2381, %v2424
        %2426 = vdwg.mxu0
        %2427 = vmatpush.bf16.msra.mxu0 %v2061
        %2428 = vmatpush.bf16.msra.mxu0 %v2057
        %2429 = vmatpush.bf16.msra.mxu0 %v2053
        %2430 = vmatpush.bf16.msra.mxu0 %v2049
        %2431 = vmatpush.bf16.msra.mxu0 %v2045
        %2432 = vmatpush.bf16.msra.mxu0 %v2041
        %2433 = vmatpush.bf16.msra.mxu0 %v2037
        %2434 = vmatpush.bf16.msra.mxu0 %v2033
        %2435 = vmatmul.bf16.gmra.mxu0 %v1791
        %v2436 = vpop.f32.mrf.mxu0
        %v2437 = vadd.f32 0.0, %v2436
        %v2438 = vpop.f32.mrf.mxu0
        %v2439 = vadd.f32 0.0, %v2438
        %2440 = vmatmul.bf16.gmra.mxu0 %v1793
        %v2441 = vpop.f32.mrf.mxu0
        %v2442 = vadd.f32 0.0, %v2441
        %v2443 = vpop.f32.mrf.mxu0
        %v2444 = vadd.f32 0.0, %v2443
        %2445 = vmatmul.bf16.gmra.mxu0 %v1795
        %v2446 = vpop.f32.mrf.mxu0
        %v2447 = vadd.f32 0.0, %v2446
        %v2448 = vpop.f32.mrf.mxu0
        %v2449 = vadd.f32 0.0, %v2448
        %2450 = vmatmul.bf16.gmra.mxu0 %v1797
        %v2451 = vpop.f32.mrf.mxu0
        %v2452 = vadd.f32 0.0, %v2451
        %v2453 = vpop.f32.mrf.mxu0
        %v2454 = vadd.f32 0.0, %v2453
        %2455 = vmatmul.bf16.gmra.mxu0 %v1799
        %v2456 = vpop.f32.mrf.mxu0
        %v2457 = vadd.f32 0.0, %v2456
        %v2458 = vpop.f32.mrf.mxu0
        %v2459 = vadd.f32 0.0, %v2458
        %2460 = vmatmul.bf16.gmra.mxu0 %v1801
        %v2461 = vpop.f32.mrf.mxu0
        %v2462 = vadd.f32 0.0, %v2461
        %v2463 = vpop.f32.mrf.mxu0
        %v2464 = vadd.f32 0.0, %v2463
        %2465 = vmatmul.bf16.gmra.mxu0 %v1803
        %v2466 = vpop.f32.mrf.mxu0
        %v2467 = vadd.f32 0.0, %v2466
        %v2468 = vpop.f32.mrf.mxu0
        %v2469 = vadd.f32 0.0, %v2468
        %2470 = vdwg.mxu0
        %2471 = vmatpush.bf16.msra.mxu0 0
        %2472 = vmatpush.bf16.msra.mxu0 0
        %2473 = vmatpush.bf16.msra.mxu0 %v2085
        %2474 = vmatpush.bf16.msra.mxu0 %v2081
        %2475 = vmatpush.bf16.msra.mxu0 %v2077
        %2476 = vmatpush.bf16.msra.mxu0 %v2073
        %2477 = vmatpush.bf16.msra.mxu0 %v2069
        %2478 = vmatpush.bf16.msra.mxu0 %v2065
        %2479 = vmatmul.bf16.gmra.mxu0 %v2143
        %v2480 = vpop.f32.mrf.mxu0
        %v2481 = vadd.f32 %v2437, %v2480
        %v2482 = vpop.f32.mrf.mxu0
        %v2483 = vadd.f32 %v2439, %v2482
        %2484 = vmatmul.bf16.gmra.mxu0 %v2146
        %v2485 = vpop.f32.mrf.mxu0
        %v2486 = vadd.f32 %v2442, %v2485
        %v2487 = vpop.f32.mrf.mxu0
        %v2488 = vadd.f32 %v2444, %v2487
        %2489 = vmatmul.bf16.gmra.mxu0 %v2149
        %v2490 = vpop.f32.mrf.mxu0
        %v2491 = vadd.f32 %v2447, %v2490
        %v2492 = vpop.f32.mrf.mxu0
        %v2493 = vadd.f32 %v2449, %v2492
        %2494 = vmatmul.bf16.gmra.mxu0 %v2152
        %v2495 = vpop.f32.mrf.mxu0
        %v2496 = vadd.f32 %v2452, %v2495
        %v2497 = vpop.f32.mrf.mxu0
        %v2498 = vadd.f32 %v2454, %v2497
        %2499 = vmatmul.bf16.gmra.mxu0 %v2155
        %v2500 = vpop.f32.mrf.mxu0
        %v2501 = vadd.f32 %v2457, %v2500
        %v2502 = vpop.f32.mrf.mxu0
        %v2503 = vadd.f32 %v2459, %v2502
        %2504 = vmatmul.bf16.gmra.mxu0 %v2158
        %v2505 = vpop.f32.mrf.mxu0
        %v2506 = vadd.f32 %v2462, %v2505
        %v2507 = vpop.f32.mrf.mxu0
        %v2508 = vadd.f32 %v2464, %v2507
        %2509 = vmatmul.bf16.gmra.mxu0 %v2161
        %v2510 = vpop.f32.mrf.mxu0
        %v2511 = vadd.f32 %v2467, %v2510
        %v2512 = vpop.f32.mrf.mxu0
        %v2513 = vadd.f32 %v2469, %v2512
        %2514 = vdwg.mxu0
        %v2571 = vunpack.c.l.b16 %v1733
        %v2572 = vunpack.c.h.b16 %v1733
        %v2573 = vunpack.c.l.b16 %v1734
        %v2574 = vunpack.c.h.b16 %v1734
        %v2575 = vunpack.c.l.b16 %v1735
        %v2576 = vunpack.c.h.b16 %v1735
        %v2577 = vunpack.c.l.b16 %v1736
        %v2578 = vunpack.c.h.b16 %v1736
        %v2579 = vunpack.c.l.b16 %v1737
        %v2580 = vunpack.c.h.b16 %v1737
        %v2581 = vunpack.c.l.b16 %v1738
        %v2582 = vunpack.c.h.b16 %v1738
        %v2583 = vunpack.c.l.b16 %v1739
        %v2584 = vunpack.c.h.b16 %v1739
        %v2585 = vunpack.c.l.b16 %v1740
        %v2586 = vunpack.c.h.b16 %v1740
        %v2587 = vunpack.c.l.b16 %v1741
        %v2588 = vunpack.c.h.b16 %v1741
        %v2589 = vunpack.c.l.b16 %v1742
        %v2590 = vunpack.c.h.b16 %v1742
        %v2591 = vunpack.c.l.b16 %v1743
        %v2592 = vunpack.c.h.b16 %v1743
        %v2593 = vunpack.c.l.b16 %v1744
        %v2594 = vunpack.c.h.b16 %v1744
        %v2595 = vunpack.c.l.b16 %v1745
        %v2596 = vunpack.c.h.b16 %v1745
        %v2597 = vunpack.c.l.b16 %v1746
        %v2598 = vunpack.c.h.b16 %v1746
        %v2599 = vunpack.c.l.b16 %v1747
        %v2600 = vunpack.c.h.b16 %v1747
        %v2601 = vunpack.c.l.b16 %v1748
        %v2602 = vunpack.c.h.b16 %v1748
        %v2603 = vunpack.c.l.b16 %v1749
        %v2604 = vunpack.c.h.b16 %v1749
        %v2605 = vunpack.c.l.b16 %v1750
        %v2606 = vunpack.c.h.b16 %v1750
        %v2607 = vunpack.c.l.b16 %v1751
        %v2608 = vunpack.c.h.b16 %v1751
        %v2609 = vunpack.c.l.b16 %v1752
        %v2610 = vunpack.c.h.b16 %v1752
        %v2611 = vunpack.c.l.b16 %v1753
        %v2612 = vunpack.c.h.b16 %v1753
        %v2613 = vunpack.c.l.b16 %v1754
        %v2614 = vunpack.c.h.b16 %v1754
        %v2615 = vunpack.c.l.b16 %v1755
        %v2616 = vunpack.c.h.b16 %v1755
        %v2617 = vunpack.c.l.b16 %v1756
        %v2618 = vunpack.c.h.b16 %v1756
        %v2619 = vunpack.c.l.b16 %v1757
        %v2620 = vunpack.c.h.b16 %v1757
        %v2621 = vunpack.c.l.b16 %v1758
        %v2622 = vunpack.c.h.b16 %v1758
        %v2623 = vunpack.c.l.b16 %v1759
        %v2624 = vunpack.c.h.b16 %v1759
        %v2625 = vunpack.c.l.b16 %v1760
        %v2626 = vunpack.c.h.b16 %v1760
        %v2627 = vunpack.c.l.b16 %v1761
        %v2628 = vunpack.c.h.b16 %v1761
        %v2629 = vunpack.c.l.b16 %v1762
        %v2630 = vunpack.c.h.b16 %v1762
        %v2631 = vunpack.c.l.b16 %v1763
        %v2632 = vunpack.c.h.b16 %v1763
        %v2633 = vunpack.c.l.b16 %v1764
        %v2634 = vunpack.c.h.b16 %v1764
        %v2635 = vunpack.c.l.b16 %v1765
        %v2636 = vunpack.c.h.b16 %v1765
        %v2637 = vunpack.c.l.b16 %v1766
        %v2638 = vunpack.c.h.b16 %v1766
        %v2639 = vunpack.c.l.b16 %v1767
        %v2640 = vunpack.c.h.b16 %v1767
        %v2641 = vunpack.c.l.b16 %v1768
        %v2642 = vunpack.c.h.b16 %v1768
        %v2643 = vunpack.c.l.b16 %v1769
        %v2644 = vunpack.c.h.b16 %v1769
        %v2645 = vunpack.c.l.b16 %v1770
        %v2646 = vunpack.c.h.b16 %v1770
        %v2647 = vunpack.c.l.b16 %v1771
        %v2648 = vunpack.c.h.b16 %v1771
        %v2649 = vunpack.c.l.b16 %v1772
        %v2650 = vunpack.c.h.b16 %v1772
        %v2651 = vunpack.c.l.b16 %v1773
        %v2652 = vunpack.c.h.b16 %v1773
        %v2653 = vunpack.c.l.b16 %v1774
        %v2654 = vunpack.c.h.b16 %v1774
        %v2655 = vunpack.c.l.b16 %v1775
        %v2656 = vunpack.c.h.b16 %v1775
        %v2657 = vunpack.c.l.b16 %v1776
        %v2658 = vunpack.c.h.b16 %v1776
        %v2659 = vunpack.c.l.b16 %v1777
        %v2660 = vunpack.c.h.b16 %v1777
        %v2661 = vunpack.c.l.b16 %v1778
        %v2662 = vunpack.c.h.b16 %v1778
        %v2663 = vunpack.c.l.b16 %v1779
        %v2664 = vunpack.c.h.b16 %v1779
        %v2665 = vunpack.c.l.b16 %v1780
        %v2666 = vunpack.c.h.b16 %v1780
        %v2667 = vunpack.c.l.b16 %v1781
        %v2668 = vunpack.c.h.b16 %v1781
        %v2669 = vunpack.c.l.b16 %v1782
        %v2670 = vunpack.c.h.b16 %v1782
        %v2671 = vunpack.c.l.b16 %v1783
        %v2672 = vunpack.c.h.b16 %v1783
        %v2673 = vunpack.c.l.b16 %v1784
        %v2674 = vunpack.c.h.b16 %v1784
        %v2675 = vunpack.c.l.b16 %v1785
        %v2676 = vunpack.c.h.b16 %v1785
        %v2677 = vunpack.c.l.b16 %v1786
        %v2678 = vunpack.c.h.b16 %v1786
        %v2679 = vunpack.c.l.b16 %v1787
        %v2680 = vunpack.c.h.b16 %v1787
        %v2681 = vunpack.c.l.b16 %v1788
        %v2682 = vunpack.c.h.b16 %v1788
        %v2683 = vpack.c.b16 %v2575, %v2571
        %v2684 = vpack.c.b16 %v2576, %v2572
        %v2685 = vpack.c.b16 %v2577, %v2573
        %v2686 = vpack.c.b16 %v2578, %v2574
        %v2687 = vpack.c.b16 %v2583, %v2579
        %v2688 = vpack.c.b16 %v2584, %v2580
        %v2689 = vpack.c.b16 %v2585, %v2581
        %v2690 = vpack.c.b16 %v2586, %v2582
        %v2691 = vpack.c.b16 %v2591, %v2587
        %v2692 = vpack.c.b16 %v2592, %v2588
        %v2693 = vpack.c.b16 %v2593, %v2589
        %v2694 = vpack.c.b16 %v2594, %v2590
        %v2695 = vpack.c.b16 %v2599, %v2595
        %v2696 = vpack.c.b16 %v2600, %v2596
        %v2697 = vpack.c.b16 %v2601, %v2597
        %v2698 = vpack.c.b16 %v2602, %v2598
        %v2699 = vpack.c.b16 %v2607, %v2603
        %v2700 = vpack.c.b16 %v2608, %v2604
        %v2701 = vpack.c.b16 %v2609, %v2605
        %v2702 = vpack.c.b16 %v2610, %v2606
        %v2703 = vpack.c.b16 %v2615, %v2611
        %v2704 = vpack.c.b16 %v2616, %v2612
        %v2705 = vpack.c.b16 %v2617, %v2613
        %v2706 = vpack.c.b16 %v2618, %v2614
        %v2707 = vpack.c.b16 %v2623, %v2619
        %v2708 = vpack.c.b16 %v2624, %v2620
        %v2709 = vpack.c.b16 %v2625, %v2621
        %v2710 = vpack.c.b16 %v2626, %v2622
        %v2711 = vpack.c.b16 %v2631, %v2627
        %v2712 = vpack.c.b16 %v2632, %v2628
        %v2713 = vpack.c.b16 %v2633, %v2629
        %v2714 = vpack.c.b16 %v2634, %v2630
        %v2715 = vpack.c.b16 %v2639, %v2635
        %v2716 = vpack.c.b16 %v2640, %v2636
        %v2717 = vpack.c.b16 %v2641, %v2637
        %v2718 = vpack.c.b16 %v2642, %v2638
        %v2719 = vpack.c.b16 %v2647, %v2643
        %v2720 = vpack.c.b16 %v2648, %v2644
        %v2721 = vpack.c.b16 %v2649, %v2645
        %v2722 = vpack.c.b16 %v2650, %v2646
        %v2723 = vpack.c.b16 %v2655, %v2651
        %v2724 = vpack.c.b16 %v2656, %v2652
        %v2725 = vpack.c.b16 %v2657, %v2653
        %v2726 = vpack.c.b16 %v2658, %v2654
        %v2727 = vpack.c.b16 %v2663, %v2659
        %v2728 = vpack.c.b16 %v2664, %v2660
        %v2729 = vpack.c.b16 %v2665, %v2661
        %v2730 = vpack.c.b16 %v2666, %v2662
        %v2731 = vpack.c.b16 %v2671, %v2667
        %v2732 = vpack.c.b16 %v2672, %v2668
        %v2733 = vpack.c.b16 %v2673, %v2669
        %v2734 = vpack.c.b16 %v2674, %v2670
        %v2735 = vpack.c.b16 %v2679, %v2675
        %v2736 = vpack.c.b16 %v2680, %v2676
        %v2737 = vpack.c.b16 %v2681, %v2677
        %v2738 = vpack.c.b16 %v2682, %v2678
        %v2796 = vsel %vm1655, %v1720, 0
        %v2799 = vsel %vm1655, %v1722, 0
        %v2802 = vsel %vm1655, %v1724, 0
        %v2805 = vsel %vm1655, %v1726, 0
        %v2808 = vsel %vm1655, %v1728, 0
        %v2811 = vsel %vm1655, %v1730, 0
        %v2814 = vsel %vm1655, %v1732, 0
        %2816 = vmatpush.bf16.msra.mxu0 %v2711
        %2817 = vmatpush.bf16.msra.mxu0 %v2707
        %2818 = vmatpush.bf16.msra.mxu0 %v2703
        %2819 = vmatpush.bf16.msra.mxu0 %v2699
        %2820 = vmatpush.bf16.msra.mxu0 %v2695
        %2821 = vmatpush.bf16.msra.mxu0 %v2691
        %2822 = vmatpush.bf16.msra.mxu0 %v2687
        %2823 = vmatpush.bf16.msra.mxu0 %v2683
        %2824 = vmatmul.bf16.gmra.mxu0 %v1719
        %v2825 = vpop.f32.mrf.mxu0
        %v2826 = vadd.f32 %v2217, %v2825
        %v2827 = vpop.f32.mrf.mxu0
        %v2828 = vadd.f32 %v2219, %v2827
        %2829 = vmatmul.bf16.gmra.mxu0 %v1721
        %v2830 = vpop.f32.mrf.mxu0
        %v2831 = vadd.f32 %v2222, %v2830
        %v2832 = vpop.f32.mrf.mxu0
        %v2833 = vadd.f32 %v2224, %v2832
        %2834 = vmatmul.bf16.gmra.mxu0 %v1723
        %v2835 = vpop.f32.mrf.mxu0
        %v2836 = vadd.f32 %v2227, %v2835
        %v2837 = vpop.f32.mrf.mxu0
        %v2838 = vadd.f32 %v2229, %v2837
        %2839 = vmatmul.bf16.gmra.mxu0 %v1725
        %v2840 = vpop.f32.mrf.mxu0
        %v2841 = vadd.f32 %v2232, %v2840
        %v2842 = vpop.f32.mrf.mxu0
        %v2843 = vadd.f32 %v2234, %v2842
        %2844 = vmatmul.bf16.gmra.mxu0 %v1727
        %v2845 = vpop.f32.mrf.mxu0
        %v2846 = vadd.f32 %v2237, %v2845
        %v2847 = vpop.f32.mrf.mxu0
        %v2848 = vadd.f32 %v2239, %v2847
        %2849 = vmatmul.bf16.gmra.mxu0 %v1729
        %v2850 = vpop.f32.mrf.mxu0
        %v2851 = vadd.f32 %v2242, %v2850
        %v2852 = vpop.f32.mrf.mxu0
        %v2853 = vadd.f32 %v2244, %v2852
        %2854 = vmatmul.bf16.gmra.mxu0 %v1731
        %v2855 = vpop.f32.mrf.mxu0
        %v2856 = vadd.f32 %v2247, %v2855
        %v2857 = vpop.f32.mrf.mxu0
        %v2858 = vadd.f32 %v2249, %v2857
        %2859 = vdwg.mxu0
        %2860 = vmatpush.bf16.msra.mxu0 0
        %2861 = vmatpush.bf16.msra.mxu0 0
        %2862 = vmatpush.bf16.msra.mxu0 %v2735
        %2863 = vmatpush.bf16.msra.mxu0 %v2731
        %2864 = vmatpush.bf16.msra.mxu0 %v2727
        %2865 = vmatpush.bf16.msra.mxu0 %v2723
        %2866 = vmatpush.bf16.msra.mxu0 %v2719
        %2867 = vmatpush.bf16.msra.mxu0 %v2715
        %2868 = vmatmul.bf16.gmra.mxu0 %v2796
        %v2869 = vpop.f32.mrf.mxu0
        %v2870 = vadd.f32 %v2826, %v2869
        %v2871 = vpop.f32.mrf.mxu0
        %v2872 = vadd.f32 %v2828, %v2871
        %2873 = vmatmul.bf16.gmra.mxu0 %v2799
        %v2874 = vpop.f32.mrf.mxu0
        %v2875 = vadd.f32 %v2831, %v2874
        %v2876 = vpop.f32.mrf.mxu0
        %v2877 = vadd.f32 %v2833, %v2876
        %2878 = vmatmul.bf16.gmra.mxu0 %v2802
        %v2879 = vpop.f32.mrf.mxu0
        %v2880 = vadd.f32 %v2836, %v2879
        %v2881 = vpop.f32.mrf.mxu0
        %v2882 = vadd.f32 %v2838, %v2881
        %2883 = vmatmul.bf16.gmra.mxu0 %v2805
        %v2884 = vpop.f32.mrf.mxu0
        %v2885 = vadd.f32 %v2841, %v2884
        %v2886 = vpop.f32.mrf.mxu0
        %v2887 = vadd.f32 %v2843, %v2886
        %2888 = vmatmul.bf16.gmra.mxu0 %v2808
        %v2889 = vpop.f32.mrf.mxu0
        %v2890 = vadd.f32 %v2846, %v2889
        %v2891 = vpop.f32.mrf.mxu0
        %v2892 = vadd.f32 %v2848, %v2891
        %2893 = vmatmul.bf16.gmra.mxu0 %v2811
        %v2894 = vpop.f32.mrf.mxu0
        %v2895 = vadd.f32 %v2851, %v2894
        %v2896 = vpop.f32.mrf.mxu0
        %v2897 = vadd.f32 %v2853, %v2896
        %2898 = vmatmul.bf16.gmra.mxu0 %v2814
        %v2899 = vpop.f32.mrf.mxu0
        %v2900 = vadd.f32 %v2856, %v2899
        %v2901 = vpop.f32.mrf.mxu0
        %v2902 = vadd.f32 %v2858, %v2901
        %2903 = vdwg.mxu0
        %2904 = vmatpush.bf16.msra.mxu0 %v2712
        %2905 = vmatpush.bf16.msra.mxu0 %v2708
        %2906 = vmatpush.bf16.msra.mxu0 %v2704
        %2907 = vmatpush.bf16.msra.mxu0 %v2700
        %2908 = vmatpush.bf16.msra.mxu0 %v2696
        %2909 = vmatpush.bf16.msra.mxu0 %v2692
        %2910 = vmatpush.bf16.msra.mxu0 %v2688
        %2911 = vmatpush.bf16.msra.mxu0 %v2684
        %2912 = vmatmul.bf16.gmra.mxu0 %v1719
        %v2913 = vpop.f32.mrf.mxu0
        %v2914 = vadd.f32 %v2305, %v2913
        %v2915 = vpop.f32.mrf.mxu0
        %v2916 = vadd.f32 %v2307, %v2915
        %2917 = vmatmul.bf16.gmra.mxu0 %v1721
        %v2918 = vpop.f32.mrf.mxu0
        %v2919 = vadd.f32 %v2310, %v2918
        %v2920 = vpop.f32.mrf.mxu0
        %v2921 = vadd.f32 %v2312, %v2920
        %2922 = vmatmul.bf16.gmra.mxu0 %v1723
        %v2923 = vpop.f32.mrf.mxu0
        %v2924 = vadd.f32 %v2315, %v2923
        %v2925 = vpop.f32.mrf.mxu0
        %v2926 = vadd.f32 %v2317, %v2925
        %2927 = vmatmul.bf16.gmra.mxu0 %v1725
        %v2928 = vpop.f32.mrf.mxu0
        %v2929 = vadd.f32 %v2320, %v2928
        %v2930 = vpop.f32.mrf.mxu0
        %v2931 = vadd.f32 %v2322, %v2930
        %2932 = vmatmul.bf16.gmra.mxu0 %v1727
        %v2933 = vpop.f32.mrf.mxu0
        %v2934 = vadd.f32 %v2325, %v2933
        %v2935 = vpop.f32.mrf.mxu0
        %v2936 = vadd.f32 %v2327, %v2935
        %2937 = vmatmul.bf16.gmra.mxu0 %v1729
        %v2938 = vpop.f32.mrf.mxu0
        %v2939 = vadd.f32 %v2330, %v2938
        %v2940 = vpop.f32.mrf.mxu0
        %v2941 = vadd.f32 %v2332, %v2940
        %2942 = vmatmul.bf16.gmra.mxu0 %v1731
        %v2943 = vpop.f32.mrf.mxu0
        %v2944 = vadd.f32 %v2335, %v2943
        %v2945 = vpop.f32.mrf.mxu0
        %v2946 = vadd.f32 %v2337, %v2945
        %2947 = vdwg.mxu0
        %2948 = vmatpush.bf16.msra.mxu0 0
        %2949 = vmatpush.bf16.msra.mxu0 0
        %2950 = vmatpush.bf16.msra.mxu0 %v2736
        %2951 = vmatpush.bf16.msra.mxu0 %v2732
        %2952 = vmatpush.bf16.msra.mxu0 %v2728
        %2953 = vmatpush.bf16.msra.mxu0 %v2724
        %2954 = vmatpush.bf16.msra.mxu0 %v2720
        %2955 = vmatpush.bf16.msra.mxu0 %v2716
        %2956 = vmatmul.bf16.gmra.mxu0 %v2796
        %v2957 = vpop.f32.mrf.mxu0
        %v2958 = vadd.f32 %v2914, %v2957
        %v2959 = vpop.f32.mrf.mxu0
        %v2960 = vadd.f32 %v2916, %v2959
        %2961 = vmatmul.bf16.gmra.mxu0 %v2799
        %v2962 = vpop.f32.mrf.mxu0
        %v2963 = vadd.f32 %v2919, %v2962
        %v2964 = vpop.f32.mrf.mxu0
        %v2965 = vadd.f32 %v2921, %v2964
        %2966 = vmatmul.bf16.gmra.mxu0 %v2802
        %v2967 = vpop.f32.mrf.mxu0
        %v2968 = vadd.f32 %v2924, %v2967
        %v2969 = vpop.f32.mrf.mxu0
        %v2970 = vadd.f32 %v2926, %v2969
        %2971 = vmatmul.bf16.gmra.mxu0 %v2805
        %v2972 = vpop.f32.mrf.mxu0
        %v2973 = vadd.f32 %v2929, %v2972
        %v2974 = vpop.f32.mrf.mxu0
        %v2975 = vadd.f32 %v2931, %v2974
        %2976 = vmatmul.bf16.gmra.mxu0 %v2808
        %v2977 = vpop.f32.mrf.mxu0
        %v2978 = vadd.f32 %v2934, %v2977
        %v2979 = vpop.f32.mrf.mxu0
        %v2980 = vadd.f32 %v2936, %v2979
        %2981 = vmatmul.bf16.gmra.mxu0 %v2811
        %v2982 = vpop.f32.mrf.mxu0
        %v2983 = vadd.f32 %v2939, %v2982
        %v2984 = vpop.f32.mrf.mxu0
        %v2985 = vadd.f32 %v2941, %v2984
        %2986 = vmatmul.bf16.gmra.mxu0 %v2814
        %v2987 = vpop.f32.mrf.mxu0
        %v2988 = vadd.f32 %v2944, %v2987
        %v2989 = vpop.f32.mrf.mxu0
        %v2990 = vadd.f32 %v2946, %v2989
        %2991 = vdwg.mxu0
        %2992 = vmatpush.bf16.msra.mxu0 %v2713
        %2993 = vmatpush.bf16.msra.mxu0 %v2709
        %2994 = vmatpush.bf16.msra.mxu0 %v2705
        %2995 = vmatpush.bf16.msra.mxu0 %v2701
        %2996 = vmatpush.bf16.msra.mxu0 %v2697
        %2997 = vmatpush.bf16.msra.mxu0 %v2693
        %2998 = vmatpush.bf16.msra.mxu0 %v2689
        %2999 = vmatpush.bf16.msra.mxu0 %v2685
        %3000 = vmatmul.bf16.gmra.mxu0 %v1719
        %v3001 = vpop.f32.mrf.mxu0
        %v3002 = vadd.f32 %v2393, %v3001
        %v3003 = vpop.f32.mrf.mxu0
        %v3004 = vadd.f32 %v2395, %v3003
        %3005 = vmatmul.bf16.gmra.mxu0 %v1721
        %v3006 = vpop.f32.mrf.mxu0
        %v3007 = vadd.f32 %v2398, %v3006
        %v3008 = vpop.f32.mrf.mxu0
        %v3009 = vadd.f32 %v2400, %v3008
        %3010 = vmatmul.bf16.gmra.mxu0 %v1723
        %v3011 = vpop.f32.mrf.mxu0
        %v3012 = vadd.f32 %v2403, %v3011
        %v3013 = vpop.f32.mrf.mxu0
        %v3014 = vadd.f32 %v2405, %v3013
        %3015 = vmatmul.bf16.gmra.mxu0 %v1725
        %v3016 = vpop.f32.mrf.mxu0
        %v3017 = vadd.f32 %v2408, %v3016
        %v3018 = vpop.f32.mrf.mxu0
        %v3019 = vadd.f32 %v2410, %v3018
        %3020 = vmatmul.bf16.gmra.mxu0 %v1727
        %v3021 = vpop.f32.mrf.mxu0
        %v3022 = vadd.f32 %v2413, %v3021
        %v3023 = vpop.f32.mrf.mxu0
        %v3024 = vadd.f32 %v2415, %v3023
        %3025 = vmatmul.bf16.gmra.mxu0 %v1729
        %v3026 = vpop.f32.mrf.mxu0
        %v3027 = vadd.f32 %v2418, %v3026
        %v3028 = vpop.f32.mrf.mxu0
        %v3029 = vadd.f32 %v2420, %v3028
        %3030 = vmatmul.bf16.gmra.mxu0 %v1731
        %v3031 = vpop.f32.mrf.mxu0
        %v3032 = vadd.f32 %v2423, %v3031
        %v3033 = vpop.f32.mrf.mxu0
        %v3034 = vadd.f32 %v2425, %v3033
        %3035 = vdwg.mxu0
        %3036 = vmatpush.bf16.msra.mxu0 0
        %3037 = vmatpush.bf16.msra.mxu0 0
        %3038 = vmatpush.bf16.msra.mxu0 %v2737
        %3039 = vmatpush.bf16.msra.mxu0 %v2733
        %3040 = vmatpush.bf16.msra.mxu0 %v2729
        %3041 = vmatpush.bf16.msra.mxu0 %v2725
        %3042 = vmatpush.bf16.msra.mxu0 %v2721
        %3043 = vmatpush.bf16.msra.mxu0 %v2717
        %3044 = vmatmul.bf16.gmra.mxu0 %v2796
        %v3045 = vpop.f32.mrf.mxu0
        %v3046 = vadd.f32 %v3002, %v3045
        %v3047 = vpop.f32.mrf.mxu0
        %v3048 = vadd.f32 %v3004, %v3047
        %3049 = vmatmul.bf16.gmra.mxu0 %v2799
        %v3050 = vpop.f32.mrf.mxu0
        %v3051 = vadd.f32 %v3007, %v3050
        %v3052 = vpop.f32.mrf.mxu0
        %v3053 = vadd.f32 %v3009, %v3052
        %3054 = vmatmul.bf16.gmra.mxu0 %v2802
        %v3055 = vpop.f32.mrf.mxu0
        %v3056 = vadd.f32 %v3012, %v3055
        %v3057 = vpop.f32.mrf.mxu0
        %v3058 = vadd.f32 %v3014, %v3057
        %3059 = vmatmul.bf16.gmra.mxu0 %v2805
        %v3060 = vpop.f32.mrf.mxu0
        %v3061 = vadd.f32 %v3017, %v3060
        %v3062 = vpop.f32.mrf.mxu0
        %v3063 = vadd.f32 %v3019, %v3062
        %3064 = vmatmul.bf16.gmra.mxu0 %v2808
        %v3065 = vpop.f32.mrf.mxu0
        %v3066 = vadd.f32 %v3022, %v3065
        %v3067 = vpop.f32.mrf.mxu0
        %v3068 = vadd.f32 %v3024, %v3067
        %3069 = vmatmul.bf16.gmra.mxu0 %v2811
        %v3070 = vpop.f32.mrf.mxu0
        %v3071 = vadd.f32 %v3027, %v3070
        %v3072 = vpop.f32.mrf.mxu0
        %v3073 = vadd.f32 %v3029, %v3072
        %3074 = vmatmul.bf16.gmra.mxu0 %v2814
        %v3075 = vpop.f32.mrf.mxu0
        %v3076 = vadd.f32 %v3032, %v3075
        %v3077 = vpop.f32.mrf.mxu0
        %v3078 = vadd.f32 %v3034, %v3077
        %3079 = vdwg.mxu0
        %3080 = vmatpush.bf16.msra.mxu0 %v2714
        %3081 = vmatpush.bf16.msra.mxu0 %v2710
        %3082 = vmatpush.bf16.msra.mxu0 %v2706
        %3083 = vmatpush.bf16.msra.mxu0 %v2702
        %3084 = vmatpush.bf16.msra.mxu0 %v2698
        %3085 = vmatpush.bf16.msra.mxu0 %v2694
        %3086 = vmatpush.bf16.msra.mxu0 %v2690
        %3087 = vmatpush.bf16.msra.mxu0 %v2686
        %3088 = vmatmul.bf16.gmra.mxu0 %v1719
        %v3089 = vpop.f32.mrf.mxu0
        %v3090 = vadd.f32 %v2481, %v3089
        %v3091 = vpop.f32.mrf.mxu0
        %v3092 = vadd.f32 %v2483, %v3091
        %3093 = vmatmul.bf16.gmra.mxu0 %v1721
        %v3094 = vpop.f32.mrf.mxu0
        %v3095 = vadd.f32 %v2486, %v3094
        %v3096 = vpop.f32.mrf.mxu0
        %v3097 = vadd.f32 %v2488, %v3096
        %3098 = vmatmul.bf16.gmra.mxu0 %v1723
        %v3099 = vpop.f32.mrf.mxu0
        %v3100 = vadd.f32 %v2491, %v3099
        %v3101 = vpop.f32.mrf.mxu0
        %v3102 = vadd.f32 %v2493, %v3101
        %3103 = vmatmul.bf16.gmra.mxu0 %v1725
        %v3104 = vpop.f32.mrf.mxu0
        %v3105 = vadd.f32 %v2496, %v3104
        %v3106 = vpop.f32.mrf.mxu0
        %v3107 = vadd.f32 %v2498, %v3106
        %3108 = vmatmul.bf16.gmra.mxu0 %v1727
        %v3109 = vpop.f32.mrf.mxu0
        %v3110 = vadd.f32 %v2501, %v3109
        %v3111 = vpop.f32.mrf.mxu0
        %v3112 = vadd.f32 %v2503, %v3111
        %3113 = vmatmul.bf16.gmra.mxu0 %v1729
        %v3114 = vpop.f32.mrf.mxu0
        %v3115 = vadd.f32 %v2506, %v3114
        %v3116 = vpop.f32.mrf.mxu0
        %v3117 = vadd.f32 %v2508, %v3116
        %3118 = vmatmul.bf16.gmra.mxu0 %v1731
        %v3119 = vpop.f32.mrf.mxu0
        %v3120 = vadd.f32 %v2511, %v3119
        %v3121 = vpop.f32.mrf.mxu0
        %v3122 = vadd.f32 %v2513, %v3121
        %3123 = vdwg.mxu0
        %3124 = vmatpush.bf16.msra.mxu0 0
        %3125 = vmatpush.bf16.msra.mxu0 0
        %3126 = vmatpush.bf16.msra.mxu0 %v2738
        %3127 = vmatpush.bf16.msra.mxu0 %v2734
        %3128 = vmatpush.bf16.msra.mxu0 %v2730
        %3129 = vmatpush.bf16.msra.mxu0 %v2726
        %3130 = vmatpush.bf16.msra.mxu0 %v2722
        %3131 = vmatpush.bf16.msra.mxu0 %v2718
        %3132 = vmatmul.bf16.gmra.mxu0 %v2796
        %v3133 = vpop.f32.mrf.mxu0
        %v3134 = vadd.f32 %v3090, %v3133
        %v3135 = vpop.f32.mrf.mxu0
        %v3136 = vadd.f32 %v3092, %v3135
        %3137 = vmatmul.bf16.gmra.mxu0 %v2799
        %v3138 = vpop.f32.mrf.mxu0
        %v3139 = vadd.f32 %v3095, %v3138
        %v3140 = vpop.f32.mrf.mxu0
        %v3141 = vadd.f32 %v3097, %v3140
        %3142 = vmatmul.bf16.gmra.mxu0 %v2802
        %v3143 = vpop.f32.mrf.mxu0
        %v3144 = vadd.f32 %v3100, %v3143
        %v3145 = vpop.f32.mrf.mxu0
        %v3146 = vadd.f32 %v3102, %v3145
        %3147 = vmatmul.bf16.gmra.mxu0 %v2805
        %v3148 = vpop.f32.mrf.mxu0
        %v3149 = vadd.f32 %v3105, %v3148
        %v3150 = vpop.f32.mrf.mxu0
        %v3151 = vadd.f32 %v3107, %v3150
        %3152 = vmatmul.bf16.gmra.mxu0 %v2808
        %v3153 = vpop.f32.mrf.mxu0
        %v3154 = vadd.f32 %v3110, %v3153
        %v3155 = vpop.f32.mrf.mxu0
        %v3156 = vadd.f32 %v3112, %v3155
        %3157 = vmatmul.bf16.gmra.mxu0 %v2811
        %v3158 = vpop.f32.mrf.mxu0
        %v3159 = vadd.f32 %v3115, %v3158
        %v3160 = vpop.f32.mrf.mxu0
        %v3161 = vadd.f32 %v3117, %v3160
        %3162 = vmatmul.bf16.gmra.mxu0 %v2814
        %v3163 = vpop.f32.mrf.mxu0
        %v3164 = vadd.f32 %v3120, %v3163
        %v3165 = vpop.f32.mrf.mxu0
        %v3166 = vadd.f32 %v3122, %v3165
        %3167 = vdwg.mxu0
        %v3168 = vld [vmem:[#allocation2 + $0x20] sm:$0xff]
        %v3169 = vld [vmem:[#allocation2 + $0x28] sm:$0xff]
        %v3170 = vld [vmem:[#allocation2 + $0x30] sm:$0xff]
        %v3171 = vld [vmem:[#allocation2 + $0x38] sm:$0xff]
        %v3172 = vld [vmem:[#allocation2 + $0x40] sm:$0xff]
        %v3173 = vld [vmem:[#allocation2 + $0x48] sm:$0xff]
        %v3174 = vld [vmem:[#allocation2 + $0x50] sm:$0xff]
        %v3175 = vld [vmem:[#allocation2 + $0x58] sm:$0xff]
        %v3176 = vld [vmem:[#allocation2 + $0x60] sm:$0xff]
        %v3177 = vld [vmem:[#allocation2 + $0x68] sm:$0xff]
        %v3178 = vld [vmem:[#allocation2 + $0x70] sm:$0xff]
        %v3179 = vld [vmem:[#allocation2 + $0x78] sm:$0xff]
        %v3180 = vld [vmem:[#allocation2 + $0x80] sm:$0xff]
        %v3181 = vld [vmem:[#allocation2 + $0x88] sm:$0xff]
        %v3182 = vld [vmem:[#allocation2 + $0x90] sm:$0xff]
        %v3183 = vld [vmem:[#allocation2 + $0x98] sm:$0xff]
        %v3184 = vld [vmem:[#allocation2 + $0xa0] sm:$0xff]
        %v3185 = vld [vmem:[#allocation2 + $0xa8] sm:$0xff]
        %v3186 = vld [vmem:[#allocation2 + $0xb0] sm:$0xff]
        %v3187 = vld [vmem:[#allocation2 + $0xb8] sm:$0xff]
        %v3188 = vld [vmem:[#allocation2 + $0xc0] sm:$0xff]
        %v3189 = vld [vmem:[#allocation2 + $0xc8] sm:$0xff]
        %v3190 = vld [vmem:[#allocation2 + $0xd0] sm:$0xff]
        %v3191 = vld [vmem:[#allocation2 + $0xd8] sm:$0xff]
        %v3192 = vld [vmem:[#allocation2 + $0xe0] sm:$0xff]
        %v3193 = vld [vmem:[#allocation2 + $0xe8] sm:$0xff]
        %v3194 = vld [vmem:[#allocation2 + $0xf0] sm:$0xff]
        %v3195 = vld [vmem:[#allocation2 + $0xf8] sm:$0xff]
        %v3196 = vpack.c.bf16 %v3170, %v3168
        %v3197 = vpack.c.bf16 %v3171, %v3169
        %v3198 = vpack.c.bf16 %v3174, %v3172
        %v3199 = vpack.c.bf16 %v3175, %v3173
        %v3200 = vpack.c.bf16 %v3178, %v3176
        %v3201 = vpack.c.bf16 %v3179, %v3177
        %v3202 = vpack.c.bf16 %v3182, %v3180
        %v3203 = vpack.c.bf16 %v3183, %v3181
        %v3204 = vpack.c.bf16 %v3186, %v3184
        %v3205 = vpack.c.bf16 %v3187, %v3185
        %v3206 = vpack.c.bf16 %v3190, %v3188
        %v3207 = vpack.c.bf16 %v3191, %v3189
        %v3208 = vpack.c.bf16 %v3194, %v3192
        %v3209 = vpack.c.bf16 %v3195, %v3193
        %s3210 = scalar_lea.vmem %s3, 896
        %v3211 = vld [vmem:[%s3210] sm:$0xff]
        %v3212 = vld [vmem:[%s3210 + $0x8] sm:$0xff]
        %v3213 = vld [vmem:[%s3210 + $0x10] sm:$0xff]
        %v3214 = vld [vmem:[%s3210 + $0x18] sm:$0xff]
        %v3215 = vld [vmem:[%s3210 + $0x20] sm:$0xff]
        %v3216 = vld [vmem:[%s3210 + $0x28] sm:$0xff]
        %v3217 = vld [vmem:[%s3210 + $0x30] sm:$0xff]
        %v3218 = vld [vmem:[%s3210 + $0x38] sm:$0xff]
        %v3219 = vld [vmem:[%s3210 + $0x40] sm:$0xff]
        %v3220 = vld [vmem:[%s3210 + $0x48] sm:$0xff]
        %v3221 = vld [vmem:[%s3210 + $0x50] sm:$0xff]
        %v3222 = vld [vmem:[%s3210 + $0x58] sm:$0xff]
        %v3223 = vld [vmem:[%s3210 + $0x60] sm:$0xff]
        %v3224 = vld [vmem:[%s3210 + $0x68] sm:$0xff]
        %v3225 = vld [vmem:[%s3210 + $0x70] sm:$0xff]
        %v3226 = vld [vmem:[%s3210 + $0x78] sm:$0xff]
        %v3227 = vld [vmem:[%s3210 + $0x80] sm:$0xff]
        %v3228 = vld [vmem:[%s3210 + $0x88] sm:$0xff]
        %v3229 = vld [vmem:[%s3210 + $0x90] sm:$0xff]
        %v3230 = vld [vmem:[%s3210 + $0x98] sm:$0xff]
        %v3231 = vld [vmem:[%s3210 + $0xa0] sm:$0xff]
        %v3232 = vld [vmem:[%s3210 + $0xa8] sm:$0xff]
        %v3233 = vld [vmem:[%s3210 + $0xb0] sm:$0xff]
        %v3234 = vld [vmem:[%s3210 + $0xb8] sm:$0xff]
        %v3235 = vld [vmem:[%s3210 + $0xc0] sm:$0xff]
        %v3236 = vld [vmem:[%s3210 + $0xc8] sm:$0xff]
        %v3237 = vld [vmem:[%s3210 + $0xd0] sm:$0xff]
        %v3238 = vld [vmem:[%s3210 + $0xd8] sm:$0xff]
        %v3239 = vld [vmem:[%s3210 + $0xe0] sm:$0xff]
        %v3240 = vld [vmem:[%s3210 + $0xe8] sm:$0xff]
        %v3241 = vld [vmem:[%s3210 + $0xf0] sm:$0xff]
        %v3242 = vld [vmem:[%s3210 + $0xf8] sm:$0xff]
        %v3243 = vld [vmem:[%s3210 + $0x100] sm:$0xff]
        %v3244 = vld [vmem:[%s3210 + $0x108] sm:$0xff]
        %v3245 = vld [vmem:[%s3210 + $0x110] sm:$0xff]
        %v3246 = vld [vmem:[%s3210 + $0x118] sm:$0xff]
        %v3247 = vld [vmem:[%s3210 + $0x120] sm:$0xff]
        %v3248 = vld [vmem:[%s3210 + $0x128] sm:$0xff]
        %v3249 = vld [vmem:[%s3210 + $0x130] sm:$0xff]
        %v3250 = vld [vmem:[%s3210 + $0x138] sm:$0xff]
        %v3251 = vld [vmem:[%s3210 + $0x140] sm:$0xff]
        %v3252 = vld [vmem:[%s3210 + $0x148] sm:$0xff]
        %v3253 = vld [vmem:[%s3210 + $0x150] sm:$0xff]
        %v3254 = vld [vmem:[%s3210 + $0x158] sm:$0xff]
        %v3255 = vld [vmem:[%s3210 + $0x160] sm:$0xff]
        %v3256 = vld [vmem:[%s3210 + $0x168] sm:$0xff]
        %v3257 = vld [vmem:[%s3210 + $0x170] sm:$0xff]
        %v3258 = vld [vmem:[%s3210 + $0x178] sm:$0xff]
        %v3259 = vld [vmem:[%s3210 + $0x180] sm:$0xff]
        %v3260 = vld [vmem:[%s3210 + $0x188] sm:$0xff]
        %v3261 = vld [vmem:[%s3210 + $0x190] sm:$0xff]
        %v3262 = vld [vmem:[%s3210 + $0x198] sm:$0xff]
        %v3263 = vld [vmem:[%s3210 + $0x1a0] sm:$0xff]
        %v3264 = vld [vmem:[%s3210 + $0x1a8] sm:$0xff]
        %v3265 = vld [vmem:[%s3210 + $0x1b0] sm:$0xff]
        %v3266 = vld [vmem:[%s3210 + $0x1b8] sm:$0xff]
        %v3323 = vunpack.c.l.b16 %v3211
        %v3324 = vunpack.c.h.b16 %v3211
        %v3325 = vunpack.c.l.b16 %v3212
        %v3326 = vunpack.c.h.b16 %v3212
        %v3327 = vunpack.c.l.b16 %v3213
        %v3328 = vunpack.c.h.b16 %v3213
        %v3329 = vunpack.c.l.b16 %v3214
        %v3330 = vunpack.c.h.b16 %v3214
        %v3331 = vunpack.c.l.b16 %v3215
        %v3332 = vunpack.c.h.b16 %v3215
        %v3333 = vunpack.c.l.b16 %v3216
        %v3334 = vunpack.c.h.b16 %v3216
        %v3335 = vunpack.c.l.b16 %v3217
        %v3336 = vunpack.c.h.b16 %v3217
        %v3337 = vunpack.c.l.b16 %v3218
        %v3338 = vunpack.c.h.b16 %v3218
        %v3339 = vunpack.c.l.b16 %v3219
        %v3340 = vunpack.c.h.b16 %v3219
        %v3341 = vunpack.c.l.b16 %v3220
        %v3342 = vunpack.c.h.b16 %v3220
        %v3343 = vunpack.c.l.b16 %v3221
        %v3344 = vunpack.c.h.b16 %v3221
        %v3345 = vunpack.c.l.b16 %v3222
        %v3346 = vunpack.c.h.b16 %v3222
        %v3347 = vunpack.c.l.b16 %v3223
        %v3348 = vunpack.c.h.b16 %v3223
        %v3349 = vunpack.c.l.b16 %v3224
        %v3350 = vunpack.c.h.b16 %v3224
        %v3351 = vunpack.c.l.b16 %v3225
        %v3352 = vunpack.c.h.b16 %v3225
        %v3353 = vunpack.c.l.b16 %v3226
        %v3354 = vunpack.c.h.b16 %v3226
        %v3355 = vunpack.c.l.b16 %v3227
        %v3356 = vunpack.c.h.b16 %v3227
        %v3357 = vunpack.c.l.b16 %v3228
        %v3358 = vunpack.c.h.b16 %v3228
        %v3359 = vunpack.c.l.b16 %v3229
        %v3360 = vunpack.c.h.b16 %v3229
        %v3361 = vunpack.c.l.b16 %v3230
        %v3362 = vunpack.c.h.b16 %v3230
        %v3363 = vunpack.c.l.b16 %v3231
        %v3364 = vunpack.c.h.b16 %v3231
        %v3365 = vunpack.c.l.b16 %v3232
        %v3366 = vunpack.c.h.b16 %v3232
        %v3367 = vunpack.c.l.b16 %v3233
        %v3368 = vunpack.c.h.b16 %v3233
        %v3369 = vunpack.c.l.b16 %v3234
        %v3370 = vunpack.c.h.b16 %v3234
        %v3371 = vunpack.c.l.b16 %v3235
        %v3372 = vunpack.c.h.b16 %v3235
        %v3373 = vunpack.c.l.b16 %v3236
        %v3374 = vunpack.c.h.b16 %v3236
        %v3375 = vunpack.c.l.b16 %v3237
        %v3376 = vunpack.c.h.b16 %v3237
        %v3377 = vunpack.c.l.b16 %v3238
        %v3378 = vunpack.c.h.b16 %v3238
        %v3379 = vunpack.c.l.b16 %v3239
        %v3380 = vunpack.c.h.b16 %v3239
        %v3381 = vunpack.c.l.b16 %v3240
        %v3382 = vunpack.c.h.b16 %v3240
        %v3383 = vunpack.c.l.b16 %v3241
        %v3384 = vunpack.c.h.b16 %v3241
        %v3385 = vunpack.c.l.b16 %v3242
        %v3386 = vunpack.c.h.b16 %v3242
        %v3387 = vunpack.c.l.b16 %v3243
        %v3388 = vunpack.c.h.b16 %v3243
        %v3389 = vunpack.c.l.b16 %v3244
        %v3390 = vunpack.c.h.b16 %v3244
        %v3391 = vunpack.c.l.b16 %v3245
        %v3392 = vunpack.c.h.b16 %v3245
        %v3393 = vunpack.c.l.b16 %v3246
        %v3394 = vunpack.c.h.b16 %v3246
        %v3395 = vunpack.c.l.b16 %v3247
        %v3396 = vunpack.c.h.b16 %v3247
        %v3397 = vunpack.c.l.b16 %v3248
        %v3398 = vunpack.c.h.b16 %v3248
        %v3399 = vunpack.c.l.b16 %v3249
        %v3400 = vunpack.c.h.b16 %v3249
        %v3401 = vunpack.c.l.b16 %v3250
        %v3402 = vunpack.c.h.b16 %v3250
        %v3403 = vunpack.c.l.b16 %v3251
        %v3404 = vunpack.c.h.b16 %v3251
        %v3405 = vunpack.c.l.b16 %v3252
        %v3406 = vunpack.c.h.b16 %v3252
        %v3407 = vunpack.c.l.b16 %v3253
        %v3408 = vunpack.c.h.b16 %v3253
        %v3409 = vunpack.c.l.b16 %v3254
        %v3410 = vunpack.c.h.b16 %v3254
        %v3411 = vunpack.c.l.b16 %v3255
        %v3412 = vunpack.c.h.b16 %v3255
        %v3413 = vunpack.c.l.b16 %v3256
        %v3414 = vunpack.c.h.b16 %v3256
        %v3415 = vunpack.c.l.b16 %v3257
        %v3416 = vunpack.c.h.b16 %v3257
        %v3417 = vunpack.c.l.b16 %v3258
        %v3418 = vunpack.c.h.b16 %v3258
        %v3419 = vunpack.c.l.b16 %v3259
        %v3420 = vunpack.c.h.b16 %v3259
        %v3421 = vunpack.c.l.b16 %v3260
        %v3422 = vunpack.c.h.b16 %v3260
        %v3423 = vunpack.c.l.b16 %v3261
        %v3424 = vunpack.c.h.b16 %v3261
        %v3425 = vunpack.c.l.b16 %v3262
        %v3426 = vunpack.c.h.b16 %v3262
        %v3427 = vunpack.c.l.b16 %v3263
        %v3428 = vunpack.c.h.b16 %v3263
        %v3429 = vunpack.c.l.b16 %v3264
        %v3430 = vunpack.c.h.b16 %v3264
        %v3431 = vunpack.c.l.b16 %v3265
        %v3432 = vunpack.c.h.b16 %v3265
        %v3433 = vunpack.c.l.b16 %v3266
        %v3434 = vunpack.c.h.b16 %v3266
        %v3435 = vpack.c.b16 %v3327, %v3323
        %v3436 = vpack.c.b16 %v3328, %v3324
        %v3437 = vpack.c.b16 %v3329, %v3325
        %v3438 = vpack.c.b16 %v3330, %v3326
        %v3439 = vpack.c.b16 %v3335, %v3331
        %v3440 = vpack.c.b16 %v3336, %v3332
        %v3441 = vpack.c.b16 %v3337, %v3333
        %v3442 = vpack.c.b16 %v3338, %v3334
        %v3443 = vpack.c.b16 %v3343, %v3339
        %v3444 = vpack.c.b16 %v3344, %v3340
        %v3445 = vpack.c.b16 %v3345, %v3341
        %v3446 = vpack.c.b16 %v3346, %v3342
        %v3447 = vpack.c.b16 %v3351, %v3347
        %v3448 = vpack.c.b16 %v3352, %v3348
        %v3449 = vpack.c.b16 %v3353, %v3349
        %v3450 = vpack.c.b16 %v3354, %v3350
        %v3451 = vpack.c.b16 %v3359, %v3355
        %v3452 = vpack.c.b16 %v3360, %v3356
        %v3453 = vpack.c.b16 %v3361, %v3357
        %v3454 = vpack.c.b16 %v3362, %v3358
        %v3455 = vpack.c.b16 %v3367, %v3363
        %v3456 = vpack.c.b16 %v3368, %v3364
        %v3457 = vpack.c.b16 %v3369, %v3365
        %v3458 = vpack.c.b16 %v3370, %v3366
        %v3459 = vpack.c.b16 %v3375, %v3371
        %v3460 = vpack.c.b16 %v3376, %v3372
        %v3461 = vpack.c.b16 %v3377, %v3373
        %v3462 = vpack.c.b16 %v3378, %v3374
        %v3463 = vpack.c.b16 %v3383, %v3379
        %v3464 = vpack.c.b16 %v3384, %v3380
        %v3465 = vpack.c.b16 %v3385, %v3381
        %v3466 = vpack.c.b16 %v3386, %v3382
        %v3467 = vpack.c.b16 %v3391, %v3387
        %v3468 = vpack.c.b16 %v3392, %v3388
        %v3469 = vpack.c.b16 %v3393, %v3389
        %v3470 = vpack.c.b16 %v3394, %v3390
        %v3471 = vpack.c.b16 %v3399, %v3395
        %v3472 = vpack.c.b16 %v3400, %v3396
        %v3473 = vpack.c.b16 %v3401, %v3397
        %v3474 = vpack.c.b16 %v3402, %v3398
        %v3475 = vpack.c.b16 %v3407, %v3403
        %v3476 = vpack.c.b16 %v3408, %v3404
        %v3477 = vpack.c.b16 %v3409, %v3405
        %v3478 = vpack.c.b16 %v3410, %v3406
        %v3479 = vpack.c.b16 %v3415, %v3411
        %v3480 = vpack.c.b16 %v3416, %v3412
        %v3481 = vpack.c.b16 %v3417, %v3413
        %v3482 = vpack.c.b16 %v3418, %v3414
        %v3483 = vpack.c.b16 %v3423, %v3419
        %v3484 = vpack.c.b16 %v3424, %v3420
        %v3485 = vpack.c.b16 %v3425, %v3421
        %v3486 = vpack.c.b16 %v3426, %v3422
        %v3487 = vpack.c.b16 %v3431, %v3427
        %v3488 = vpack.c.b16 %v3432, %v3428
        %v3489 = vpack.c.b16 %v3433, %v3429
        %v3490 = vpack.c.b16 %v3434, %v3430
        %v3548 = vsel %vm1655, %v3197, 0
        %v3551 = vsel %vm1655, %v3199, 0
        %v3554 = vsel %vm1655, %v3201, 0
        %v3557 = vsel %vm1655, %v3203, 0
        %v3560 = vsel %vm1655, %v3205, 0
        %v3563 = vsel %vm1655, %v3207, 0
        %v3566 = vsel %vm1655, %v3209, 0
        %3568 = vmatpush.bf16.msra.mxu0 %v3463
        %3569 = vmatpush.bf16.msra.mxu0 %v3459
        %3570 = vmatpush.bf16.msra.mxu0 %v3455
        %3571 = vmatpush.bf16.msra.mxu0 %v3451
        %3572 = vmatpush.bf16.msra.mxu0 %v3447
        %3573 = vmatpush.bf16.msra.mxu0 %v3443
        %3574 = vmatpush.bf16.msra.mxu0 %v3439
        %3575 = vmatpush.bf16.msra.mxu0 %v3435
        %3576 = vmatmul.bf16.gmra.mxu0 %v3196
        %v3577 = vpop.f32.mrf.mxu0
        %v3578 = vadd.f32 0.0, %v3577
        %v3579 = vpop.f32.mrf.mxu0
        %v3580 = vadd.f32 0.0, %v3579
        %3581 = vmatmul.bf16.gmra.mxu0 %v3198
        %v3582 = vpop.f32.mrf.mxu0
        %v3583 = vadd.f32 0.0, %v3582
        %v3584 = vpop.f32.mrf.mxu0
        %v3585 = vadd.f32 0.0, %v3584
        %3586 = vmatmul.bf16.gmra.mxu0 %v3200
        %v3587 = vpop.f32.mrf.mxu0
        %v3588 = vadd.f32 0.0, %v3587
        %v3589 = vpop.f32.mrf.mxu0
        %v3590 = vadd.f32 0.0, %v3589
        %3591 = vmatmul.bf16.gmra.mxu0 %v3202
        %v3592 = vpop.f32.mrf.mxu0
        %v3593 = vadd.f32 0.0, %v3592
        %v3594 = vpop.f32.mrf.mxu0
        %v3595 = vadd.f32 0.0, %v3594
        %3596 = vmatmul.bf16.gmra.mxu0 %v3204
        %v3597 = vpop.f32.mrf.mxu0
        %v3598 = vadd.f32 0.0, %v3597
        %v3599 = vpop.f32.mrf.mxu0
        %v3600 = vadd.f32 0.0, %v3599
        %3601 = vmatmul.bf16.gmra.mxu0 %v3206
        %v3602 = vpop.f32.mrf.mxu0
        %v3603 = vadd.f32 0.0, %v3602
        %v3604 = vpop.f32.mrf.mxu0
        %v3605 = vadd.f32 0.0, %v3604
        %3606 = vmatmul.bf16.gmra.mxu0 %v3208
        %v3607 = vpop.f32.mrf.mxu0
        %v3608 = vadd.f32 0.0, %v3607
        %v3609 = vpop.f32.mrf.mxu0
        %v3610 = vadd.f32 0.0, %v3609
        %3611 = vdwg.mxu0
        %3612 = vmatpush.bf16.msra.mxu0 0
        %3613 = vmatpush.bf16.msra.mxu0 0
        %3614 = vmatpush.bf16.msra.mxu0 %v3487
        %3615 = vmatpush.bf16.msra.mxu0 %v3483
        %3616 = vmatpush.bf16.msra.mxu0 %v3479
        %3617 = vmatpush.bf16.msra.mxu0 %v3475
        %3618 = vmatpush.bf16.msra.mxu0 %v3471
        %3619 = vmatpush.bf16.msra.mxu0 %v3467
        %3620 = vmatmul.bf16.gmra.mxu0 %v3548
        %v3621 = vpop.f32.mrf.mxu0
        %v3622 = vadd.f32 %v3578, %v3621
        %v3623 = vpop.f32.mrf.mxu0
        %v3624 = vadd.f32 %v3580, %v3623
        %3625 = vmatmul.bf16.gmra.mxu0 %v3551
        %v3626 = vpop.f32.mrf.mxu0
        %v3627 = vadd.f32 %v3583, %v3626
        %v3628 = vpop.f32.mrf.mxu0
        %v3629 = vadd.f32 %v3585, %v3628
        %3630 = vmatmul.bf16.gmra.mxu0 %v3554
        %v3631 = vpop.f32.mrf.mxu0
        %v3632 = vadd.f32 %v3588, %v3631
        %v3633 = vpop.f32.mrf.mxu0
        %v3634 = vadd.f32 %v3590, %v3633
        %3635 = vmatmul.bf16.gmra.mxu0 %v3557
        %v3636 = vpop.f32.mrf.mxu0
        %v3637 = vadd.f32 %v3593, %v3636
        %v3638 = vpop.f32.mrf.mxu0
        %v3639 = vadd.f32 %v3595, %v3638
        %3640 = vmatmul.bf16.gmra.mxu0 %v3560
        %v3641 = vpop.f32.mrf.mxu0
        %v3642 = vadd.f32 %v3598, %v3641
        %v3643 = vpop.f32.mrf.mxu0
        %v3644 = vadd.f32 %v3600, %v3643
        %3645 = vmatmul.bf16.gmra.mxu0 %v3563
        %v3646 = vpop.f32.mrf.mxu0
        %v3647 = vadd.f32 %v3603, %v3646
        %v3648 = vpop.f32.mrf.mxu0
        %v3649 = vadd.f32 %v3605, %v3648
        %3650 = vmatmul.bf16.gmra.mxu0 %v3566
        %v3651 = vpop.f32.mrf.mxu0
        %v3652 = vadd.f32 %v3608, %v3651
        %v3653 = vpop.f32.mrf.mxu0
        %v3654 = vadd.f32 %v3610, %v3653
        %3655 = vdwg.mxu0
        %3656 = vmatpush.bf16.msra.mxu0 %v3464
        %3657 = vmatpush.bf16.msra.mxu0 %v3460
        %3658 = vmatpush.bf16.msra.mxu0 %v3456
        %3659 = vmatpush.bf16.msra.mxu0 %v3452
        %3660 = vmatpush.bf16.msra.mxu0 %v3448
        %3661 = vmatpush.bf16.msra.mxu0 %v3444
        %3662 = vmatpush.bf16.msra.mxu0 %v3440
        %3663 = vmatpush.bf16.msra.mxu0 %v3436
        %3664 = vmatmul.bf16.gmra.mxu0 %v3196
        %v3665 = vpop.f32.mrf.mxu0
        %v3666 = vadd.f32 0.0, %v3665
        %v3667 = vpop.f32.mrf.mxu0
        %v3668 = vadd.f32 0.0, %v3667
        %3669 = vmatmul.bf16.gmra.mxu0 %v3198
        %v3670 = vpop.f32.mrf.mxu0
        %v3671 = vadd.f32 0.0, %v3670
        %v3672 = vpop.f32.mrf.mxu0
        %v3673 = vadd.f32 0.0, %v3672
        %3674 = vmatmul.bf16.gmra.mxu0 %v3200
        %v3675 = vpop.f32.mrf.mxu0
        %v3676 = vadd.f32 0.0, %v3675
        %v3677 = vpop.f32.mrf.mxu0
        %v3678 = vadd.f32 0.0, %v3677
        %3679 = vmatmul.bf16.gmra.mxu0 %v3202
        %v3680 = vpop.f32.mrf.mxu0
        %v3681 = vadd.f32 0.0, %v3680
        %v3682 = vpop.f32.mrf.mxu0
        %v3683 = vadd.f32 0.0, %v3682
        %3684 = vmatmul.bf16.gmra.mxu0 %v3204
        %v3685 = vpop.f32.mrf.mxu0
        %v3686 = vadd.f32 0.0, %v3685
        %v3687 = vpop.f32.mrf.mxu0
        %v3688 = vadd.f32 0.0, %v3687
        %3689 = vmatmul.bf16.gmra.mxu0 %v3206
        %v3690 = vpop.f32.mrf.mxu0
        %v3691 = vadd.f32 0.0, %v3690
        %v3692 = vpop.f32.mrf.mxu0
        %v3693 = vadd.f32 0.0, %v3692
        %3694 = vmatmul.bf16.gmra.mxu0 %v3208
        %v3695 = vpop.f32.mrf.mxu0
        %v3696 = vadd.f32 0.0, %v3695
        %v3697 = vpop.f32.mrf.mxu0
        %v3698 = vadd.f32 0.0, %v3697
        %3699 = vdwg.mxu0
        %3700 = vmatpush.bf16.msra.mxu0 0
        %3701 = vmatpush.bf16.msra.mxu0 0
        %3702 = vmatpush.bf16.msra.mxu0 %v3488
        %3703 = vmatpush.bf16.msra.mxu0 %v3484
        %3704 = vmatpush.bf16.msra.mxu0 %v3480
        %3705 = vmatpush.bf16.msra.mxu0 %v3476
        %3706 = vmatpush.bf16.msra.mxu0 %v3472
        %3707 = vmatpush.bf16.msra.mxu0 %v3468
        %3708 = vmatmul.bf16.gmra.mxu0 %v3548
        %v3709 = vpop.f32.mrf.mxu0
        %v3710 = vadd.f32 %v3666, %v3709
        %v3711 = vpop.f32.mrf.mxu0
        %v3712 = vadd.f32 %v3668, %v3711
        %3713 = vmatmul.bf16.gmra.mxu0 %v3551
        %v3714 = vpop.f32.mrf.mxu0
        %v3715 = vadd.f32 %v3671, %v3714
        %v3716 = vpop.f32.mrf.mxu0
        %v3717 = vadd.f32 %v3673, %v3716
        %3718 = vmatmul.bf16.gmra.mxu0 %v3554
        %v3719 = vpop.f32.mrf.mxu0
        %v3720 = vadd.f32 %v3676, %v3719
        %v3721 = vpop.f32.mrf.mxu0
        %v3722 = vadd.f32 %v3678, %v3721
        %3723 = vmatmul.bf16.gmra.mxu0 %v3557
        %v3724 = vpop.f32.mrf.mxu0
        %v3725 = vadd.f32 %v3681, %v3724
        %v3726 = vpop.f32.mrf.mxu0
        %v3727 = vadd.f32 %v3683, %v3726
        %3728 = vmatmul.bf16.gmra.mxu0 %v3560
        %v3729 = vpop.f32.mrf.mxu0
        %v3730 = vadd.f32 %v3686, %v3729
        %v3731 = vpop.f32.mrf.mxu0
        %v3732 = vadd.f32 %v3688, %v3731
        %3733 = vmatmul.bf16.gmra.mxu0 %v3563
        %v3734 = vpop.f32.mrf.mxu0
        %v3735 = vadd.f32 %v3691, %v3734
        %v3736 = vpop.f32.mrf.mxu0
        %v3737 = vadd.f32 %v3693, %v3736
        %3738 = vmatmul.bf16.gmra.mxu0 %v3566
        %v3739 = vpop.f32.mrf.mxu0
        %v3740 = vadd.f32 %v3696, %v3739
        %v3741 = vpop.f32.mrf.mxu0
        %v3742 = vadd.f32 %v3698, %v3741
        %3743 = vdwg.mxu0
        %3744 = vmatpush.bf16.msra.mxu0 %v3465
        %3745 = vmatpush.bf16.msra.mxu0 %v3461
        %3746 = vmatpush.bf16.msra.mxu0 %v3457
        %3747 = vmatpush.bf16.msra.mxu0 %v3453
        %3748 = vmatpush.bf16.msra.mxu0 %v3449
        %3749 = vmatpush.bf16.msra.mxu0 %v3445
        %3750 = vmatpush.bf16.msra.mxu0 %v3441
        %3751 = vmatpush.bf16.msra.mxu0 %v3437
        %3752 = vmatmul.bf16.gmra.mxu0 %v3196
        %v3753 = vpop.f32.mrf.mxu0
        %v3754 = vadd.f32 0.0, %v3753
        %v3755 = vpop.f32.mrf.mxu0
        %v3756 = vadd.f32 0.0, %v3755
        %3757 = vmatmul.bf16.gmra.mxu0 %v3198
        %v3758 = vpop.f32.mrf.mxu0
        %v3759 = vadd.f32 0.0, %v3758
        %v3760 = vpop.f32.mrf.mxu0
        %v3761 = vadd.f32 0.0, %v3760
        %3762 = vmatmul.bf16.gmra.mxu0 %v3200
        %v3763 = vpop.f32.mrf.mxu0
        %v3764 = vadd.f32 0.0, %v3763
        %v3765 = vpop.f32.mrf.mxu0
        %v3766 = vadd.f32 0.0, %v3765
        %3767 = vmatmul.bf16.gmra.mxu0 %v3202
        %v3768 = vpop.f32.mrf.mxu0
        %v3769 = vadd.f32 0.0, %v3768
        %v3770 = vpop.f32.mrf.mxu0
        %v3771 = vadd.f32 0.0, %v3770
        %3772 = vmatmul.bf16.gmra.mxu0 %v3204
        %v3773 = vpop.f32.mrf.mxu0
        %v3774 = vadd.f32 0.0, %v3773
        %v3775 = vpop.f32.mrf.mxu0
        %v3776 = vadd.f32 0.0, %v3775
        %3777 = vmatmul.bf16.gmra.mxu0 %v3206
        %v3778 = vpop.f32.mrf.mxu0
        %v3779 = vadd.f32 0.0, %v3778
        %v3780 = vpop.f32.mrf.mxu0
        %v3781 = vadd.f32 0.0, %v3780
        %3782 = vmatmul.bf16.gmra.mxu0 %v3208
        %v3783 = vpop.f32.mrf.mxu0
        %v3784 = vadd.f32 0.0, %v3783
        %v3785 = vpop.f32.mrf.mxu0
        %v3786 = vadd.f32 0.0, %v3785
        %3787 = vdwg.mxu0
        %3788 = vmatpush.bf16.msra.mxu0 0
        %3789 = vmatpush.bf16.msra.mxu0 0
        %3790 = vmatpush.bf16.msra.mxu0 %v3489
        %3791 = vmatpush.bf16.msra.mxu0 %v3485
        %3792 = vmatpush.bf16.msra.mxu0 %v3481
        %3793 = vmatpush.bf16.msra.mxu0 %v3477
        %3794 = vmatpush.bf16.msra.mxu0 %v3473
        %3795 = vmatpush.bf16.msra.mxu0 %v3469
        %3796 = vmatmul.bf16.gmra.mxu0 %v3548
        %v3797 = vpop.f32.mrf.mxu0
        %v3798 = vadd.f32 %v3754, %v3797
        %v3799 = vpop.f32.mrf.mxu0
        %v3800 = vadd.f32 %v3756, %v3799
        %3801 = vmatmul.bf16.gmra.mxu0 %v3551
        %v3802 = vpop.f32.mrf.mxu0
        %v3803 = vadd.f32 %v3759, %v3802
        %v3804 = vpop.f32.mrf.mxu0
        %v3805 = vadd.f32 %v3761, %v3804
        %3806 = vmatmul.bf16.gmra.mxu0 %v3554
        %v3807 = vpop.f32.mrf.mxu0
        %v3808 = vadd.f32 %v3764, %v3807
        %v3809 = vpop.f32.mrf.mxu0
        %v3810 = vadd.f32 %v3766, %v3809
        %3811 = vmatmul.bf16.gmra.mxu0 %v3557
        %v3812 = vpop.f32.mrf.mxu0
        %v3813 = vadd.f32 %v3769, %v3812
        %v3814 = vpop.f32.mrf.mxu0
        %v3815 = vadd.f32 %v3771, %v3814
        %3816 = vmatmul.bf16.gmra.mxu0 %v3560
        %v3817 = vpop.f32.mrf.mxu0
        %v3818 = vadd.f32 %v3774, %v3817
        %v3819 = vpop.f32.mrf.mxu0
        %v3820 = vadd.f32 %v3776, %v3819
        %3821 = vmatmul.bf16.gmra.mxu0 %v3563
        %v3822 = vpop.f32.mrf.mxu0
        %v3823 = vadd.f32 %v3779, %v3822
        %v3824 = vpop.f32.mrf.mxu0
        %v3825 = vadd.f32 %v3781, %v3824
        %3826 = vmatmul.bf16.gmra.mxu0 %v3566
        %v3827 = vpop.f32.mrf.mxu0
        %v3828 = vadd.f32 %v3784, %v3827
        %v3829 = vpop.f32.mrf.mxu0
        %v3830 = vadd.f32 %v3786, %v3829
        %3831 = vdwg.mxu0
        %3832 = vmatpush.bf16.msra.mxu0 %v3466
        %3833 = vmatpush.bf16.msra.mxu0 %v3462
        %3834 = vmatpush.bf16.msra.mxu0 %v3458
        %3835 = vmatpush.bf16.msra.mxu0 %v3454
        %3836 = vmatpush.bf16.msra.mxu0 %v3450
        %3837 = vmatpush.bf16.msra.mxu0 %v3446
        %3838 = vmatpush.bf16.msra.mxu0 %v3442
        %3839 = vmatpush.bf16.msra.mxu0 %v3438
        %3840 = vmatmul.bf16.gmra.mxu0 %v3196
        %v3841 = vpop.f32.mrf.mxu0
        %v3842 = vadd.f32 0.0, %v3841
        %v3843 = vpop.f32.mrf.mxu0
        %v3844 = vadd.f32 0.0, %v3843
        %3845 = vmatmul.bf16.gmra.mxu0 %v3198
        %v3846 = vpop.f32.mrf.mxu0
        %v3847 = vadd.f32 0.0, %v3846
        %v3848 = vpop.f32.mrf.mxu0
        %v3849 = vadd.f32 0.0, %v3848
        %3850 = vmatmul.bf16.gmra.mxu0 %v3200
        %v3851 = vpop.f32.mrf.mxu0
        %v3852 = vadd.f32 0.0, %v3851
        %v3853 = vpop.f32.mrf.mxu0
        %v3854 = vadd.f32 0.0, %v3853
        %3855 = vmatmul.bf16.gmra.mxu0 %v3202
        %v3856 = vpop.f32.mrf.mxu0
        %v3857 = vadd.f32 0.0, %v3856
        %v3858 = vpop.f32.mrf.mxu0
        %v3859 = vadd.f32 0.0, %v3858
        %3860 = vmatmul.bf16.gmra.mxu0 %v3204
        %v3861 = vpop.f32.mrf.mxu0
        %v3862 = vadd.f32 0.0, %v3861
        %v3863 = vpop.f32.mrf.mxu0
        %v3864 = vadd.f32 0.0, %v3863
        %3865 = vmatmul.bf16.gmra.mxu0 %v3206
        %v3866 = vpop.f32.mrf.mxu0
        %v3867 = vadd.f32 0.0, %v3866
        %v3868 = vpop.f32.mrf.mxu0
        %v3869 = vadd.f32 0.0, %v3868
        %3870 = vmatmul.bf16.gmra.mxu0 %v3208
        %v3871 = vpop.f32.mrf.mxu0
        %v3872 = vadd.f32 0.0, %v3871
        %v3873 = vpop.f32.mrf.mxu0
        %v3874 = vadd.f32 0.0, %v3873
        %3875 = vdwg.mxu0
        %3876 = vmatpush.bf16.msra.mxu0 0
        %3877 = vmatpush.bf16.msra.mxu0 0
        %3878 = vmatpush.bf16.msra.mxu0 %v3490
        %3879 = vmatpush.bf16.msra.mxu0 %v3486
        %3880 = vmatpush.bf16.msra.mxu0 %v3482
        %3881 = vmatpush.bf16.msra.mxu0 %v3478
        %3882 = vmatpush.bf16.msra.mxu0 %v3474
        %3883 = vmatpush.bf16.msra.mxu0 %v3470
        %3884 = vmatmul.bf16.gmra.mxu0 %v3548
        %v3885 = vpop.f32.mrf.mxu0
        %v3886 = vadd.f32 %v3842, %v3885
        %v3887 = vpop.f32.mrf.mxu0
        %v3888 = vadd.f32 %v3844, %v3887
        %3889 = vmatmul.bf16.gmra.mxu0 %v3551
        %v3890 = vpop.f32.mrf.mxu0
        %v3891 = vadd.f32 %v3847, %v3890
        %v3892 = vpop.f32.mrf.mxu0
        %v3893 = vadd.f32 %v3849, %v3892
        %3894 = vmatmul.bf16.gmra.mxu0 %v3554
        %v3895 = vpop.f32.mrf.mxu0
        %v3896 = vadd.f32 %v3852, %v3895
        %v3897 = vpop.f32.mrf.mxu0
        %v3898 = vadd.f32 %v3854, %v3897
        %3899 = vmatmul.bf16.gmra.mxu0 %v3557
        %v3900 = vpop.f32.mrf.mxu0
        %v3901 = vadd.f32 %v3857, %v3900
        %v3902 = vpop.f32.mrf.mxu0
        %v3903 = vadd.f32 %v3859, %v3902
        %3904 = vmatmul.bf16.gmra.mxu0 %v3560
        %v3905 = vpop.f32.mrf.mxu0
        %v3906 = vadd.f32 %v3862, %v3905
        %v3907 = vpop.f32.mrf.mxu0
        %v3908 = vadd.f32 %v3864, %v3907
        %3909 = vmatmul.bf16.gmra.mxu0 %v3563
        %v3910 = vpop.f32.mrf.mxu0
        %v3911 = vadd.f32 %v3867, %v3910
        %v3912 = vpop.f32.mrf.mxu0
        %v3913 = vadd.f32 %v3869, %v3912
        %3914 = vmatmul.bf16.gmra.mxu0 %v3566
        %v3915 = vpop.f32.mrf.mxu0
        %v3916 = vadd.f32 %v3872, %v3915
        %v3917 = vpop.f32.mrf.mxu0
        %v3918 = vadd.f32 %v3874, %v3917
        %3919 = vdwg.mxu0
        %v3920 = vadd.f32 %v2870, %v3622
        %v3921 = vadd.f32 %v2958, %v3710
        %v3922 = vadd.f32 %v3046, %v3798
        %v3923 = vadd.f32 %v3134, %v3886
        %v3924 = vadd.f32 %v2872, %v3624
        %v3925 = vadd.f32 %v2960, %v3712
        %v3926 = vadd.f32 %v3048, %v3800
        %v3927 = vadd.f32 %v3136, %v3888
        %v3928 = vadd.f32 %v2875, %v3627
        %v3929 = vadd.f32 %v2963, %v3715
        %v3930 = vadd.f32 %v3051, %v3803
        %v3931 = vadd.f32 %v3139, %v3891
        %v3932 = vadd.f32 %v2877, %v3629
        %v3933 = vadd.f32 %v2965, %v3717
        %v3934 = vadd.f32 %v3053, %v3805
        %v3935 = vadd.f32 %v3141, %v3893
        %v3936 = vadd.f32 %v2880, %v3632
        %v3937 = vadd.f32 %v2968, %v3720
        %v3938 = vadd.f32 %v3056, %v3808
        %v3939 = vadd.f32 %v3144, %v3896
        %v3940 = vadd.f32 %v2882, %v3634
        %v3941 = vadd.f32 %v2970, %v3722
        %v3942 = vadd.f32 %v3058, %v3810
        %v3943 = vadd.f32 %v3146, %v3898
        %v3944 = vadd.f32 %v2885, %v3637
        %v3945 = vadd.f32 %v2973, %v3725
        %v3946 = vadd.f32 %v3061, %v3813
        %v3947 = vadd.f32 %v3149, %v3901
        %v3948 = vadd.f32 %v2887, %v3639
        %v3949 = vadd.f32 %v2975, %v3727
        %v3950 = vadd.f32 %v3063, %v3815
        %v3951 = vadd.f32 %v3151, %v3903
        %v3952 = vadd.f32 %v2890, %v3642
        %v3953 = vadd.f32 %v2978, %v3730
        %v3954 = vadd.f32 %v3066, %v3818
        %v3955 = vadd.f32 %v3154, %v3906
        %v3956 = vadd.f32 %v2892, %v3644
        %v3957 = vadd.f32 %v2980, %v3732
        %v3958 = vadd.f32 %v3068, %v3820
        %v3959 = vadd.f32 %v3156, %v3908
        %v3960 = vadd.f32 %v2895, %v3647
        %v3961 = vadd.f32 %v2983, %v3735
        %v3962 = vadd.f32 %v3071, %v3823
        %v3963 = vadd.f32 %v3159, %v3911
        %v3964 = vadd.f32 %v2897, %v3649
        %v3965 = vadd.f32 %v2985, %v3737
        %v3966 = vadd.f32 %v3073, %v3825
        %v3967 = vadd.f32 %v3161, %v3913
        %v3968 = vadd.f32 %v2900, %v3652
        %v3969 = vadd.f32 %v2988, %v3740
        %v3970 = vadd.f32 %v3076, %v3828
        %v3971 = vadd.f32 %v3164, %v3916
        %v3972 = vadd.f32 %v2902, %v3654
        %v3973 = vadd.f32 %v2990, %v3742
        %v3974 = vadd.f32 %v3078, %v3830
        %v3975 = vadd.f32 %v3166, %v3918
        %v3976 = vld [vmem:[#allocation2 + $0x30] sm:$0xff]
        %v3977 = vld [vmem:[#allocation2 + $0x38] sm:$0xff]
        %v3978 = vld [vmem:[#allocation2 + $0x40] sm:$0xff]
        %v3979 = vld [vmem:[#allocation2 + $0x48] sm:$0xff]
        %v3980 = vld [vmem:[#allocation2 + $0x50] sm:$0xff]
        %v3981 = vld [vmem:[#allocation2 + $0x58] sm:$0xff]
        %v3982 = vld [vmem:[#allocation2 + $0x60] sm:$0xff]
        %v3983 = vld [vmem:[#allocation2 + $0x68] sm:$0xff]
        %v3984 = vld [vmem:[#allocation2 + $0x70] sm:$0xff]
        %v3985 = vld [vmem:[#allocation2 + $0x78] sm:$0xff]
        %v3986 = vld [vmem:[#allocation2 + $0x80] sm:$0xff]
        %v3987 = vld [vmem:[#allocation2 + $0x88] sm:$0xff]
        %v3988 = vld [vmem:[#allocation2 + $0x90] sm:$0xff]
        %v3989 = vld [vmem:[#allocation2 + $0x98] sm:$0xff]
        %v3990 = vld [vmem:[#allocation2 + $0xa0] sm:$0xff]
        %v3991 = vld [vmem:[#allocation2 + $0xa8] sm:$0xff]
        %v3992 = vld [vmem:[#allocation2 + $0xb0] sm:$0xff]
        %v3993 = vld [vmem:[#allocation2 + $0xb8] sm:$0xff]
        %v3994 = vld [vmem:[#allocation2 + $0xc0] sm:$0xff]
        %v3995 = vld [vmem:[#allocation2 + $0xc8] sm:$0xff]
        %v3996 = vld [vmem:[#allocation2 + $0xd0] sm:$0xff]
        %v3997 = vld [vmem:[#allocation2 + $0xd8] sm:$0xff]
        %v3998 = vld [vmem:[#allocation2 + $0xe0] sm:$0xff]
        %v3999 = vld [vmem:[#allocation2 + $0xe8] sm:$0xff]
        %v4000 = vld [vmem:[#allocation2 + $0xf0] sm:$0xff]
        %v4001 = vld [vmem:[#allocation2 + $0xf8] sm:$0xff]
        %v4002 = vld [vmem:[#allocation2 + $0x100] sm:$0xff]
        %v4003 = vld [vmem:[#allocation2 + $0x108] sm:$0xff]
        %v4004 = vpack.c.bf16 %v3978, %v3976
        %v4005 = vpack.c.bf16 %v3979, %v3977
        %v4006 = vpack.c.bf16 %v3982, %v3980
        %v4007 = vpack.c.bf16 %v3983, %v3981
        %v4008 = vpack.c.bf16 %v3986, %v3984
        %v4009 = vpack.c.bf16 %v3987, %v3985
        %v4010 = vpack.c.bf16 %v3990, %v3988
        %v4011 = vpack.c.bf16 %v3991, %v3989
        %v4012 = vpack.c.bf16 %v3994, %v3992
        %v4013 = vpack.c.bf16 %v3995, %v3993
        %v4014 = vpack.c.bf16 %v3998, %v3996
        %v4015 = vpack.c.bf16 %v3999, %v3997
        %v4016 = vpack.c.bf16 %v4002, %v4000
        %v4017 = vpack.c.bf16 %v4003, %v4001
        %s4018 = scalar_lea.vmem %s3, 1344
        %v4019 = vld [vmem:[%s4018] sm:$0xff]
        %v4020 = vld [vmem:[%s4018 + $0x8] sm:$0xff]
        %v4021 = vld [vmem:[%s4018 + $0x10] sm:$0xff]
        %v4022 = vld [vmem:[%s4018 + $0x18] sm:$0xff]
        %v4023 = vld [vmem:[%s4018 + $0x20] sm:$0xff]
        %v4024 = vld [vmem:[%s4018 + $0x28] sm:$0xff]
        %v4025 = vld [vmem:[%s4018 + $0x30] sm:$0xff]
        %v4026 = vld [vmem:[%s4018 + $0x38] sm:$0xff]
        %v4027 = vld [vmem:[%s4018 + $0x40] sm:$0xff]
        %v4028 = vld [vmem:[%s4018 + $0x48] sm:$0xff]
        %v4029 = vld [vmem:[%s4018 + $0x50] sm:$0xff]
        %v4030 = vld [vmem:[%s4018 + $0x58] sm:$0xff]
        %v4031 = vld [vmem:[%s4018 + $0x60] sm:$0xff]
        %v4032 = vld [vmem:[%s4018 + $0x68] sm:$0xff]
        %v4033 = vld [vmem:[%s4018 + $0x70] sm:$0xff]
        %v4034 = vld [vmem:[%s4018 + $0x78] sm:$0xff]
        %v4035 = vld [vmem:[%s4018 + $0x80] sm:$0xff]
        %v4036 = vld [vmem:[%s4018 + $0x88] sm:$0xff]
        %v4037 = vld [vmem:[%s4018 + $0x90] sm:$0xff]
        %v4038 = vld [vmem:[%s4018 + $0x98] sm:$0xff]
        %v4039 = vld [vmem:[%s4018 + $0xa0] sm:$0xff]
        %v4040 = vld [vmem:[%s4018 + $0xa8] sm:$0xff]
        %v4041 = vld [vmem:[%s4018 + $0xb0] sm:$0xff]
        %v4042 = vld [vmem:[%s4018 + $0xb8] sm:$0xff]
        %v4043 = vld [vmem:[%s4018 + $0xc0] sm:$0xff]
        %v4044 = vld [vmem:[%s4018 + $0xc8] sm:$0xff]
        %v4045 = vld [vmem:[%s4018 + $0xd0] sm:$0xff]
        %v4046 = vld [vmem:[%s4018 + $0xd8] sm:$0xff]
        %v4047 = vld [vmem:[%s4018 + $0xe0] sm:$0xff]
        %v4048 = vld [vmem:[%s4018 + $0xe8] sm:$0xff]
        %v4049 = vld [vmem:[%s4018 + $0xf0] sm:$0xff]
        %v4050 = vld [vmem:[%s4018 + $0xf8] sm:$0xff]
        %v4051 = vld [vmem:[%s4018 + $0x100] sm:$0xff]
        %v4052 = vld [vmem:[%s4018 + $0x108] sm:$0xff]
        %v4053 = vld [vmem:[%s4018 + $0x110] sm:$0xff]
        %v4054 = vld [vmem:[%s4018 + $0x118] sm:$0xff]
        %v4055 = vld [vmem:[%s4018 + $0x120] sm:$0xff]
        %v4056 = vld [vmem:[%s4018 + $0x128] sm:$0xff]
        %v4057 = vld [vmem:[%s4018 + $0x130] sm:$0xff]
        %v4058 = vld [vmem:[%s4018 + $0x138] sm:$0xff]
        %v4059 = vld [vmem:[%s4018 + $0x140] sm:$0xff]
        %v4060 = vld [vmem:[%s4018 + $0x148] sm:$0xff]
        %v4061 = vld [vmem:[%s4018 + $0x150] sm:$0xff]
        %v4062 = vld [vmem:[%s4018 + $0x158] sm:$0xff]
        %v4063 = vld [vmem:[%s4018 + $0x160] sm:$0xff]
        %v4064 = vld [vmem:[%s4018 + $0x168] sm:$0xff]
        %v4065 = vld [vmem:[%s4018 + $0x170] sm:$0xff]
        %v4066 = vld [vmem:[%s4018 + $0x178] sm:$0xff]
        %v4067 = vld [vmem:[%s4018 + $0x180] sm:$0xff]
        %v4068 = vld [vmem:[%s4018 + $0x188] sm:$0xff]
        %v4069 = vld [vmem:[%s4018 + $0x190] sm:$0xff]
        %v4070 = vld [vmem:[%s4018 + $0x198] sm:$0xff]
        %v4071 = vld [vmem:[%s4018 + $0x1a0] sm:$0xff]
        %v4072 = vld [vmem:[%s4018 + $0x1a8] sm:$0xff]
        %v4073 = vld [vmem:[%s4018 + $0x1b0] sm:$0xff]
        %v4074 = vld [vmem:[%s4018 + $0x1b8] sm:$0xff]
        %v4131 = vunpack.c.l.b16 %v4019
        %v4132 = vunpack.c.h.b16 %v4019
        %v4133 = vunpack.c.l.b16 %v4020
        %v4134 = vunpack.c.h.b16 %v4020
        %v4135 = vunpack.c.l.b16 %v4021
        %v4136 = vunpack.c.h.b16 %v4021
        %v4137 = vunpack.c.l.b16 %v4022
        %v4138 = vunpack.c.h.b16 %v4022
        %v4139 = vunpack.c.l.b16 %v4023
        %v4140 = vunpack.c.h.b16 %v4023
        %v4141 = vunpack.c.l.b16 %v4024
        %v4142 = vunpack.c.h.b16 %v4024
        %v4143 = vunpack.c.l.b16 %v4025
        %v4144 = vunpack.c.h.b16 %v4025
        %v4145 = vunpack.c.l.b16 %v4026
        %v4146 = vunpack.c.h.b16 %v4026
        %v4147 = vunpack.c.l.b16 %v4027
        %v4148 = vunpack.c.h.b16 %v4027
        %v4149 = vunpack.c.l.b16 %v4028
        %v4150 = vunpack.c.h.b16 %v4028
        %v4151 = vunpack.c.l.b16 %v4029
        %v4152 = vunpack.c.h.b16 %v4029
        %v4153 = vunpack.c.l.b16 %v4030
        %v4154 = vunpack.c.h.b16 %v4030
        %v4155 = vunpack.c.l.b16 %v4031
        %v4156 = vunpack.c.h.b16 %v4031
        %v4157 = vunpack.c.l.b16 %v4032
        %v4158 = vunpack.c.h.b16 %v4032
        %v4159 = vunpack.c.l.b16 %v4033
        %v4160 = vunpack.c.h.b16 %v4033
        %v4161 = vunpack.c.l.b16 %v4034
        %v4162 = vunpack.c.h.b16 %v4034
        %v4163 = vunpack.c.l.b16 %v4035
        %v4164 = vunpack.c.h.b16 %v4035
        %v4165 = vunpack.c.l.b16 %v4036
        %v4166 = vunpack.c.h.b16 %v4036
        %v4167 = vunpack.c.l.b16 %v4037
        %v4168 = vunpack.c.h.b16 %v4037
        %v4169 = vunpack.c.l.b16 %v4038
        %v4170 = vunpack.c.h.b16 %v4038
        %v4171 = vunpack.c.l.b16 %v4039
        %v4172 = vunpack.c.h.b16 %v4039
        %v4173 = vunpack.c.l.b16 %v4040
        %v4174 = vunpack.c.h.b16 %v4040
        %v4175 = vunpack.c.l.b16 %v4041
        %v4176 = vunpack.c.h.b16 %v4041
        %v4177 = vunpack.c.l.b16 %v4042
        %v4178 = vunpack.c.h.b16 %v4042
        %v4179 = vunpack.c.l.b16 %v4043
        %v4180 = vunpack.c.h.b16 %v4043
        %v4181 = vunpack.c.l.b16 %v4044
        %v4182 = vunpack.c.h.b16 %v4044
        %v4183 = vunpack.c.l.b16 %v4045
        %v4184 = vunpack.c.h.b16 %v4045
        %v4185 = vunpack.c.l.b16 %v4046
        %v4186 = vunpack.c.h.b16 %v4046
        %v4187 = vunpack.c.l.b16 %v4047
        %v4188 = vunpack.c.h.b16 %v4047
        %v4189 = vunpack.c.l.b16 %v4048
        %v4190 = vunpack.c.h.b16 %v4048
        %v4191 = vunpack.c.l.b16 %v4049
        %v4192 = vunpack.c.h.b16 %v4049
        %v4193 = vunpack.c.l.b16 %v4050
        %v4194 = vunpack.c.h.b16 %v4050
        %v4195 = vunpack.c.l.b16 %v4051
        %v4196 = vunpack.c.h.b16 %v4051
        %v4197 = vunpack.c.l.b16 %v4052
        %v4198 = vunpack.c.h.b16 %v4052
        %v4199 = vunpack.c.l.b16 %v4053
        %v4200 = vunpack.c.h.b16 %v4053
        %v4201 = vunpack.c.l.b16 %v4054
        %v4202 = vunpack.c.h.b16 %v4054
        %v4203 = vunpack.c.l.b16 %v4055
        %v4204 = vunpack.c.h.b16 %v4055
        %v4205 = vunpack.c.l.b16 %v4056
        %v4206 = vunpack.c.h.b16 %v4056
        %v4207 = vunpack.c.l.b16 %v4057
        %v4208 = vunpack.c.h.b16 %v4057
        %v4209 = vunpack.c.l.b16 %v4058
        %v4210 = vunpack.c.h.b16 %v4058
        %v4211 = vunpack.c.l.b16 %v4059
        %v4212 = vunpack.c.h.b16 %v4059
        %v4213 = vunpack.c.l.b16 %v4060
        %v4214 = vunpack.c.h.b16 %v4060
        %v4215 = vunpack.c.l.b16 %v4061
        %v4216 = vunpack.c.h.b16 %v4061
        %v4217 = vunpack.c.l.b16 %v4062
        %v4218 = vunpack.c.h.b16 %v4062
        %v4219 = vunpack.c.l.b16 %v4063
        %v4220 = vunpack.c.h.b16 %v4063
        %v4221 = vunpack.c.l.b16 %v4064
        %v4222 = vunpack.c.h.b16 %v4064
        %v4223 = vunpack.c.l.b16 %v4065
        %v4224 = vunpack.c.h.b16 %v4065
        %v4225 = vunpack.c.l.b16 %v4066
        %v4226 = vunpack.c.h.b16 %v4066
        %v4227 = vunpack.c.l.b16 %v4067
        %v4228 = vunpack.c.h.b16 %v4067
        %v4229 = vunpack.c.l.b16 %v4068
        %v4230 = vunpack.c.h.b16 %v4068
        %v4231 = vunpack.c.l.b16 %v4069
        %v4232 = vunpack.c.h.b16 %v4069
        %v4233 = vunpack.c.l.b16 %v4070
        %v4234 = vunpack.c.h.b16 %v4070
        %v4235 = vunpack.c.l.b16 %v4071
        %v4236 = vunpack.c.h.b16 %v4071
        %v4237 = vunpack.c.l.b16 %v4072
        %v4238 = vunpack.c.h.b16 %v4072
        %v4239 = vunpack.c.l.b16 %v4073
        %v4240 = vunpack.c.h.b16 %v4073
        %v4241 = vunpack.c.l.b16 %v4074
        %v4242 = vunpack.c.h.b16 %v4074
        %v4243 = vpack.c.b16 %v4135, %v4131
        %v4244 = vpack.c.b16 %v4136, %v4132
        %v4245 = vpack.c.b16 %v4137, %v4133
        %v4246 = vpack.c.b16 %v4138, %v4134
        %v4247 = vpack.c.b16 %v4143, %v4139
        %v4248 = vpack.c.b16 %v4144, %v4140
        %v4249 = vpack.c.b16 %v4145, %v4141
        %v4250 = vpack.c.b16 %v4146, %v4142
        %v4251 = vpack.c.b16 %v4151, %v4147
        %v4252 = vpack.c.b16 %v4152, %v4148
        %v4253 = vpack.c.b16 %v4153, %v4149
        %v4254 = vpack.c.b16 %v4154, %v4150
        %v4255 = vpack.c.b16 %v4159, %v4155
        %v4256 = vpack.c.b16 %v4160, %v4156
        %v4257 = vpack.c.b16 %v4161, %v4157
        %v4258 = vpack.c.b16 %v4162, %v4158
        %v4259 = vpack.c.b16 %v4167, %v4163
        %v4260 = vpack.c.b16 %v4168, %v4164
        %v4261 = vpack.c.b16 %v4169, %v4165
        %v4262 = vpack.c.b16 %v4170, %v4166
        %v4263 = vpack.c.b16 %v4175, %v4171
        %v4264 = vpack.c.b16 %v4176, %v4172
        %v4265 = vpack.c.b16 %v4177, %v4173
        %v4266 = vpack.c.b16 %v4178, %v4174
        %v4267 = vpack.c.b16 %v4183, %v4179
        %v4268 = vpack.c.b16 %v4184, %v4180
        %v4269 = vpack.c.b16 %v4185, %v4181
        %v4270 = vpack.c.b16 %v4186, %v4182
        %v4271 = vpack.c.b16 %v4191, %v4187
        %v4272 = vpack.c.b16 %v4192, %v4188
        %v4273 = vpack.c.b16 %v4193, %v4189
        %v4274 = vpack.c.b16 %v4194, %v4190
        %v4275 = vpack.c.b16 %v4199, %v4195
        %v4276 = vpack.c.b16 %v4200, %v4196
        %v4277 = vpack.c.b16 %v4201, %v4197
        %v4278 = vpack.c.b16 %v4202, %v4198
        %v4279 = vpack.c.b16 %v4207, %v4203
        %v4280 = vpack.c.b16 %v4208, %v4204
        %v4281 = vpack.c.b16 %v4209, %v4205
        %v4282 = vpack.c.b16 %v4210, %v4206
        %v4283 = vpack.c.b16 %v4215, %v4211
        %v4284 = vpack.c.b16 %v4216, %v4212
        %v4285 = vpack.c.b16 %v4217, %v4213
        %v4286 = vpack.c.b16 %v4218, %v4214
        %v4287 = vpack.c.b16 %v4223, %v4219
        %v4288 = vpack.c.b16 %v4224, %v4220
        %v4289 = vpack.c.b16 %v4225, %v4221
        %v4290 = vpack.c.b16 %v4226, %v4222
        %v4291 = vpack.c.b16 %v4231, %v4227
        %v4292 = vpack.c.b16 %v4232, %v4228
        %v4293 = vpack.c.b16 %v4233, %v4229
        %v4294 = vpack.c.b16 %v4234, %v4230
        %v4295 = vpack.c.b16 %v4239, %v4235
        %v4296 = vpack.c.b16 %v4240, %v4236
        %v4297 = vpack.c.b16 %v4241, %v4237
        %v4298 = vpack.c.b16 %v4242, %v4238
        %v4356 = vsel %vm1655, %v4005, 0
        %v4359 = vsel %vm1655, %v4007, 0
        %v4362 = vsel %vm1655, %v4009, 0
        %v4365 = vsel %vm1655, %v4011, 0
        %v4368 = vsel %vm1655, %v4013, 0
        %v4371 = vsel %vm1655, %v4015, 0
        %v4374 = vsel %vm1655, %v4017, 0
        %4376 = vmatpush.bf16.msra.mxu0 %v4271
        %4377 = vmatpush.bf16.msra.mxu0 %v4267
        %4378 = vmatpush.bf16.msra.mxu0 %v4263
        %4379 = vmatpush.bf16.msra.mxu0 %v4259
        %4380 = vmatpush.bf16.msra.mxu0 %v4255
        %4381 = vmatpush.bf16.msra.mxu0 %v4251
        %4382 = vmatpush.bf16.msra.mxu0 %v4247
        %4383 = vmatpush.bf16.msra.mxu0 %v4243
        %4384 = vmatmul.bf16.gmra.mxu0 %v4004
        %v4385 = vpop.f32.mrf.mxu0
        %v4386 = vadd.f32 0.0, %v4385
        %v4387 = vpop.f32.mrf.mxu0
        %v4388 = vadd.f32 0.0, %v4387
        %4389 = vmatmul.bf16.gmra.mxu0 %v4006
        %v4390 = vpop.f32.mrf.mxu0
        %v4391 = vadd.f32 0.0, %v4390
        %v4392 = vpop.f32.mrf.mxu0
        %v4393 = vadd.f32 0.0, %v4392
        %4394 = vmatmul.bf16.gmra.mxu0 %v4008
        %v4395 = vpop.f32.mrf.mxu0
        %v4396 = vadd.f32 0.0, %v4395
        %v4397 = vpop.f32.mrf.mxu0
        %v4398 = vadd.f32 0.0, %v4397
        %4399 = vmatmul.bf16.gmra.mxu0 %v4010
        %v4400 = vpop.f32.mrf.mxu0
        %v4401 = vadd.f32 0.0, %v4400
        %v4402 = vpop.f32.mrf.mxu0
        %v4403 = vadd.f32 0.0, %v4402
        %4404 = vmatmul.bf16.gmra.mxu0 %v4012
        %v4405 = vpop.f32.mrf.mxu0
        %v4406 = vadd.f32 0.0, %v4405
        %v4407 = vpop.f32.mrf.mxu0
        %v4408 = vadd.f32 0.0, %v4407
        %4409 = vmatmul.bf16.gmra.mxu0 %v4014
        %v4410 = vpop.f32.mrf.mxu0
        %v4411 = vadd.f32 0.0, %v4410
        %v4412 = vpop.f32.mrf.mxu0
        %v4413 = vadd.f32 0.0, %v4412
        %4414 = vmatmul.bf16.gmra.mxu0 %v4016
        %v4415 = vpop.f32.mrf.mxu0
        %v4416 = vadd.f32 0.0, %v4415
        %v4417 = vpop.f32.mrf.mxu0
        %v4418 = vadd.f32 0.0, %v4417
        %4419 = vdwg.mxu0
        %4420 = vmatpush.bf16.msra.mxu0 0
        %4421 = vmatpush.bf16.msra.mxu0 0
        %4422 = vmatpush.bf16.msra.mxu0 %v4295
        %4423 = vmatpush.bf16.msra.mxu0 %v4291
        %4424 = vmatpush.bf16.msra.mxu0 %v4287
        %4425 = vmatpush.bf16.msra.mxu0 %v4283
        %4426 = vmatpush.bf16.msra.mxu0 %v4279
        %4427 = vmatpush.bf16.msra.mxu0 %v4275
        %4428 = vmatmul.bf16.gmra.mxu0 %v4356
        %v4429 = vpop.f32.mrf.mxu0
        %v4430 = vadd.f32 %v4386, %v4429
        %v4431 = vpop.f32.mrf.mxu0
        %v4432 = vadd.f32 %v4388, %v4431
        %4433 = vmatmul.bf16.gmra.mxu0 %v4359
        %v4434 = vpop.f32.mrf.mxu0
        %v4435 = vadd.f32 %v4391, %v4434
        %v4436 = vpop.f32.mrf.mxu0
        %v4437 = vadd.f32 %v4393, %v4436
        %4438 = vmatmul.bf16.gmra.mxu0 %v4362
        %v4439 = vpop.f32.mrf.mxu0
        %v4440 = vadd.f32 %v4396, %v4439
        %v4441 = vpop.f32.mrf.mxu0
        %v4442 = vadd.f32 %v4398, %v4441
        %4443 = vmatmul.bf16.gmra.mxu0 %v4365
        %v4444 = vpop.f32.mrf.mxu0
        %v4445 = vadd.f32 %v4401, %v4444
        %v4446 = vpop.f32.mrf.mxu0
        %v4447 = vadd.f32 %v4403, %v4446
        %4448 = vmatmul.bf16.gmra.mxu0 %v4368
        %v4449 = vpop.f32.mrf.mxu0
        %v4450 = vadd.f32 %v4406, %v4449
        %v4451 = vpop.f32.mrf.mxu0
        %v4452 = vadd.f32 %v4408, %v4451
        %4453 = vmatmul.bf16.gmra.mxu0 %v4371
        %v4454 = vpop.f32.mrf.mxu0
        %v4455 = vadd.f32 %v4411, %v4454
        %v4456 = vpop.f32.mrf.mxu0
        %v4457 = vadd.f32 %v4413, %v4456
        %4458 = vmatmul.bf16.gmra.mxu0 %v4374
        %v4459 = vpop.f32.mrf.mxu0
        %v4460 = vadd.f32 %v4416, %v4459
        %v4461 = vpop.f32.mrf.mxu0
        %v4462 = vadd.f32 %v4418, %v4461
        %4463 = vdwg.mxu0
        %4464 = vmatpush.bf16.msra.mxu0 %v4272
        %4465 = vmatpush.bf16.msra.mxu0 %v4268
        %4466 = vmatpush.bf16.msra.mxu0 %v4264
        %4467 = vmatpush.bf16.msra.mxu0 %v4260
        %4468 = vmatpush.bf16.msra.mxu0 %v4256
        %4469 = vmatpush.bf16.msra.mxu0 %v4252
        %4470 = vmatpush.bf16.msra.mxu0 %v4248
        %4471 = vmatpush.bf16.msra.mxu0 %v4244
        %4472 = vmatmul.bf16.gmra.mxu0 %v4004
        %v4473 = vpop.f32.mrf.mxu0
        %v4474 = vadd.f32 0.0, %v4473
        %v4475 = vpop.f32.mrf.mxu0
        %v4476 = vadd.f32 0.0, %v4475
        %4477 = vmatmul.bf16.gmra.mxu0 %v4006
        %v4478 = vpop.f32.mrf.mxu0
        %v4479 = vadd.f32 0.0, %v4478
        %v4480 = vpop.f32.mrf.mxu0
        %v4481 = vadd.f32 0.0, %v4480
        %4482 = vmatmul.bf16.gmra.mxu0 %v4008
        %v4483 = vpop.f32.mrf.mxu0
        %v4484 = vadd.f32 0.0, %v4483
        %v4485 = vpop.f32.mrf.mxu0
        %v4486 = vadd.f32 0.0, %v4485
        %4487 = vmatmul.bf16.gmra.mxu0 %v4010
        %v4488 = vpop.f32.mrf.mxu0
        %v4489 = vadd.f32 0.0, %v4488
        %v4490 = vpop.f32.mrf.mxu0
        %v4491 = vadd.f32 0.0, %v4490
        %4492 = vmatmul.bf16.gmra.mxu0 %v4012
        %v4493 = vpop.f32.mrf.mxu0
        %v4494 = vadd.f32 0.0, %v4493
        %v4495 = vpop.f32.mrf.mxu0
        %v4496 = vadd.f32 0.0, %v4495
        %4497 = vmatmul.bf16.gmra.mxu0 %v4014
        %v4498 = vpop.f32.mrf.mxu0
        %v4499 = vadd.f32 0.0, %v4498
        %v4500 = vpop.f32.mrf.mxu0
        %v4501 = vadd.f32 0.0, %v4500
        %4502 = vmatmul.bf16.gmra.mxu0 %v4016
        %v4503 = vpop.f32.mrf.mxu0
        %v4504 = vadd.f32 0.0, %v4503
        %v4505 = vpop.f32.mrf.mxu0
        %v4506 = vadd.f32 0.0, %v4505
        %4507 = vdwg.mxu0
        %4508 = vmatpush.bf16.msra.mxu0 0
        %4509 = vmatpush.bf16.msra.mxu0 0
        %4510 = vmatpush.bf16.msra.mxu0 %v4296
        %4511 = vmatpush.bf16.msra.mxu0 %v4292
        %4512 = vmatpush.bf16.msra.mxu0 %v4288
        %4513 = vmatpush.bf16.msra.mxu0 %v4284
        %4514 = vmatpush.bf16.msra.mxu0 %v4280
        %4515 = vmatpush.bf16.msra.mxu0 %v4276
        %4516 = vmatmul.bf16.gmra.mxu0 %v4356
        %v4517 = vpop.f32.mrf.mxu0
        %v4518 = vadd.f32 %v4474, %v4517
        %v4519 = vpop.f32.mrf.mxu0
        %v4520 = vadd.f32 %v4476, %v4519
        %4521 = vmatmul.bf16.gmra.mxu0 %v4359
        %v4522 = vpop.f32.mrf.mxu0
        %v4523 = vadd.f32 %v4479, %v4522
        %v4524 = vpop.f32.mrf.mxu0
        %v4525 = vadd.f32 %v4481, %v4524
        %4526 = vmatmul.bf16.gmra.mxu0 %v4362
        %v4527 = vpop.f32.mrf.mxu0
        %v4528 = vadd.f32 %v4484, %v4527
        %v4529 = vpop.f32.mrf.mxu0
        %v4530 = vadd.f32 %v4486, %v4529
        %4531 = vmatmul.bf16.gmra.mxu0 %v4365
        %v4532 = vpop.f32.mrf.mxu0
        %v4533 = vadd.f32 %v4489, %v4532
        %v4534 = vpop.f32.mrf.mxu0
        %v4535 = vadd.f32 %v4491, %v4534
        %4536 = vmatmul.bf16.gmra.mxu0 %v4368
        %v4537 = vpop.f32.mrf.mxu0
        %v4538 = vadd.f32 %v4494, %v4537
        %v4539 = vpop.f32.mrf.mxu0
        %v4540 = vadd.f32 %v4496, %v4539
        %4541 = vmatmul.bf16.gmra.mxu0 %v4371
        %v4542 = vpop.f32.mrf.mxu0
        %v4543 = vadd.f32 %v4499, %v4542
        %v4544 = vpop.f32.mrf.mxu0
        %v4545 = vadd.f32 %v4501, %v4544
        %4546 = vmatmul.bf16.gmra.mxu0 %v4374
        %v4547 = vpop.f32.mrf.mxu0
        %v4548 = vadd.f32 %v4504, %v4547
        %v4549 = vpop.f32.mrf.mxu0
        %v4550 = vadd.f32 %v4506, %v4549
        %4551 = vdwg.mxu0
        %4552 = vmatpush.bf16.msra.mxu0 %v4273
        %4553 = vmatpush.bf16.msra.mxu0 %v4269
        %4554 = vmatpush.bf16.msra.mxu0 %v4265
        %4555 = vmatpush.bf16.msra.mxu0 %v4261
        %4556 = vmatpush.bf16.msra.mxu0 %v4257
        %4557 = vmatpush.bf16.msra.mxu0 %v4253
        %4558 = vmatpush.bf16.msra.mxu0 %v4249
        %4559 = vmatpush.bf16.msra.mxu0 %v4245
        %4560 = vmatmul.bf16.gmra.mxu0 %v4004
        %v4561 = vpop.f32.mrf.mxu0
        %v4562 = vadd.f32 0.0, %v4561
        %v4563 = vpop.f32.mrf.mxu0
        %v4564 = vadd.f32 0.0, %v4563
        %4565 = vmatmul.bf16.gmra.mxu0 %v4006
        %v4566 = vpop.f32.mrf.mxu0
        %v4567 = vadd.f32 0.0, %v4566
        %v4568 = vpop.f32.mrf.mxu0
        %v4569 = vadd.f32 0.0, %v4568
        %4570 = vmatmul.bf16.gmra.mxu0 %v4008
        %v4571 = vpop.f32.mrf.mxu0
        %v4572 = vadd.f32 0.0, %v4571
        %v4573 = vpop.f32.mrf.mxu0
        %v4574 = vadd.f32 0.0, %v4573
        %4575 = vmatmul.bf16.gmra.mxu0 %v4010
        %v4576 = vpop.f32.mrf.mxu0
        %v4577 = vadd.f32 0.0, %v4576
        %v4578 = vpop.f32.mrf.mxu0
        %v4579 = vadd.f32 0.0, %v4578
        %4580 = vmatmul.bf16.gmra.mxu0 %v4012
        %v4581 = vpop.f32.mrf.mxu0
        %v4582 = vadd.f32 0.0, %v4581
        %v4583 = vpop.f32.mrf.mxu0
        %v4584 = vadd.f32 0.0, %v4583
        %4585 = vmatmul.bf16.gmra.mxu0 %v4014
        %v4586 = vpop.f32.mrf.mxu0
        %v4587 = vadd.f32 0.0, %v4586
        %v4588 = vpop.f32.mrf.mxu0
        %v4589 = vadd.f32 0.0, %v4588
        %4590 = vmatmul.bf16.gmra.mxu0 %v4016
        %v4591 = vpop.f32.mrf.mxu0
        %v4592 = vadd.f32 0.0, %v4591
        %v4593 = vpop.f32.mrf.mxu0
        %v4594 = vadd.f32 0.0, %v4593
        %4595 = vdwg.mxu0
        %4596 = vmatpush.bf16.msra.mxu0 0
        %4597 = vmatpush.bf16.msra.mxu0 0
        %4598 = vmatpush.bf16.msra.mxu0 %v4297
        %4599 = vmatpush.bf16.msra.mxu0 %v4293
        %4600 = vmatpush.bf16.msra.mxu0 %v4289
        %4601 = vmatpush.bf16.msra.mxu0 %v4285
        %4602 = vmatpush.bf16.msra.mxu0 %v4281
        %4603 = vmatpush.bf16.msra.mxu0 %v4277
        %4604 = vmatmul.bf16.gmra.mxu0 %v4356
        %v4605 = vpop.f32.mrf.mxu0
        %v4606 = vadd.f32 %v4562, %v4605
        %v4607 = vpop.f32.mrf.mxu0
        %v4608 = vadd.f32 %v4564, %v4607
        %4609 = vmatmul.bf16.gmra.mxu0 %v4359
        %v4610 = vpop.f32.mrf.mxu0
        %v4611 = vadd.f32 %v4567, %v4610
        %v4612 = vpop.f32.mrf.mxu0
        %v4613 = vadd.f32 %v4569, %v4612
        %4614 = vmatmul.bf16.gmra.mxu0 %v4362
        %v4615 = vpop.f32.mrf.mxu0
        %v4616 = vadd.f32 %v4572, %v4615
        %v4617 = vpop.f32.mrf.mxu0
        %v4618 = vadd.f32 %v4574, %v4617
        %4619 = vmatmul.bf16.gmra.mxu0 %v4365
        %v4620 = vpop.f32.mrf.mxu0
        %v4621 = vadd.f32 %v4577, %v4620
        %v4622 = vpop.f32.mrf.mxu0
        %v4623 = vadd.f32 %v4579, %v4622
        %4624 = vmatmul.bf16.gmra.mxu0 %v4368
        %v4625 = vpop.f32.mrf.mxu0
        %v4626 = vadd.f32 %v4582, %v4625
        %v4627 = vpop.f32.mrf.mxu0
        %v4628 = vadd.f32 %v4584, %v4627
        %4629 = vmatmul.bf16.gmra.mxu0 %v4371
        %v4630 = vpop.f32.mrf.mxu0
        %v4631 = vadd.f32 %v4587, %v4630
        %v4632 = vpop.f32.mrf.mxu0
        %v4633 = vadd.f32 %v4589, %v4632
        %4634 = vmatmul.bf16.gmra.mxu0 %v4374
        %v4635 = vpop.f32.mrf.mxu0
        %v4636 = vadd.f32 %v4592, %v4635
        %v4637 = vpop.f32.mrf.mxu0
        %v4638 = vadd.f32 %v4594, %v4637
        %4639 = vdwg.mxu0
        %4640 = vmatpush.bf16.msra.mxu0 %v4274
        %4641 = vmatpush.bf16.msra.mxu0 %v4270
        %4642 = vmatpush.bf16.msra.mxu0 %v4266
        %4643 = vmatpush.bf16.msra.mxu0 %v4262
        %4644 = vmatpush.bf16.msra.mxu0 %v4258
        %4645 = vmatpush.bf16.msra.mxu0 %v4254
        %4646 = vmatpush.bf16.msra.mxu0 %v4250
        %4647 = vmatpush.bf16.msra.mxu0 %v4246
        %4648 = vmatmul.bf16.gmra.mxu0 %v4004
        %v4649 = vpop.f32.mrf.mxu0
        %v4650 = vadd.f32 0.0, %v4649
        %v4651 = vpop.f32.mrf.mxu0
        %v4652 = vadd.f32 0.0, %v4651
        %4653 = vmatmul.bf16.gmra.mxu0 %v4006
        %v4654 = vpop.f32.mrf.mxu0
        %v4655 = vadd.f32 0.0, %v4654
        %v4656 = vpop.f32.mrf.mxu0
        %v4657 = vadd.f32 0.0, %v4656
        %4658 = vmatmul.bf16.gmra.mxu0 %v4008
        %v4659 = vpop.f32.mrf.mxu0
        %v4660 = vadd.f32 0.0, %v4659
        %v4661 = vpop.f32.mrf.mxu0
        %v4662 = vadd.f32 0.0, %v4661
        %4663 = vmatmul.bf16.gmra.mxu0 %v4010
        %v4664 = vpop.f32.mrf.mxu0
        %v4665 = vadd.f32 0.0, %v4664
        %v4666 = vpop.f32.mrf.mxu0
        %v4667 = vadd.f32 0.0, %v4666
        %4668 = vmatmul.bf16.gmra.mxu0 %v4012
        %v4669 = vpop.f32.mrf.mxu0
        %v4670 = vadd.f32 0.0, %v4669
        %v4671 = vpop.f32.mrf.mxu0
        %v4672 = vadd.f32 0.0, %v4671
        %4673 = vmatmul.bf16.gmra.mxu0 %v4014
        %v4674 = vpop.f32.mrf.mxu0
        %v4675 = vadd.f32 0.0, %v4674
        %v4676 = vpop.f32.mrf.mxu0
        %v4677 = vadd.f32 0.0, %v4676
        %4678 = vmatmul.bf16.gmra.mxu0 %v4016
        %v4679 = vpop.f32.mrf.mxu0
        %v4680 = vadd.f32 0.0, %v4679
        %v4681 = vpop.f32.mrf.mxu0
        %v4682 = vadd.f32 0.0, %v4681
        %4683 = vdwg.mxu0
        %4684 = vmatpush.bf16.msra.mxu0 0
        %4685 = vmatpush.bf16.msra.mxu0 0
        %4686 = vmatpush.bf16.msra.mxu0 %v4298
        %4687 = vmatpush.bf16.msra.mxu0 %v4294
        %4688 = vmatpush.bf16.msra.mxu0 %v4290
        %4689 = vmatpush.bf16.msra.mxu0 %v4286
        %4690 = vmatpush.bf16.msra.mxu0 %v4282
        %4691 = vmatpush.bf16.msra.mxu0 %v4278
        %4692 = vmatmul.bf16.gmra.mxu0 %v4356
        %v4693 = vpop.f32.mrf.mxu0
        %v4694 = vadd.f32 %v4650, %v4693
        %v4695 = vpop.f32.mrf.mxu0
        %v4696 = vadd.f32 %v4652, %v4695
        %4697 = vmatmul.bf16.gmra.mxu0 %v4359
        %v4698 = vpop.f32.mrf.mxu0
        %v4699 = vadd.f32 %v4655, %v4698
        %v4700 = vpop.f32.mrf.mxu0
        %v4701 = vadd.f32 %v4657, %v4700
        %4702 = vmatmul.bf16.gmra.mxu0 %v4362
        %v4703 = vpop.f32.mrf.mxu0
        %v4704 = vadd.f32 %v4660, %v4703
        %v4705 = vpop.f32.mrf.mxu0
        %v4706 = vadd.f32 %v4662, %v4705
        %4707 = vmatmul.bf16.gmra.mxu0 %v4365
        %v4708 = vpop.f32.mrf.mxu0
        %v4709 = vadd.f32 %v4665, %v4708
        %v4710 = vpop.f32.mrf.mxu0
        %v4711 = vadd.f32 %v4667, %v4710
        %4712 = vmatmul.bf16.gmra.mxu0 %v4368
        %v4713 = vpop.f32.mrf.mxu0
        %v4714 = vadd.f32 %v4670, %v4713
        %v4715 = vpop.f32.mrf.mxu0
        %v4716 = vadd.f32 %v4672, %v4715
        %4717 = vmatmul.bf16.gmra.mxu0 %v4371
        %v4718 = vpop.f32.mrf.mxu0
        %v4719 = vadd.f32 %v4675, %v4718
        %v4720 = vpop.f32.mrf.mxu0
        %v4721 = vadd.f32 %v4677, %v4720
        %4722 = vmatmul.bf16.gmra.mxu0 %v4374
        %v4723 = vpop.f32.mrf.mxu0
        %v4724 = vadd.f32 %v4680, %v4723
        %v4725 = vpop.f32.mrf.mxu0
        %v4726 = vadd.f32 %v4682, %v4725
        %4727 = vdwg.mxu0
        %v4728 = vadd.f32 %v3920, %v4430
        %v4729 = vadd.f32 %v3921, %v4518
        %v4730 = vadd.f32 %v3922, %v4606
        %v4731 = vadd.f32 %v3923, %v4694
        %v4732 = vadd.f32 %v3924, %v4432
        %v4733 = vadd.f32 %v3925, %v4520
        %v4734 = vadd.f32 %v3926, %v4608
        %v4735 = vadd.f32 %v3927, %v4696
        %v4736 = vadd.f32 %v3928, %v4435
        %v4737 = vadd.f32 %v3929, %v4523
        %v4738 = vadd.f32 %v3930, %v4611
        %v4739 = vadd.f32 %v3931, %v4699
        %v4740 = vadd.f32 %v3932, %v4437
        %v4741 = vadd.f32 %v3933, %v4525
        %v4742 = vadd.f32 %v3934, %v4613
        %v4743 = vadd.f32 %v3935, %v4701
        %v4744 = vadd.f32 %v3936, %v4440
        %v4745 = vadd.f32 %v3937, %v4528
        %v4746 = vadd.f32 %v3938, %v4616
        %v4747 = vadd.f32 %v3939, %v4704
        %v4748 = vadd.f32 %v3940, %v4442
        %v4749 = vadd.f32 %v3941, %v4530
        %v4750 = vadd.f32 %v3942, %v4618
        %v4751 = vadd.f32 %v3943, %v4706
        %v4752 = vadd.f32 %v3944, %v4445
        %v4753 = vadd.f32 %v3945, %v4533
        %v4754 = vadd.f32 %v3946, %v4621
        %v4755 = vadd.f32 %v3947, %v4709
        %v4756 = vadd.f32 %v3948, %v4447
        %v4757 = vadd.f32 %v3949, %v4535
        %v4758 = vadd.f32 %v3950, %v4623
        %v4759 = vadd.f32 %v3951, %v4711
        %v4760 = vadd.f32 %v3952, %v4450
        %v4761 = vadd.f32 %v3953, %v4538
        %v4762 = vadd.f32 %v3954, %v4626
        %v4763 = vadd.f32 %v3955, %v4714
        %v4764 = vadd.f32 %v3956, %v4452
        %v4765 = vadd.f32 %v3957, %v4540
        %v4766 = vadd.f32 %v3958, %v4628
        %v4767 = vadd.f32 %v3959, %v4716
        %v4768 = vadd.f32 %v3960, %v4455
        %v4769 = vadd.f32 %v3961, %v4543
        %v4770 = vadd.f32 %v3962, %v4631
        %v4771 = vadd.f32 %v3963, %v4719
        %v4772 = vadd.f32 %v3964, %v4457
        %v4773 = vadd.f32 %v3965, %v4545
        %v4774 = vadd.f32 %v3966, %v4633
        %v4775 = vadd.f32 %v3967, %v4721
        %v4776 = vadd.f32 %v3968, %v4460
        %v4777 = vadd.f32 %v3969, %v4548
        %v4778 = vadd.f32 %v3970, %v4636
        %v4779 = vadd.f32 %v3971, %v4724
        %v4780 = vadd.f32 %v3972, %v4462
        %v4781 = vadd.f32 %v3973, %v4550
        %v4782 = vadd.f32 %v3974, %v4638
        %v4783 = vadd.f32 %v3975, %v4726
        %v4784 = vld [vmem:[#allocation2 + $0x40] sm:$0xff]
        %v4785 = vld [vmem:[#allocation2 + $0x48] sm:$0xff]
        %v4786 = vld [vmem:[#allocation2 + $0x50] sm:$0xff]
        %v4787 = vld [vmem:[#allocation2 + $0x58] sm:$0xff]
        %v4788 = vld [vmem:[#allocation2 + $0x60] sm:$0xff]
        %v4789 = vld [vmem:[#allocation2 + $0x68] sm:$0xff]
        %v4790 = vld [vmem:[#allocation2 + $0x70] sm:$0xff]
        %v4791 = vld [vmem:[#allocation2 + $0x78] sm:$0xff]
        %v4792 = vld [vmem:[#allocation2 + $0x80] sm:$0xff]
        %v4793 = vld [vmem:[#allocation2 + $0x88] sm:$0xff]
        %v4794 = vld [vmem:[#allocation2 + $0x90] sm:$0xff]
        %v4795 = vld [vmem:[#allocation2 + $0x98] sm:$0xff]
        %v4796 = vld [vmem:[#allocation2 + $0xa0] sm:$0xff]
        %v4797 = vld [vmem:[#allocation2 + $0xa8] sm:$0xff]
        %v4798 = vld [vmem:[#allocation2 + $0xb0] sm:$0xff]
        %v4799 = vld [vmem:[#allocation2 + $0xb8] sm:$0xff]
        %v4800 = vld [vmem:[#allocation2 + $0xc0] sm:$0xff]
        %v4801 = vld [vmem:[#allocation2 + $0xc8] sm:$0xff]
        %v4802 = vld [vmem:[#allocation2 + $0xd0] sm:$0xff]
        %v4803 = vld [vmem:[#allocation2 + $0xd8] sm:$0xff]
        %v4804 = vld [vmem:[#allocation2 + $0xe0] sm:$0xff]
        %v4805 = vld [vmem:[#allocation2 + $0xe8] sm:$0xff]
        %v4806 = vld [vmem:[#allocation2 + $0xf0] sm:$0xff]
        %v4807 = vld [vmem:[#allocation2 + $0xf8] sm:$0xff]
        %v4808 = vld [vmem:[#allocation2 + $0x100] sm:$0xff]
        %v4809 = vld [vmem:[#allocation2 + $0x108] sm:$0xff]
        %v4810 = vld [vmem:[#allocation2 + $0x110] sm:$0xff]
        %v4811 = vld [vmem:[#allocation2 + $0x118] sm:$0xff]
        %v4812 = vpack.c.bf16 %v4786, %v4784
        %v4813 = vpack.c.bf16 %v4787, %v4785
        %v4814 = vpack.c.bf16 %v4790, %v4788
        %v4815 = vpack.c.bf16 %v4791, %v4789
        %v4816 = vpack.c.bf16 %v4794, %v4792
        %v4817 = vpack.c.bf16 %v4795, %v4793
        %v4818 = vpack.c.bf16 %v4798, %v4796
        %v4819 = vpack.c.bf16 %v4799, %v4797
        %v4820 = vpack.c.bf16 %v4802, %v4800
        %v4821 = vpack.c.bf16 %v4803, %v4801
        %v4822 = vpack.c.bf16 %v4806, %v4804
        %v4823 = vpack.c.bf16 %v4807, %v4805
        %v4824 = vpack.c.bf16 %v4810, %v4808
        %v4825 = vpack.c.bf16 %v4811, %v4809
        %s4826 = scalar_lea.vmem %s3, 1792
        %v4827 = vld [vmem:[%s4826] sm:$0xff]
        %v4828 = vld [vmem:[%s4826 + $0x8] sm:$0xff]
        %v4829 = vld [vmem:[%s4826 + $0x10] sm:$0xff]
        %v4830 = vld [vmem:[%s4826 + $0x18] sm:$0xff]
        %v4831 = vld [vmem:[%s4826 + $0x20] sm:$0xff]
        %v4832 = vld [vmem:[%s4826 + $0x28] sm:$0xff]
        %v4833 = vld [vmem:[%s4826 + $0x30] sm:$0xff]
        %v4834 = vld [vmem:[%s4826 + $0x38] sm:$0xff]
        %v4835 = vld [vmem:[%s4826 + $0x40] sm:$0xff]
        %v4836 = vld [vmem:[%s4826 + $0x48] sm:$0xff]
        %v4837 = vld [vmem:[%s4826 + $0x50] sm:$0xff]
        %v4838 = vld [vmem:[%s4826 + $0x58] sm:$0xff]
        %v4839 = vld [vmem:[%s4826 + $0x60] sm:$0xff]
        %v4840 = vld [vmem:[%s4826 + $0x68] sm:$0xff]
        %v4841 = vld [vmem:[%s4826 + $0x70] sm:$0xff]
        %v4842 = vld [vmem:[%s4826 + $0x78] sm:$0xff]
        %v4843 = vld [vmem:[%s4826 + $0x80] sm:$0xff]
        %v4844 = vld [vmem:[%s4826 + $0x88] sm:$0xff]
        %v4845 = vld [vmem:[%s4826 + $0x90] sm:$0xff]
        %v4846 = vld [vmem:[%s4826 + $0x98] sm:$0xff]
        %v4847 = vld [vmem:[%s4826 + $0xa0] sm:$0xff]
        %v4848 = vld [vmem:[%s4826 + $0xa8] sm:$0xff]
        %v4849 = vld [vmem:[%s4826 + $0xb0] sm:$0xff]
        %v4850 = vld [vmem:[%s4826 + $0xb8] sm:$0xff]
        %v4851 = vld [vmem:[%s4826 + $0xc0] sm:$0xff]
        %v4852 = vld [vmem:[%s4826 + $0xc8] sm:$0xff]
        %v4853 = vld [vmem:[%s4826 + $0xd0] sm:$0xff]
        %v4854 = vld [vmem:[%s4826 + $0xd8] sm:$0xff]
        %v4855 = vld [vmem:[%s4826 + $0xe0] sm:$0xff]
        %v4856 = vld [vmem:[%s4826 + $0xe8] sm:$0xff]
        %v4857 = vld [vmem:[%s4826 + $0xf0] sm:$0xff]
        %v4858 = vld [vmem:[%s4826 + $0xf8] sm:$0xff]
        %v4859 = vld [vmem:[%s4826 + $0x100] sm:$0xff]
        %v4860 = vld [vmem:[%s4826 + $0x108] sm:$0xff]
        %v4861 = vld [vmem:[%s4826 + $0x110] sm:$0xff]
        %v4862 = vld [vmem:[%s4826 + $0x118] sm:$0xff]
        %v4863 = vld [vmem:[%s4826 + $0x120] sm:$0xff]
        %v4864 = vld [vmem:[%s4826 + $0x128] sm:$0xff]
        %v4865 = vld [vmem:[%s4826 + $0x130] sm:$0xff]
        %v4866 = vld [vmem:[%s4826 + $0x138] sm:$0xff]
        %v4867 = vld [vmem:[%s4826 + $0x140] sm:$0xff]
        %v4868 = vld [vmem:[%s4826 + $0x148] sm:$0xff]
        %v4869 = vld [vmem:[%s4826 + $0x150] sm:$0xff]
        %v4870 = vld [vmem:[%s4826 + $0x158] sm:$0xff]
        %v4871 = vld [vmem:[%s4826 + $0x160] sm:$0xff]
        %v4872 = vld [vmem:[%s4826 + $0x168] sm:$0xff]
        %v4873 = vld [vmem:[%s4826 + $0x170] sm:$0xff]
        %v4874 = vld [vmem:[%s4826 + $0x178] sm:$0xff]
        %v4875 = vld [vmem:[%s4826 + $0x180] sm:$0xff]
        %v4876 = vld [vmem:[%s4826 + $0x188] sm:$0xff]
        %v4877 = vld [vmem:[%s4826 + $0x190] sm:$0xff]
        %v4878 = vld [vmem:[%s4826 + $0x198] sm:$0xff]
        %v4879 = vld [vmem:[%s4826 + $0x1a0] sm:$0xff]
        %v4880 = vld [vmem:[%s4826 + $0x1a8] sm:$0xff]
        %v4881 = vld [vmem:[%s4826 + $0x1b0] sm:$0xff]
        %v4882 = vld [vmem:[%s4826 + $0x1b8] sm:$0xff]
        %v4939 = vunpack.c.l.b16 %v4827
        %v4940 = vunpack.c.h.b16 %v4827
        %v4941 = vunpack.c.l.b16 %v4828
        %v4942 = vunpack.c.h.b16 %v4828
        %v4943 = vunpack.c.l.b16 %v4829
        %v4944 = vunpack.c.h.b16 %v4829
        %v4945 = vunpack.c.l.b16 %v4830
        %v4946 = vunpack.c.h.b16 %v4830
        %v4947 = vunpack.c.l.b16 %v4831
        %v4948 = vunpack.c.h.b16 %v4831
        %v4949 = vunpack.c.l.b16 %v4832
        %v4950 = vunpack.c.h.b16 %v4832
        %v4951 = vunpack.c.l.b16 %v4833
        %v4952 = vunpack.c.h.b16 %v4833
        %v4953 = vunpack.c.l.b16 %v4834
        %v4954 = vunpack.c.h.b16 %v4834
        %v4955 = vunpack.c.l.b16 %v4835
        %v4956 = vunpack.c.h.b16 %v4835
        %v4957 = vunpack.c.l.b16 %v4836
        %v4958 = vunpack.c.h.b16 %v4836
        %v4959 = vunpack.c.l.b16 %v4837
        %v4960 = vunpack.c.h.b16 %v4837
        %v4961 = vunpack.c.l.b16 %v4838
        %v4962 = vunpack.c.h.b16 %v4838
        %v4963 = vunpack.c.l.b16 %v4839
        %v4964 = vunpack.c.h.b16 %v4839
        %v4965 = vunpack.c.l.b16 %v4840
        %v4966 = vunpack.c.h.b16 %v4840
        %v4967 = vunpack.c.l.b16 %v4841
        %v4968 = vunpack.c.h.b16 %v4841
        %v4969 = vunpack.c.l.b16 %v4842
        %v4970 = vunpack.c.h.b16 %v4842
        %v4971 = vunpack.c.l.b16 %v4843
        %v4972 = vunpack.c.h.b16 %v4843
        %v4973 = vunpack.c.l.b16 %v4844
        %v4974 = vunpack.c.h.b16 %v4844
        %v4975 = vunpack.c.l.b16 %v4845
        %v4976 = vunpack.c.h.b16 %v4845
        %v4977 = vunpack.c.l.b16 %v4846
        %v4978 = vunpack.c.h.b16 %v4846
        %v4979 = vunpack.c.l.b16 %v4847
        %v4980 = vunpack.c.h.b16 %v4847
        %v4981 = vunpack.c.l.b16 %v4848
        %v4982 = vunpack.c.h.b16 %v4848
        %v4983 = vunpack.c.l.b16 %v4849
        %v4984 = vunpack.c.h.b16 %v4849
        %v4985 = vunpack.c.l.b16 %v4850
        %v4986 = vunpack.c.h.b16 %v4850
        %v4987 = vunpack.c.l.b16 %v4851
        %v4988 = vunpack.c.h.b16 %v4851
        %v4989 = vunpack.c.l.b16 %v4852
        %v4990 = vunpack.c.h.b16 %v4852
        %v4991 = vunpack.c.l.b16 %v4853
        %v4992 = vunpack.c.h.b16 %v4853
        %v4993 = vunpack.c.l.b16 %v4854
        %v4994 = vunpack.c.h.b16 %v4854
        %v4995 = vunpack.c.l.b16 %v4855
        %v4996 = vunpack.c.h.b16 %v4855
        %v4997 = vunpack.c.l.b16 %v4856
        %v4998 = vunpack.c.h.b16 %v4856
        %v4999 = vunpack.c.l.b16 %v4857
        %v5000 = vunpack.c.h.b16 %v4857
        %v5001 = vunpack.c.l.b16 %v4858
        %v5002 = vunpack.c.h.b16 %v4858
        %v5003 = vunpack.c.l.b16 %v4859
        %v5004 = vunpack.c.h.b16 %v4859
        %v5005 = vunpack.c.l.b16 %v4860
        %v5006 = vunpack.c.h.b16 %v4860
        %v5007 = vunpack.c.l.b16 %v4861
        %v5008 = vunpack.c.h.b16 %v4861
        %v5009 = vunpack.c.l.b16 %v4862
        %v5010 = vunpack.c.h.b16 %v4862
        %v5011 = vunpack.c.l.b16 %v4863
        %v5012 = vunpack.c.h.b16 %v4863
        %v5013 = vunpack.c.l.b16 %v4864
        %v5014 = vunpack.c.h.b16 %v4864
        %v5015 = vunpack.c.l.b16 %v4865
        %v5016 = vunpack.c.h.b16 %v4865
        %v5017 = vunpack.c.l.b16 %v4866
        %v5018 = vunpack.c.h.b16 %v4866
        %v5019 = vunpack.c.l.b16 %v4867
        %v5020 = vunpack.c.h.b16 %v4867
        %v5021 = vunpack.c.l.b16 %v4868
        %v5022 = vunpack.c.h.b16 %v4868
        %v5023 = vunpack.c.l.b16 %v4869
        %v5024 = vunpack.c.h.b16 %v4869
        %v5025 = vunpack.c.l.b16 %v4870
        %v5026 = vunpack.c.h.b16 %v4870
        %v5027 = vunpack.c.l.b16 %v4871
        %v5028 = vunpack.c.h.b16 %v4871
        %v5029 = vunpack.c.l.b16 %v4872
        %v5030 = vunpack.c.h.b16 %v4872
        %v5031 = vunpack.c.l.b16 %v4873
        %v5032 = vunpack.c.h.b16 %v4873
        %v5033 = vunpack.c.l.b16 %v4874
        %v5034 = vunpack.c.h.b16 %v4874
        %v5035 = vunpack.c.l.b16 %v4875
        %v5036 = vunpack.c.h.b16 %v4875
        %v5037 = vunpack.c.l.b16 %v4876
        %v5038 = vunpack.c.h.b16 %v4876
        %v5039 = vunpack.c.l.b16 %v4877
        %v5040 = vunpack.c.h.b16 %v4877
        %v5041 = vunpack.c.l.b16 %v4878
        %v5042 = vunpack.c.h.b16 %v4878
        %v5043 = vunpack.c.l.b16 %v4879
        %v5044 = vunpack.c.h.b16 %v4879
        %v5045 = vunpack.c.l.b16 %v4880
        %v5046 = vunpack.c.h.b16 %v4880
        %v5047 = vunpack.c.l.b16 %v4881
        %v5048 = vunpack.c.h.b16 %v4881
        %v5049 = vunpack.c.l.b16 %v4882
        %v5050 = vunpack.c.h.b16 %v4882
        %v5051 = vpack.c.b16 %v4943, %v4939
        %v5052 = vpack.c.b16 %v4944, %v4940
        %v5053 = vpack.c.b16 %v4945, %v4941
        %v5054 = vpack.c.b16 %v4946, %v4942
        %v5055 = vpack.c.b16 %v4951, %v4947
        %v5056 = vpack.c.b16 %v4952, %v4948
        %v5057 = vpack.c.b16 %v4953, %v4949
        %v5058 = vpack.c.b16 %v4954, %v4950
        %v5059 = vpack.c.b16 %v4959, %v4955
        %v5060 = vpack.c.b16 %v4960, %v4956
        %v5061 = vpack.c.b16 %v4961, %v4957
        %v5062 = vpack.c.b16 %v4962, %v4958
        %v5063 = vpack.c.b16 %v4967, %v4963
        %v5064 = vpack.c.b16 %v4968, %v4964
        %v5065 = vpack.c.b16 %v4969, %v4965
        %v5066 = vpack.c.b16 %v4970, %v4966
        %v5067 = vpack.c.b16 %v4975, %v4971
        %v5068 = vpack.c.b16 %v4976, %v4972
        %v5069 = vpack.c.b16 %v4977, %v4973
        %v5070 = vpack.c.b16 %v4978, %v4974
        %v5071 = vpack.c.b16 %v4983, %v4979
        %v5072 = vpack.c.b16 %v4984, %v4980
        %v5073 = vpack.c.b16 %v4985, %v4981
        %v5074 = vpack.c.b16 %v4986, %v4982
        %v5075 = vpack.c.b16 %v4991, %v4987
        %v5076 = vpack.c.b16 %v4992, %v4988
        %v5077 = vpack.c.b16 %v4993, %v4989
        %v5078 = vpack.c.b16 %v4994, %v4990
        %v5079 = vpack.c.b16 %v4999, %v4995
        %v5080 = vpack.c.b16 %v5000, %v4996
        %v5081 = vpack.c.b16 %v5001, %v4997
        %v5082 = vpack.c.b16 %v5002, %v4998
        %v5083 = vpack.c.b16 %v5007, %v5003
        %v5084 = vpack.c.b16 %v5008, %v5004
        %v5085 = vpack.c.b16 %v5009, %v5005
        %v5086 = vpack.c.b16 %v5010, %v5006
        %v5087 = vpack.c.b16 %v5015, %v5011
        %v5088 = vpack.c.b16 %v5016, %v5012
        %v5089 = vpack.c.b16 %v5017, %v5013
        %v5090 = vpack.c.b16 %v5018, %v5014
        %v5091 = vpack.c.b16 %v5023, %v5019
        %v5092 = vpack.c.b16 %v5024, %v5020
        %v5093 = vpack.c.b16 %v5025, %v5021
        %v5094 = vpack.c.b16 %v5026, %v5022
        %v5095 = vpack.c.b16 %v5031, %v5027
        %v5096 = vpack.c.b16 %v5032, %v5028
        %v5097 = vpack.c.b16 %v5033, %v5029
        %v5098 = vpack.c.b16 %v5034, %v5030
        %v5099 = vpack.c.b16 %v5039, %v5035
        %v5100 = vpack.c.b16 %v5040, %v5036
        %v5101 = vpack.c.b16 %v5041, %v5037
        %v5102 = vpack.c.b16 %v5042, %v5038
        %v5103 = vpack.c.b16 %v5047, %v5043
        %v5104 = vpack.c.b16 %v5048, %v5044
        %v5105 = vpack.c.b16 %v5049, %v5045
        %v5106 = vpack.c.b16 %v5050, %v5046
        %v5164 = vsel %vm1655, %v4813, 0
        %v5167 = vsel %vm1655, %v4815, 0
        %v5170 = vsel %vm1655, %v4817, 0
        %v5173 = vsel %vm1655, %v4819, 0
        %v5176 = vsel %vm1655, %v4821, 0
        %v5179 = vsel %vm1655, %v4823, 0
        %v5182 = vsel %vm1655, %v4825, 0
        %5184 = vmatpush.bf16.msra.mxu0 %v5079
        %5185 = vmatpush.bf16.msra.mxu0 %v5075
        %5186 = vmatpush.bf16.msra.mxu0 %v5071
        %5187 = vmatpush.bf16.msra.mxu0 %v5067
        %5188 = vmatpush.bf16.msra.mxu0 %v5063
        %5189 = vmatpush.bf16.msra.mxu0 %v5059
        %5190 = vmatpush.bf16.msra.mxu0 %v5055
        %5191 = vmatpush.bf16.msra.mxu0 %v5051
        %5192 = vmatmul.bf16.gmra.mxu0 %v4812
        %v5193 = vpop.f32.mrf.mxu0
        %v5194 = vadd.f32 0.0, %v5193
        %v5195 = vpop.f32.mrf.mxu0
        %v5196 = vadd.f32 0.0, %v5195
        %5197 = vmatmul.bf16.gmra.mxu0 %v4814
        %v5198 = vpop.f32.mrf.mxu0
        %v5199 = vadd.f32 0.0, %v5198
        %v5200 = vpop.f32.mrf.mxu0
        %v5201 = vadd.f32 0.0, %v5200
        %5202 = vmatmul.bf16.gmra.mxu0 %v4816
        %v5203 = vpop.f32.mrf.mxu0
        %v5204 = vadd.f32 0.0, %v5203
        %v5205 = vpop.f32.mrf.mxu0
        %v5206 = vadd.f32 0.0, %v5205
        %5207 = vmatmul.bf16.gmra.mxu0 %v4818
        %v5208 = vpop.f32.mrf.mxu0
        %v5209 = vadd.f32 0.0, %v5208
        %v5210 = vpop.f32.mrf.mxu0
        %v5211 = vadd.f32 0.0, %v5210
        %5212 = vmatmul.bf16.gmra.mxu0 %v4820
        %v5213 = vpop.f32.mrf.mxu0
        %v5214 = vadd.f32 0.0, %v5213
        %v5215 = vpop.f32.mrf.mxu0
        %v5216 = vadd.f32 0.0, %v5215
        %5217 = vmatmul.bf16.gmra.mxu0 %v4822
        %v5218 = vpop.f32.mrf.mxu0
        %v5219 = vadd.f32 0.0, %v5218
        %v5220 = vpop.f32.mrf.mxu0
        %v5221 = vadd.f32 0.0, %v5220
        %5222 = vmatmul.bf16.gmra.mxu0 %v4824
        %v5223 = vpop.f32.mrf.mxu0
        %v5224 = vadd.f32 0.0, %v5223
        %v5225 = vpop.f32.mrf.mxu0
        %v5226 = vadd.f32 0.0, %v5225
        %5227 = vdwg.mxu0
        %5228 = vmatpush.bf16.msra.mxu0 0
        %5229 = vmatpush.bf16.msra.mxu0 0
        %5230 = vmatpush.bf16.msra.mxu0 %v5103
        %5231 = vmatpush.bf16.msra.mxu0 %v5099
        %5232 = vmatpush.bf16.msra.mxu0 %v5095
        %5233 = vmatpush.bf16.msra.mxu0 %v5091
        %5234 = vmatpush.bf16.msra.mxu0 %v5087
        %5235 = vmatpush.bf16.msra.mxu0 %v5083
        %5236 = vmatmul.bf16.gmra.mxu0 %v5164
        %v5237 = vpop.f32.mrf.mxu0
        %v5238 = vadd.f32 %v5194, %v5237
        %v5239 = vpop.f32.mrf.mxu0
        %v5240 = vadd.f32 %v5196, %v5239
        %5241 = vmatmul.bf16.gmra.mxu0 %v5167
        %v5242 = vpop.f32.mrf.mxu0
        %v5243 = vadd.f32 %v5199, %v5242
        %v5244 = vpop.f32.mrf.mxu0
        %v5245 = vadd.f32 %v5201, %v5244
        %5246 = vmatmul.bf16.gmra.mxu0 %v5170
        %v5247 = vpop.f32.mrf.mxu0
        %v5248 = vadd.f32 %v5204, %v5247
        %v5249 = vpop.f32.mrf.mxu0
        %v5250 = vadd.f32 %v5206, %v5249
        %5251 = vmatmul.bf16.gmra.mxu0 %v5173
        %v5252 = vpop.f32.mrf.mxu0
        %v5253 = vadd.f32 %v5209, %v5252
        %v5254 = vpop.f32.mrf.mxu0
        %v5255 = vadd.f32 %v5211, %v5254
        %5256 = vmatmul.bf16.gmra.mxu0 %v5176
        %v5257 = vpop.f32.mrf.mxu0
        %v5258 = vadd.f32 %v5214, %v5257
        %v5259 = vpop.f32.mrf.mxu0
        %v5260 = vadd.f32 %v5216, %v5259
        %5261 = vmatmul.bf16.gmra.mxu0 %v5179
        %v5262 = vpop.f32.mrf.mxu0
        %v5263 = vadd.f32 %v5219, %v5262
        %v5264 = vpop.f32.mrf.mxu0
        %v5265 = vadd.f32 %v5221, %v5264
        %5266 = vmatmul.bf16.gmra.mxu0 %v5182
        %v5267 = vpop.f32.mrf.mxu0
        %v5268 = vadd.f32 %v5224, %v5267
        %v5269 = vpop.f32.mrf.mxu0
        %v5270 = vadd.f32 %v5226, %v5269
        %5271 = vdwg.mxu0
        %5272 = vmatpush.bf16.msra.mxu0 %v5080
        %5273 = vmatpush.bf16.msra.mxu0 %v5076
        %5274 = vmatpush.bf16.msra.mxu0 %v5072
        %5275 = vmatpush.bf16.msra.mxu0 %v5068
        %5276 = vmatpush.bf16.msra.mxu0 %v5064
        %5277 = vmatpush.bf16.msra.mxu0 %v5060
        %5278 = vmatpush.bf16.msra.mxu0 %v5056
        %5279 = vmatpush.bf16.msra.mxu0 %v5052
        %5280 = vmatmul.bf16.gmra.mxu0 %v4812
        %v5281 = vpop.f32.mrf.mxu0
        %v5282 = vadd.f32 0.0, %v5281
        %v5283 = vpop.f32.mrf.mxu0
        %v5284 = vadd.f32 0.0, %v5283
        %5285 = vmatmul.bf16.gmra.mxu0 %v4814
        %v5286 = vpop.f32.mrf.mxu0
        %v5287 = vadd.f32 0.0, %v5286
        %v5288 = vpop.f32.mrf.mxu0
        %v5289 = vadd.f32 0.0, %v5288
        %5290 = vmatmul.bf16.gmra.mxu0 %v4816
        %v5291 = vpop.f32.mrf.mxu0
        %v5292 = vadd.f32 0.0, %v5291
        %v5293 = vpop.f32.mrf.mxu0
        %v5294 = vadd.f32 0.0, %v5293
        %5295 = vmatmul.bf16.gmra.mxu0 %v4818
        %v5296 = vpop.f32.mrf.mxu0
        %v5297 = vadd.f32 0.0, %v5296
        %v5298 = vpop.f32.mrf.mxu0
        %v5299 = vadd.f32 0.0, %v5298
        %5300 = vmatmul.bf16.gmra.mxu0 %v4820
        %v5301 = vpop.f32.mrf.mxu0
        %v5302 = vadd.f32 0.0, %v5301
        %v5303 = vpop.f32.mrf.mxu0
        %v5304 = vadd.f32 0.0, %v5303
        %5305 = vmatmul.bf16.gmra.mxu0 %v4822
        %v5306 = vpop.f32.mrf.mxu0
        %v5307 = vadd.f32 0.0, %v5306
        %v5308 = vpop.f32.mrf.mxu0
        %v5309 = vadd.f32 0.0, %v5308
        %5310 = vmatmul.bf16.gmra.mxu0 %v4824
        %v5311 = vpop.f32.mrf.mxu0
        %v5312 = vadd.f32 0.0, %v5311
        %v5313 = vpop.f32.mrf.mxu0
        %v5314 = vadd.f32 0.0, %v5313
        %5315 = vdwg.mxu0
        %5316 = vmatpush.bf16.msra.mxu0 0
        %5317 = vmatpush.bf16.msra.mxu0 0
        %5318 = vmatpush.bf16.msra.mxu0 %v5104
        %5319 = vmatpush.bf16.msra.mxu0 %v5100
        %5320 = vmatpush.bf16.msra.mxu0 %v5096
        %5321 = vmatpush.bf16.msra.mxu0 %v5092
        %5322 = vmatpush.bf16.msra.mxu0 %v5088
        %5323 = vmatpush.bf16.msra.mxu0 %v5084
        %5324 = vmatmul.bf16.gmra.mxu0 %v5164
        %v5325 = vpop.f32.mrf.mxu0
        %v5326 = vadd.f32 %v5282, %v5325
        %v5327 = vpop.f32.mrf.mxu0
        %v5328 = vadd.f32 %v5284, %v5327
        %5329 = vmatmul.bf16.gmra.mxu0 %v5167
        %v5330 = vpop.f32.mrf.mxu0
        %v5331 = vadd.f32 %v5287, %v5330
        %v5332 = vpop.f32.mrf.mxu0
        %v5333 = vadd.f32 %v5289, %v5332
        %5334 = vmatmul.bf16.gmra.mxu0 %v5170
        %v5335 = vpop.f32.mrf.mxu0
        %v5336 = vadd.f32 %v5292, %v5335
        %v5337 = vpop.f32.mrf.mxu0
        %v5338 = vadd.f32 %v5294, %v5337
        %5339 = vmatmul.bf16.gmra.mxu0 %v5173
        %v5340 = vpop.f32.mrf.mxu0
        %v5341 = vadd.f32 %v5297, %v5340
        %v5342 = vpop.f32.mrf.mxu0
        %v5343 = vadd.f32 %v5299, %v5342
        %5344 = vmatmul.bf16.gmra.mxu0 %v5176
        %v5345 = vpop.f32.mrf.mxu0
        %v5346 = vadd.f32 %v5302, %v5345
        %v5347 = vpop.f32.mrf.mxu0
        %v5348 = vadd.f32 %v5304, %v5347
        %5349 = vmatmul.bf16.gmra.mxu0 %v5179
        %v5350 = vpop.f32.mrf.mxu0
        %v5351 = vadd.f32 %v5307, %v5350
        %v5352 = vpop.f32.mrf.mxu0
        %v5353 = vadd.f32 %v5309, %v5352
        %5354 = vmatmul.bf16.gmra.mxu0 %v5182
        %v5355 = vpop.f32.mrf.mxu0
        %v5356 = vadd.f32 %v5312, %v5355
        %v5357 = vpop.f32.mrf.mxu0
        %v5358 = vadd.f32 %v5314, %v5357
        %5359 = vdwg.mxu0
        %5360 = vmatpush.bf16.msra.mxu0 %v5081
        %5361 = vmatpush.bf16.msra.mxu0 %v5077
        %5362 = vmatpush.bf16.msra.mxu0 %v5073
        %5363 = vmatpush.bf16.msra.mxu0 %v5069
        %5364 = vmatpush.bf16.msra.mxu0 %v5065
        %5365 = vmatpush.bf16.msra.mxu0 %v5061
        %5366 = vmatpush.bf16.msra.mxu0 %v5057
        %5367 = vmatpush.bf16.msra.mxu0 %v5053
        %5368 = vmatmul.bf16.gmra.mxu0 %v4812
        %v5369 = vpop.f32.mrf.mxu0
        %v5370 = vadd.f32 0.0, %v5369
        %v5371 = vpop.f32.mrf.mxu0
        %v5372 = vadd.f32 0.0, %v5371
        %5373 = vmatmul.bf16.gmra.mxu0 %v4814
        %v5374 = vpop.f32.mrf.mxu0
        %v5375 = vadd.f32 0.0, %v5374
        %v5376 = vpop.f32.mrf.mxu0
        %v5377 = vadd.f32 0.0, %v5376
        %5378 = vmatmul.bf16.gmra.mxu0 %v4816
        %v5379 = vpop.f32.mrf.mxu0
        %v5380 = vadd.f32 0.0, %v5379
        %v5381 = vpop.f32.mrf.mxu0
        %v5382 = vadd.f32 0.0, %v5381
        %5383 = vmatmul.bf16.gmra.mxu0 %v4818
        %v5384 = vpop.f32.mrf.mxu0
        %v5385 = vadd.f32 0.0, %v5384
        %v5386 = vpop.f32.mrf.mxu0
        %v5387 = vadd.f32 0.0, %v5386
        %5388 = vmatmul.bf16.gmra.mxu0 %v4820
        %v5389 = vpop.f32.mrf.mxu0
        %v5390 = vadd.f32 0.0, %v5389
        %v5391 = vpop.f32.mrf.mxu0
        %v5392 = vadd.f32 0.0, %v5391
        %5393 = vmatmul.bf16.gmra.mxu0 %v4822
        %v5394 = vpop.f32.mrf.mxu0
        %v5395 = vadd.f32 0.0, %v5394
        %v5396 = vpop.f32.mrf.mxu0
        %v5397 = vadd.f32 0.0, %v5396
        %5398 = vmatmul.bf16.gmra.mxu0 %v4824
        %v5399 = vpop.f32.mrf.mxu0
        %v5400 = vadd.f32 0.0, %v5399
        %v5401 = vpop.f32.mrf.mxu0
        %v5402 = vadd.f32 0.0, %v5401
        %5403 = vdwg.mxu0
        %5404 = vmatpush.bf16.msra.mxu0 0
        %5405 = vmatpush.bf16.msra.mxu0 0
        %5406 = vmatpush.bf16.msra.mxu0 %v5105
        %5407 = vmatpush.bf16.msra.mxu0 %v5101
        %5408 = vmatpush.bf16.msra.mxu0 %v5097
        %5409 = vmatpush.bf16.msra.mxu0 %v5093
        %5410 = vmatpush.bf16.msra.mxu0 %v5089
        %5411 = vmatpush.bf16.msra.mxu0 %v5085
        %5412 = vmatmul.bf16.gmra.mxu0 %v5164
        %v5413 = vpop.f32.mrf.mxu0
        %v5414 = vadd.f32 %v5370, %v5413
        %v5415 = vpop.f32.mrf.mxu0
        %v5416 = vadd.f32 %v5372, %v5415
        %5417 = vmatmul.bf16.gmra.mxu0 %v5167
        %v5418 = vpop.f32.mrf.mxu0
        %v5419 = vadd.f32 %v5375, %v5418
        %v5420 = vpop.f32.mrf.mxu0
        %v5421 = vadd.f32 %v5377, %v5420
        %5422 = vmatmul.bf16.gmra.mxu0 %v5170
        %v5423 = vpop.f32.mrf.mxu0
        %v5424 = vadd.f32 %v5380, %v5423
        %v5425 = vpop.f32.mrf.mxu0
        %v5426 = vadd.f32 %v5382, %v5425
        %5427 = vmatmul.bf16.gmra.mxu0 %v5173
        %v5428 = vpop.f32.mrf.mxu0
        %v5429 = vadd.f32 %v5385, %v5428
        %v5430 = vpop.f32.mrf.mxu0
        %v5431 = vadd.f32 %v5387, %v5430
        %5432 = vmatmul.bf16.gmra.mxu0 %v5176
        %v5433 = vpop.f32.mrf.mxu0
        %v5434 = vadd.f32 %v5390, %v5433
        %v5435 = vpop.f32.mrf.mxu0
        %v5436 = vadd.f32 %v5392, %v5435
        %5437 = vmatmul.bf16.gmra.mxu0 %v5179
        %v5438 = vpop.f32.mrf.mxu0
        %v5439 = vadd.f32 %v5395, %v5438
        %v5440 = vpop.f32.mrf.mxu0
        %v5441 = vadd.f32 %v5397, %v5440
        %5442 = vmatmul.bf16.gmra.mxu0 %v5182
        %v5443 = vpop.f32.mrf.mxu0
        %v5444 = vadd.f32 %v5400, %v5443
        %v5445 = vpop.f32.mrf.mxu0
        %v5446 = vadd.f32 %v5402, %v5445
        %5447 = vdwg.mxu0
        %5448 = vmatpush.bf16.msra.mxu0 %v5082
        %5449 = vmatpush.bf16.msra.mxu0 %v5078
        %5450 = vmatpush.bf16.msra.mxu0 %v5074
        %5451 = vmatpush.bf16.msra.mxu0 %v5070
        %5452 = vmatpush.bf16.msra.mxu0 %v5066
        %5453 = vmatpush.bf16.msra.mxu0 %v5062
        %5454 = vmatpush.bf16.msra.mxu0 %v5058
        %5455 = vmatpush.bf16.msra.mxu0 %v5054
        %5456 = vmatmul.bf16.gmra.mxu0 %v4812
        %v5457 = vpop.f32.mrf.mxu0
        %v5458 = vadd.f32 0.0, %v5457
        %v5459 = vpop.f32.mrf.mxu0
        %v5460 = vadd.f32 0.0, %v5459
        %5461 = vmatmul.bf16.gmra.mxu0 %v4814
        %v5462 = vpop.f32.mrf.mxu0
        %v5463 = vadd.f32 0.0, %v5462
        %v5464 = vpop.f32.mrf.mxu0
        %v5465 = vadd.f32 0.0, %v5464
        %5466 = vmatmul.bf16.gmra.mxu0 %v4816
        %v5467 = vpop.f32.mrf.mxu0
        %v5468 = vadd.f32 0.0, %v5467
        %v5469 = vpop.f32.mrf.mxu0
        %v5470 = vadd.f32 0.0, %v5469
        %5471 = vmatmul.bf16.gmra.mxu0 %v4818
        %v5472 = vpop.f32.mrf.mxu0
        %v5473 = vadd.f32 0.0, %v5472
        %v5474 = vpop.f32.mrf.mxu0
        %v5475 = vadd.f32 0.0, %v5474
        %5476 = vmatmul.bf16.gmra.mxu0 %v4820
        %v5477 = vpop.f32.mrf.mxu0
        %v5478 = vadd.f32 0.0, %v5477
        %v5479 = vpop.f32.mrf.mxu0
        %v5480 = vadd.f32 0.0, %v5479
        %5481 = vmatmul.bf16.gmra.mxu0 %v4822
        %v5482 = vpop.f32.mrf.mxu0
        %v5483 = vadd.f32 0.0, %v5482
        %v5484 = vpop.f32.mrf.mxu0
        %v5485 = vadd.f32 0.0, %v5484
        %5486 = vmatmul.bf16.gmra.mxu0 %v4824
        %v5487 = vpop.f32.mrf.mxu0
        %v5488 = vadd.f32 0.0, %v5487
        %v5489 = vpop.f32.mrf.mxu0
        %v5490 = vadd.f32 0.0, %v5489
        %5491 = vdwg.mxu0
        %5492 = vmatpush.bf16.msra.mxu0 0
        %5493 = vmatpush.bf16.msra.mxu0 0
        %5494 = vmatpush.bf16.msra.mxu0 %v5106
        %5495 = vmatpush.bf16.msra.mxu0 %v5102
        %5496 = vmatpush.bf16.msra.mxu0 %v5098
        %5497 = vmatpush.bf16.msra.mxu0 %v5094
        %5498 = vmatpush.bf16.msra.mxu0 %v5090
        %5499 = vmatpush.bf16.msra.mxu0 %v5086
        %5500 = vmatmul.bf16.gmra.mxu0 %v5164
        %v5501 = vpop.f32.mrf.mxu0
        %v5502 = vadd.f32 %v5458, %v5501
        %v5503 = vpop.f32.mrf.mxu0
        %v5504 = vadd.f32 %v5460, %v5503
        %5505 = vmatmul.bf16.gmra.mxu0 %v5167
        %v5506 = vpop.f32.mrf.mxu0
        %v5507 = vadd.f32 %v5463, %v5506
        %v5508 = vpop.f32.mrf.mxu0
        %v5509 = vadd.f32 %v5465, %v5508
        %5510 = vmatmul.bf16.gmra.mxu0 %v5170
        %v5511 = vpop.f32.mrf.mxu0
        %v5512 = vadd.f32 %v5468, %v5511
        %v5513 = vpop.f32.mrf.mxu0
        %v5514 = vadd.f32 %v5470, %v5513
        %5515 = vmatmul.bf16.gmra.mxu0 %v5173
        %v5516 = vpop.f32.mrf.mxu0
        %v5517 = vadd.f32 %v5473, %v5516
        %v5518 = vpop.f32.mrf.mxu0
        %v5519 = vadd.f32 %v5475, %v5518
        %5520 = vmatmul.bf16.gmra.mxu0 %v5176
        %v5521 = vpop.f32.mrf.mxu0
        %v5522 = vadd.f32 %v5478, %v5521
        %v5523 = vpop.f32.mrf.mxu0
        %v5524 = vadd.f32 %v5480, %v5523
        %5525 = vmatmul.bf16.gmra.mxu0 %v5179
        %v5526 = vpop.f32.mrf.mxu0
        %v5527 = vadd.f32 %v5483, %v5526
        %v5528 = vpop.f32.mrf.mxu0
        %v5529 = vadd.f32 %v5485, %v5528
        %5530 = vmatmul.bf16.gmra.mxu0 %v5182
        %v5531 = vpop.f32.mrf.mxu0
        %v5532 = vadd.f32 %v5488, %v5531
        %v5533 = vpop.f32.mrf.mxu0
        %v5534 = vadd.f32 %v5490, %v5533
        %5535 = vdwg.mxu0
        %v5536 = vadd.f32 %v4728, %v5238
        %v5537 = vadd.f32 %v4729, %v5326
        %v5538 = vadd.f32 %v4730, %v5414
        %v5539 = vadd.f32 %v4731, %v5502
        %v5540 = vadd.f32 %v4732, %v5240
        %v5541 = vadd.f32 %v4733, %v5328
        %v5542 = vadd.f32 %v4734, %v5416
        %v5543 = vadd.f32 %v4735, %v5504
        %v5544 = vadd.f32 %v4736, %v5243
        %v5545 = vadd.f32 %v4737, %v5331
        %v5546 = vadd.f32 %v4738, %v5419
        %v5547 = vadd.f32 %v4739, %v5507
        %v5548 = vadd.f32 %v4740, %v5245
        %v5549 = vadd.f32 %v4741, %v5333
        %v5550 = vadd.f32 %v4742, %v5421
        %v5551 = vadd.f32 %v4743, %v5509
        %v5552 = vadd.f32 %v4744, %v5248
        %v5553 = vadd.f32 %v4745, %v5336
        %v5554 = vadd.f32 %v4746, %v5424
        %v5555 = vadd.f32 %v4747, %v5512
        %v5556 = vadd.f32 %v4748, %v5250
        %v5557 = vadd.f32 %v4749, %v5338
        %v5558 = vadd.f32 %v4750, %v5426
        %v5559 = vadd.f32 %v4751, %v5514
        %v5560 = vadd.f32 %v4752, %v5253
        %v5561 = vadd.f32 %v4753, %v5341
        %v5562 = vadd.f32 %v4754, %v5429
        %v5563 = vadd.f32 %v4755, %v5517
        %v5564 = vadd.f32 %v4756, %v5255
        %v5565 = vadd.f32 %v4757, %v5343
        %v5566 = vadd.f32 %v4758, %v5431
        %v5567 = vadd.f32 %v4759, %v5519
        %v5568 = vadd.f32 %v4760, %v5258
        %v5569 = vadd.f32 %v4761, %v5346
        %v5570 = vadd.f32 %v4762, %v5434
        %v5571 = vadd.f32 %v4763, %v5522
        %v5572 = vadd.f32 %v4764, %v5260
        %v5573 = vadd.f32 %v4765, %v5348
        %v5574 = vadd.f32 %v4766, %v5436
        %v5575 = vadd.f32 %v4767, %v5524
        %v5576 = vadd.f32 %v4768, %v5263
        %v5577 = vadd.f32 %v4769, %v5351
        %v5578 = vadd.f32 %v4770, %v5439
        %v5579 = vadd.f32 %v4771, %v5527
        %v5580 = vadd.f32 %v4772, %v5265
        %v5581 = vadd.f32 %v4773, %v5353
        %v5582 = vadd.f32 %v4774, %v5441
        %v5583 = vadd.f32 %v4775, %v5529
        %v5584 = vadd.f32 %v4776, %v5268
        %v5585 = vadd.f32 %v4777, %v5356
        %v5586 = vadd.f32 %v4778, %v5444
        %v5587 = vadd.f32 %v4779, %v5532
        %v5588 = vadd.f32 %v4780, %v5270
        %v5589 = vadd.f32 %v4781, %v5358
        %v5590 = vadd.f32 %v4782, %v5446
        %v5591 = vadd.f32 %v4783, %v5534
        %v5592 = vld [vmem:[%s4] sm:$0xf]
        %v5594 = vperm.slane %v5592, 0
        %v5595 = vperm.slane %v5592, 1
        %v5596 = vperm.slane %v5592, 2
        %v5597 = vperm.slane %v5592, 3
        %v5602 = vadd.f32 %v5536, %v5594
        %v5603 = vadd.f32 %v5537, %v5595
        %v5604 = vadd.f32 %v5538, %v5596
        %v5605 = vadd.f32 %v5539, %v5597
        %v5606 = vadd.f32 %v5540, %v5594
        %v5607 = vadd.f32 %v5541, %v5595
        %v5608 = vadd.f32 %v5542, %v5596
        %v5609 = vadd.f32 %v5543, %v5597
        %v5610 = vadd.f32 %v5544, %v5594
        %v5611 = vadd.f32 %v5545, %v5595
        %v5612 = vadd.f32 %v5546, %v5596
        %v5613 = vadd.f32 %v5547, %v5597
        %v5614 = vadd.f32 %v5548, %v5594
        %v5615 = vadd.f32 %v5549, %v5595
        %v5616 = vadd.f32 %v5550, %v5596
        %v5617 = vadd.f32 %v5551, %v5597
        %v5618 = vadd.f32 %v5552, %v5594
        %v5619 = vadd.f32 %v5553, %v5595
        %v5620 = vadd.f32 %v5554, %v5596
        %v5621 = vadd.f32 %v5555, %v5597
        %v5622 = vadd.f32 %v5556, %v5594
        %v5623 = vadd.f32 %v5557, %v5595
        %v5624 = vadd.f32 %v5558, %v5596
        %v5625 = vadd.f32 %v5559, %v5597
        %v5626 = vadd.f32 %v5560, %v5594
        %v5627 = vadd.f32 %v5561, %v5595
        %v5628 = vadd.f32 %v5562, %v5596
        %v5629 = vadd.f32 %v5563, %v5597
        %v5630 = vadd.f32 %v5564, %v5594
        %v5631 = vadd.f32 %v5565, %v5595
        %v5632 = vadd.f32 %v5566, %v5596
        %v5633 = vadd.f32 %v5567, %v5597
        %v5634 = vadd.f32 %v5568, %v5594
        %v5635 = vadd.f32 %v5569, %v5595
        %v5636 = vadd.f32 %v5570, %v5596
        %v5637 = vadd.f32 %v5571, %v5597
        %v5638 = vadd.f32 %v5572, %v5594
        %v5639 = vadd.f32 %v5573, %v5595
        %v5640 = vadd.f32 %v5574, %v5596
        %v5641 = vadd.f32 %v5575, %v5597
        %v5642 = vadd.f32 %v5576, %v5594
        %v5643 = vadd.f32 %v5577, %v5595
        %v5644 = vadd.f32 %v5578, %v5596
        %v5645 = vadd.f32 %v5579, %v5597
        %v5646 = vadd.f32 %v5580, %v5594
        %v5647 = vadd.f32 %v5581, %v5595
        %v5648 = vadd.f32 %v5582, %v5596
        %v5649 = vadd.f32 %v5583, %v5597
        %v5650 = vadd.f32 %v5584, %v5594
        %v5651 = vadd.f32 %v5585, %v5595
        %v5652 = vadd.f32 %v5586, %v5596
        %v5653 = vadd.f32 %v5587, %v5597
        %v5654 = vadd.f32 %v5588, %v5594
        %v5655 = vadd.f32 %v5589, %v5595
        %v5656 = vadd.f32 %v5590, %v5596
        %v5657 = vadd.f32 %v5591, %v5597
        %v5658 = vmax.f32 %v5602, 0.0
        %v5659 = vmax.f32 %v5603, 0.0
        %v5660 = vmax.f32 %v5604, 0.0
        %v5661 = vmax.f32 %v5605, 0.0
        %v5662 = vmax.f32 %v5606, 0.0
        %v5663 = vmax.f32 %v5607, 0.0
        %v5664 = vmax.f32 %v5608, 0.0
        %v5665 = vmax.f32 %v5609, 0.0
        %v5666 = vmax.f32 %v5610, 0.0
        %v5667 = vmax.f32 %v5611, 0.0
        %v5668 = vmax.f32 %v5612, 0.0
        %v5669 = vmax.f32 %v5613, 0.0
        %v5670 = vmax.f32 %v5614, 0.0
        %v5671 = vmax.f32 %v5615, 0.0
        %v5672 = vmax.f32 %v5616, 0.0
        %v5673 = vmax.f32 %v5617, 0.0
        %v5674 = vmax.f32 %v5618, 0.0
        %v5675 = vmax.f32 %v5619, 0.0
        %v5676 = vmax.f32 %v5620, 0.0
        %v5677 = vmax.f32 %v5621, 0.0
        %v5678 = vmax.f32 %v5622, 0.0
        %v5679 = vmax.f32 %v5623, 0.0
        %v5680 = vmax.f32 %v5624, 0.0
        %v5681 = vmax.f32 %v5625, 0.0
        %v5682 = vmax.f32 %v5626, 0.0
        %v5683 = vmax.f32 %v5627, 0.0
        %v5684 = vmax.f32 %v5628, 0.0
        %v5685 = vmax.f32 %v5629, 0.0
        %v5686 = vmax.f32 %v5630, 0.0
        %v5687 = vmax.f32 %v5631, 0.0
        %v5688 = vmax.f32 %v5632, 0.0
        %v5689 = vmax.f32 %v5633, 0.0
        %v5690 = vmax.f32 %v5634, 0.0
        %v5691 = vmax.f32 %v5635, 0.0
        %v5692 = vmax.f32 %v5636, 0.0
        %v5693 = vmax.f32 %v5637, 0.0
        %v5694 = vmax.f32 %v5638, 0.0
        %v5695 = vmax.f32 %v5639, 0.0
        %v5696 = vmax.f32 %v5640, 0.0
        %v5697 = vmax.f32 %v5641, 0.0
        %v5698 = vmax.f32 %v5642, 0.0
        %v5699 = vmax.f32 %v5643, 0.0
        %v5700 = vmax.f32 %v5644, 0.0
        %v5701 = vmax.f32 %v5645, 0.0
        %v5702 = vmax.f32 %v5646, 0.0
        %v5703 = vmax.f32 %v5647, 0.0
        %v5704 = vmax.f32 %v5648, 0.0
        %v5705 = vmax.f32 %v5649, 0.0
        %v5706 = vmax.f32 %v5650, 0.0
        %v5707 = vmax.f32 %v5651, 0.0
        %v5708 = vmax.f32 %v5652, 0.0
        %v5709 = vmax.f32 %v5653, 0.0
        %v5710 = vmax.f32 %v5654, 0.0
        %v5711 = vmax.f32 %v5655, 0.0
        %v5712 = vmax.f32 %v5656, 0.0
        %v5713 = vmax.f32 %v5657, 0.0
        %v5714 = vmax.f32 %v5658, %v5660
        %v5715 = vmax.f32 %v5659, %v5661
        %v5716 = vmax.f32 %v5662, %v5664
        %v5717 = vmax.f32 %v5663, %v5665
        %v5718 = vmax.f32 %v5666, %v5668
        %v5719 = vmax.f32 %v5667, %v5669
        %v5720 = vmax.f32 %v5670, %v5672
        %v5721 = vmax.f32 %v5671, %v5673
        %v5722 = vmax.f32 %v5674, %v5676
        %v5723 = vmax.f32 %v5675, %v5677
        %v5724 = vmax.f32 %v5678, %v5680
        %v5725 = vmax.f32 %v5679, %v5681
        %v5726 = vmax.f32 %v5682, %v5684
        %v5727 = vmax.f32 %v5683, %v5685
        %v5728 = vmax.f32 %v5686, %v5688
        %v5729 = vmax.f32 %v5687, %v5689
        %v5730 = vmax.f32 %v5690, %v5692
        %v5731 = vmax.f32 %v5691, %v5693
        %v5732 = vmax.f32 %v5694, %v5696
        %v5733 = vmax.f32 %v5695, %v5697
        %v5734 = vmax.f32 %v5698, %v5700
        %v5735 = vmax.f32 %v5699, %v5701
        %v5736 = vmax.f32 %v5702, %v5704
        %v5737 = vmax.f32 %v5703, %v5705
        %v5738 = vmax.f32 %v5706, %v5708
        %v5739 = vmax.f32 %v5707, %v5709
        %v5740 = vmax.f32 %v5710, %v5712
        %v5741 = vmax.f32 %v5711, %v5713
        %v5742 = vmax.f32 %v5714, %v5716
        %v5743 = vmax.f32 %v5715, %v5717
        %5744 = vst [vmem:[#allocation3] sm:$0xff] %v5742
        %5745 = vst [vmem:[#allocation3 + $0x8] sm:$0xff] %v5743
        %v5746 = vmax.f32 %v5718, %v5720
        %v5747 = vmax.f32 %v5719, %v5721
        %5748 = vst [vmem:[#allocation3 + $0x10] sm:$0xff] %v5746
        %5749 = vst [vmem:[#allocation3 + $0x18] sm:$0xff] %v5747
        %v5750 = vmax.f32 %v5722, %v5724
        %v5751 = vmax.f32 %v5723, %v5725
        %5752 = vst [vmem:[#allocation3 + $0x20] sm:$0xff] %v5750
        %5753 = vst [vmem:[#allocation3 + $0x28] sm:$0xff] %v5751
        %v5754 = vmax.f32 %v5726, %v5728
        %v5755 = vmax.f32 %v5727, %v5729
        %5756 = vst [vmem:[#allocation3 + $0x30] sm:$0xff] %v5754
        %5757 = vst [vmem:[#allocation3 + $0x38] sm:$0xff] %v5755
        %v5758 = vmax.f32 %v5730, %v5732
        %v5759 = vmax.f32 %v5731, %v5733
        %5760 = vst [vmem:[#allocation3 + $0x40] sm:$0xff] %v5758
        %5761 = vst [vmem:[#allocation3 + $0x48] sm:$0xff] %v5759
        %v5762 = vmax.f32 %v5734, %v5736
        %v5763 = vmax.f32 %v5735, %v5737
        %5764 = vst [vmem:[#allocation3 + $0x50] sm:$0xff] %v5762
        %5765 = vst [vmem:[#allocation3 + $0x58] sm:$0xff] %v5763
        %v5766 = vmax.f32 %v5738, %v5740
        %v5767 = vmax.f32 %v5739, %v5741
        %5768 = vst [vmem:[#allocation3 + $0x60] sm:$0xff] %v5766
        %5769 = vst [vmem:[#allocation3 + $0x68] sm:$0xff] %v5767
        %v5770 = vld [vmem:[#allocation3] sm:$0xff]
        %v5771 = vld [vmem:[#allocation3 + $0x8] sm:$0xff]
        %v5772 = vld [vmem:[#allocation3 + $0x10] sm:$0xff]
        %v5773 = vld [vmem:[#allocation3 + $0x18] sm:$0xff]
        %v5774 = vld [vmem:[#allocation3 + $0x20] sm:$0xff]
        %v5775 = vld [vmem:[#allocation3 + $0x28] sm:$0xff]
        %v5776 = vld [vmem:[#allocation3 + $0x30] sm:$0xff]
        %v5777 = vld [vmem:[#allocation3 + $0x38] sm:$0xff]
        %v5778 = vld [vmem:[#allocation3 + $0x40] sm:$0xff]
        %v5779 = vld [vmem:[#allocation3 + $0x48] sm:$0xff]
        %v5780 = vld [vmem:[#allocation3 + $0x50] sm:$0xff]
        %v5781 = vld [vmem:[#allocation3 + $0x58] sm:$0xff]
        %v5782 = vld [vmem:[#allocation3 + $0x60] sm:$0xff]
        %v5783 = vld [vmem:[#allocation3 + $0x68] sm:$0xff]
        %v5784 = vpack.c.bf16 %v5770, %v5770
        %v5785 = vpack.c.bf16 %v5771, %v5771
        %v5786 = vpack.c.bf16 %v5772, %v5772
        %v5787 = vpack.c.bf16 %v5773, %v5773
        %v5788 = vpack.c.bf16 %v5774, %v5774
        %v5789 = vpack.c.bf16 %v5775, %v5775
        %v5790 = vpack.c.bf16 %v5776, %v5776
        %v5791 = vpack.c.bf16 %v5777, %v5777
        %v5792 = vpack.c.bf16 %v5778, %v5778
        %v5793 = vpack.c.bf16 %v5779, %v5779
        %v5794 = vpack.c.bf16 %v5780, %v5780
        %v5795 = vpack.c.bf16 %v5781, %v5781
        %v5796 = vpack.c.bf16 %v5782, %v5782
        %v5797 = vpack.c.bf16 %v5783, %v5783
        %v5798 = vld [vmem:[%s5] sm:$0xf]
        %v5799 = vld [vmem:[%s5 + $0x4] sm:$0xf]
        %v5800 = vld [vmem:[%s5 + $0x8] sm:$0xf]
        %v5801 = vld [vmem:[%s5 + $0xc] sm:$0xf]
        %v5802 = vld [vmem:[%s5 + $0x10] sm:$0xf]
        %v5803 = vld [vmem:[%s5 + $0x14] sm:$0xf]
        %v5804 = vld [vmem:[%s5 + $0x18] sm:$0xf]
        %v5805 = vld [vmem:[%s5 + $0x1c] sm:$0xf]
        %v5806 = vld [vmem:[%s5 + $0x20] sm:$0xf]
        %v5807 = vld [vmem:[%s5 + $0x24] sm:$0xf]
        %v5808 = vld [vmem:[%s5 + $0x28] sm:$0xf]
        %v5809 = vld [vmem:[%s5 + $0x2c] sm:$0xf]
        %v5810 = vld [vmem:[%s5 + $0x30] sm:$0xf]
        %v5811 = vld [vmem:[%s5 + $0x34] sm:$0xf]
        %v5812 = vld [vmem:[%s5 + $0x38] sm:$0xf]
        %v5813 = vld [vmem:[%s5 + $0x3c] sm:$0xf]
        %v5814 = vld [vmem:[%s5 + $0x40] sm:$0xf]
        %v5815 = vld [vmem:[%s5 + $0x44] sm:$0xf]
        %v5816 = vld [vmem:[%s5 + $0x48] sm:$0xf]
        %v5817 = vld [vmem:[%s5 + $0x4c] sm:$0xf]
        %v5818 = vld [vmem:[%s5 + $0x50] sm:$0xf]
        %v5819 = vld [vmem:[%s5 + $0x54] sm:$0xf]
        %v5820 = vld [vmem:[%s5 + $0x58] sm:$0xf]
        %v5821 = vld [vmem:[%s5 + $0x5c] sm:$0xf]
        %v5822 = vld [vmem:[%s5 + $0x60] sm:$0xf]
        %v5823 = vld [vmem:[%s5 + $0x64] sm:$0xf]
        %v5824 = vld [vmem:[%s5 + $0x68] sm:$0xf]
        %v5825 = vld [vmem:[%s5 + $0x6c] sm:$0xf]
        %v5826 = vld [vmem:[%s5 + $0x70] sm:$0xf]
        %v5827 = vld [vmem:[%s5 + $0x74] sm:$0xf]
        %v5828 = vld [vmem:[%s5 + $0x78] sm:$0xf]
        %v5829 = vld [vmem:[%s5 + $0x7c] sm:$0xf]
        %v5830 = vld [vmem:[%s5 + $0x80] sm:$0xf]
        %v5831 = vld [vmem:[%s5 + $0x84] sm:$0xf]
        %v5832 = vld [vmem:[%s5 + $0x88] sm:$0xf]
        %v5833 = vld [vmem:[%s5 + $0x8c] sm:$0xf]
        %v5834 = vld [vmem:[%s5 + $0x90] sm:$0xf]
        %v5835 = vld [vmem:[%s5 + $0x94] sm:$0xf]
        %v5836 = vld [vmem:[%s5 + $0x98] sm:$0xf]
        %v5837 = vld [vmem:[%s5 + $0x9c] sm:$0xf]
        %v5838 = vld [vmem:[%s5 + $0xa0] sm:$0xf]
        %v5839 = vld [vmem:[%s5 + $0xa4] sm:$0xf]
        %v5840 = vld [vmem:[%s5 + $0xa8] sm:$0xf]
        %v5841 = vld [vmem:[%s5 + $0xac] sm:$0xf]
        %v5842 = vld [vmem:[%s5 + $0xb0] sm:$0xf]
        %v5843 = vld [vmem:[%s5 + $0xb4] sm:$0xf]
        %v5844 = vld [vmem:[%s5 + $0xb8] sm:$0xf]
        %v5845 = vld [vmem:[%s5 + $0xbc] sm:$0xf]
        %v5846 = vld [vmem:[%s5 + $0xc0] sm:$0xf]
        %v5847 = vld [vmem:[%s5 + $0xc4] sm:$0xf]
        %v5848 = vld [vmem:[%s5 + $0xc8] sm:$0xf]
        %v5849 = vld [vmem:[%s5 + $0xcc] sm:$0xf]
        %v5850 = vld [vmem:[%s5 + $0xd0] sm:$0xf]
        %v5851 = vld [vmem:[%s5 + $0xd4] sm:$0xf]
        %v5852 = vld [vmem:[%s5 + $0xd8] sm:$0xf]
        %v5853 = vld [vmem:[%s5 + $0xdc] sm:$0xf]
        %v5854 = vld [vmem:[%s5 + $0xe0] sm:$0xf]
        %v5855 = vld [vmem:[%s5 + $0xe4] sm:$0xf]
        %v5856 = vld [vmem:[%s5 + $0xe8] sm:$0xf]
        %v5857 = vld [vmem:[%s5 + $0xec] sm:$0xf]
        %v5858 = vld [vmem:[%s5 + $0xf0] sm:$0xf]
        %v5859 = vld [vmem:[%s5 + $0xf4] sm:$0xf]
        %v5860 = vld [vmem:[%s5 + $0xf8] sm:$0xf]
        %v5861 = vld [vmem:[%s5 + $0xfc] sm:$0xf]
        %v5862 = vld [vmem:[%s5 + $0x100] sm:$0xf]
        %v5863 = vld [vmem:[%s5 + $0x104] sm:$0xf]
        %v5864 = vld [vmem:[%s5 + $0x108] sm:$0xf]
        %v5865 = vld [vmem:[%s5 + $0x10c] sm:$0xf]
        %v5866 = vld [vmem:[%s5 + $0x110] sm:$0xf]
        %v5867 = vld [vmem:[%s5 + $0x114] sm:$0xf]
        %v5868 = vld [vmem:[%s5 + $0x118] sm:$0xf]
        %v5869 = vld [vmem:[%s5 + $0x11c] sm:$0xf]
        %v5870 = vld [vmem:[%s5 + $0x120] sm:$0xf]
        %v5871 = vld [vmem:[%s5 + $0x124] sm:$0xf]
        %v5872 = vld [vmem:[%s5 + $0x128] sm:$0xf]
        %v5873 = vld [vmem:[%s5 + $0x12c] sm:$0xf]
        %v5874 = vld [vmem:[%s5 + $0x130] sm:$0xf]
        %v5875 = vld [vmem:[%s5 + $0x134] sm:$0xf]
        %v5876 = vld [vmem:[%s5 + $0x138] sm:$0xf]
        %v5877 = vld [vmem:[%s5 + $0x13c] sm:$0xf]
        %v5878 = vld [vmem:[%s5 + $0x140] sm:$0xf]
        %v5879 = vld [vmem:[%s5 + $0x144] sm:$0xf]
        %v5880 = vld [vmem:[%s5 + $0x148] sm:$0xf]
        %v5881 = vld [vmem:[%s5 + $0x14c] sm:$0xf]
        %v5882 = vld [vmem:[%s5 + $0x150] sm:$0xf]
        %v5883 = vld [vmem:[%s5 + $0x154] sm:$0xf]
        %v5884 = vld [vmem:[%s5 + $0x158] sm:$0xf]
        %v5885 = vld [vmem:[%s5 + $0x15c] sm:$0xf]
        %v5886 = vld [vmem:[%s5 + $0x160] sm:$0xf]
        %v5887 = vld [vmem:[%s5 + $0x164] sm:$0xf]
        %v5888 = vld [vmem:[%s5 + $0x168] sm:$0xf]
        %v5889 = vld [vmem:[%s5 + $0x16c] sm:$0xf]
        %v5890 = vld [vmem:[%s5 + $0x170] sm:$0xf]
        %v5891 = vld [vmem:[%s5 + $0x174] sm:$0xf]
        %v5892 = vld [vmem:[%s5 + $0x178] sm:$0xf]
        %v5893 = vld [vmem:[%s5 + $0x17c] sm:$0xf]
        %v5894 = vld [vmem:[%s5 + $0x180] sm:$0xf]
        %v5895 = vld [vmem:[%s5 + $0x184] sm:$0xf]
        %v5896 = vld [vmem:[%s5 + $0x188] sm:$0xf]
        %v5897 = vld [vmem:[%s5 + $0x18c] sm:$0xf]
        %v5898 = vld [vmem:[%s5 + $0x190] sm:$0xf]
        %v5899 = vld [vmem:[%s5 + $0x194] sm:$0xf]
        %v5900 = vld [vmem:[%s5 + $0x198] sm:$0xf]
        %v5901 = vld [vmem:[%s5 + $0x19c] sm:$0xf]
        %v5902 = vld [vmem:[%s5 + $0x1a0] sm:$0xf]
        %v5903 = vld [vmem:[%s5 + $0x1a4] sm:$0xf]
        %v5904 = vld [vmem:[%s5 + $0x1a8] sm:$0xf]
        %v5905 = vld [vmem:[%s5 + $0x1ac] sm:$0xf]
        %v5906 = vld [vmem:[%s5 + $0x1b0] sm:$0xf]
        %v5907 = vld [vmem:[%s5 + $0x1b4] sm:$0xf]
        %v5908 = vld [vmem:[%s5 + $0x1b8] sm:$0xf]
        %v5909 = vld [vmem:[%s5 + $0x1bc] sm:$0xf]
        %v5910 = vld [vmem:[%s5 + $0x1c0] sm:$0xf]
        %v5911 = vld [vmem:[%s5 + $0x1c4] sm:$0xf]
        %v5912 = vld [vmem:[%s5 + $0x1c8] sm:$0xf]
        %v5913 = vld [vmem:[%s5 + $0x1cc] sm:$0xf]
        %v5914 = vld [vmem:[%s5 + $0x1d0] sm:$0xf]
        %v5915 = vld [vmem:[%s5 + $0x1d4] sm:$0xf]
        %v5916 = vld [vmem:[%s5 + $0x1d8] sm:$0xf]
        %v5917 = vld [vmem:[%s5 + $0x1dc] sm:$0xf]
        %v5918 = vld [vmem:[%s5 + $0x1e0] sm:$0xf]
        %v5919 = vld [vmem:[%s5 + $0x1e4] sm:$0xf]
        %v5920 = vld [vmem:[%s5 + $0x1e8] sm:$0xf]
        %v5921 = vld [vmem:[%s5 + $0x1ec] sm:$0xf]
        %v5922 = vld [vmem:[%s5 + $0x1f0] sm:$0xf]
        %v5923 = vld [vmem:[%s5 + $0x1f4] sm:$0xf]
        %v5924 = vld [vmem:[%s5 + $0x1f8] sm:$0xf]
        %v5925 = vld [vmem:[%s5 + $0x1fc] sm:$0xf]
        %v5926 = vld [vmem:[%s5 + $0x200] sm:$0xf]
        %v5927 = vld [vmem:[%s5 + $0x204] sm:$0xf]
        %v5928 = vld [vmem:[%s5 + $0x208] sm:$0xf]
        %v5929 = vld [vmem:[%s5 + $0x20c] sm:$0xf]
        %v5930 = vld [vmem:[%s5 + $0x210] sm:$0xf]
        %v5931 = vld [vmem:[%s5 + $0x214] sm:$0xf]
        %v5932 = vld [vmem:[%s5 + $0x218] sm:$0xf]
        %v5933 = vld [vmem:[%s5 + $0x21c] sm:$0xf]
        %v5934 = vld [vmem:[%s5 + $0x220] sm:$0xf]
        %v5935 = vld [vmem:[%s5 + $0x224] sm:$0xf]
        %v5936 = vld [vmem:[%s5 + $0x228] sm:$0xf]
        %v5937 = vld [vmem:[%s5 + $0x22c] sm:$0xf]
        %v5938 = vld [vmem:[%s5 + $0x230] sm:$0xf]
        %v5939 = vld [vmem:[%s5 + $0x234] sm:$0xf]
        %v5940 = vld [vmem:[%s5 + $0x238] sm:$0xf]
        %v5941 = vld [vmem:[%s5 + $0x23c] sm:$0xf]
        %v5942 = vld [vmem:[%s5 + $0x240] sm:$0xf]
        %v5943 = vld [vmem:[%s5 + $0x244] sm:$0xf]
        %v5944 = vld [vmem:[%s5 + $0x248] sm:$0xf]
        %v5945 = vld [vmem:[%s5 + $0x24c] sm:$0xf]
        %v5946 = vld [vmem:[%s5 + $0x250] sm:$0xf]
        %v5947 = vld [vmem:[%s5 + $0x254] sm:$0xf]
        %v5948 = vld [vmem:[%s5 + $0x258] sm:$0xf]
        %v5949 = vld [vmem:[%s5 + $0x25c] sm:$0xf]
        %v5950 = vld [vmem:[%s5 + $0x260] sm:$0xf]
        %v5951 = vld [vmem:[%s5 + $0x264] sm:$0xf]
        %v5952 = vld [vmem:[%s5 + $0x268] sm:$0xf]
        %v5953 = vld [vmem:[%s5 + $0x26c] sm:$0xf]
        %v5954 = vld [vmem:[%s5 + $0x270] sm:$0xf]
        %v5955 = vld [vmem:[%s5 + $0x274] sm:$0xf]
        %v5956 = vld [vmem:[%s5 + $0x278] sm:$0xf]
        %v5957 = vld [vmem:[%s5 + $0x27c] sm:$0xf]
        %v5958 = vld [vmem:[%s5 + $0x280] sm:$0xf]
        %v5959 = vld [vmem:[%s5 + $0x284] sm:$0xf]
        %v5960 = vld [vmem:[%s5 + $0x288] sm:$0xf]
        %v5961 = vld [vmem:[%s5 + $0x28c] sm:$0xf]
        %v5962 = vld [vmem:[%s5 + $0x290] sm:$0xf]
        %v5963 = vld [vmem:[%s5 + $0x294] sm:$0xf]
        %v5964 = vld [vmem:[%s5 + $0x298] sm:$0xf]
        %v5965 = vld [vmem:[%s5 + $0x29c] sm:$0xf]
        %v5966 = vld [vmem:[%s5 + $0x2a0] sm:$0xf]
        %v5967 = vld [vmem:[%s5 + $0x2a4] sm:$0xf]
        %v5968 = vld [vmem:[%s5 + $0x2a8] sm:$0xf]
        %v5969 = vld [vmem:[%s5 + $0x2ac] sm:$0xf]
        %v5970 = vld [vmem:[%s5 + $0x2b0] sm:$0xf]
        %v5971 = vld [vmem:[%s5 + $0x2b4] sm:$0xf]
        %v5972 = vld [vmem:[%s5 + $0x2b8] sm:$0xf]
        %v5973 = vld [vmem:[%s5 + $0x2bc] sm:$0xf]
        %v5974 = vld [vmem:[%s5 + $0x2c0] sm:$0xf]
        %v5975 = vld [vmem:[%s5 + $0x2c4] sm:$0xf]
        %v5976 = vld [vmem:[%s5 + $0x2c8] sm:$0xf]
        %v5977 = vld [vmem:[%s5 + $0x2cc] sm:$0xf]
        %v5978 = vld [vmem:[%s5 + $0x2d0] sm:$0xf]
        %v5979 = vld [vmem:[%s5 + $0x2d4] sm:$0xf]
        %v5980 = vld [vmem:[%s5 + $0x2d8] sm:$0xf]
        %v5981 = vld [vmem:[%s5 + $0x2dc] sm:$0xf]
        %v5982 = vld [vmem:[%s5 + $0x2e0] sm:$0xf]
        %v5983 = vld [vmem:[%s5 + $0x2e4] sm:$0xf]
        %v5984 = vld [vmem:[%s5 + $0x2e8] sm:$0xf]
        %v5985 = vld [vmem:[%s5 + $0x2ec] sm:$0xf]
        %v5986 = vld [vmem:[%s5 + $0x2f0] sm:$0xf]
        %v5987 = vld [vmem:[%s5 + $0x2f4] sm:$0xf]
        %v5988 = vld [vmem:[%s5 + $0x2f8] sm:$0xf]
        %v5989 = vld [vmem:[%s5 + $0x2fc] sm:$0xf]
        %v5990 = vld [vmem:[%s5 + $0x300] sm:$0xf]
        %v5991 = vld [vmem:[%s5 + $0x304] sm:$0xf]
        %v5992 = vld [vmem:[%s5 + $0x308] sm:$0xf]
        %v5993 = vld [vmem:[%s5 + $0x30c] sm:$0xf]
        %v5994 = vld [vmem:[%s5 + $0x310] sm:$0xf]
        %v5995 = vld [vmem:[%s5 + $0x314] sm:$0xf]
        %v5996 = vld [vmem:[%s5 + $0x318] sm:$0xf]
        %v5997 = vld [vmem:[%s5 + $0x31c] sm:$0xf]
        %v5998 = vld [vmem:[%s5 + $0x320] sm:$0xf]
        %v5999 = vld [vmem:[%s5 + $0x324] sm:$0xf]
        %v6000 = vld [vmem:[%s5 + $0x328] sm:$0xf]
        %v6001 = vld [vmem:[%s5 + $0x32c] sm:$0xf]
        %v6002 = vld [vmem:[%s5 + $0x330] sm:$0xf]
        %v6003 = vld [vmem:[%s5 + $0x334] sm:$0xf]
        %v6004 = vld [vmem:[%s5 + $0x338] sm:$0xf]
        %v6005 = vld [vmem:[%s5 + $0x33c] sm:$0xf]
        %v6006 = vld [vmem:[%s5 + $0x340] sm:$0xf]
        %v6007 = vld [vmem:[%s5 + $0x344] sm:$0xf]
        %v6008 = vld [vmem:[%s5 + $0x348] sm:$0xf]
        %v6009 = vld [vmem:[%s5 + $0x34c] sm:$0xf]
        %v6010 = vld [vmem:[%s5 + $0x350] sm:$0xf]
        %v6011 = vld [vmem:[%s5 + $0x354] sm:$0xf]
        %v6012 = vld [vmem:[%s5 + $0x358] sm:$0xf]
        %v6013 = vld [vmem:[%s5 + $0x35c] sm:$0xf]
        %v6014 = vld [vmem:[%s5 + $0x360] sm:$0xf]
        %v6015 = vld [vmem:[%s5 + $0x364] sm:$0xf]
        %v6016 = vld [vmem:[%s5 + $0x368] sm:$0xf]
        %v6017 = vld [vmem:[%s5 + $0x36c] sm:$0xf]
        %v6018 = vld [vmem:[%s5 + $0x370] sm:$0xf]
        %v6019 = vld [vmem:[%s5 + $0x374] sm:$0xf]
        %v6020 = vld [vmem:[%s5 + $0x378] sm:$0xf]
        %v6021 = vld [vmem:[%s5 + $0x37c] sm:$0xf]
        %v6022 = vld [vmem:[%s6] sm:$0x1]
        %v6024 = vperm.slane %v6022, 0
        %v6250 = vunpack.c.l.b16 %v5798
        %v6251 = vunpack.c.l.b16 %v5799
        %v6252 = vunpack.c.l.b16 %v5800
        %v6253 = vunpack.c.l.b16 %v5801
        %v6254 = vunpack.c.l.b16 %v5802
        %v6255 = vunpack.c.l.b16 %v5803
        %v6256 = vunpack.c.l.b16 %v5804
        %v6257 = vunpack.c.l.b16 %v5805
        %v6258 = vunpack.c.l.b16 %v5806
        %v6259 = vunpack.c.l.b16 %v5807
        %v6260 = vunpack.c.l.b16 %v5808
        %v6261 = vunpack.c.l.b16 %v5809
        %v6262 = vunpack.c.l.b16 %v5810
        %v6263 = vunpack.c.l.b16 %v5811
        %v6264 = vunpack.c.l.b16 %v5812
        %v6265 = vunpack.c.l.b16 %v5813
        %v6266 = vunpack.c.l.b16 %v5814
        %v6267 = vunpack.c.l.b16 %v5815
        %v6268 = vunpack.c.l.b16 %v5816
        %v6269 = vunpack.c.l.b16 %v5817
        %v6270 = vunpack.c.l.b16 %v5818
        %v6271 = vunpack.c.l.b16 %v5819
        %v6272 = vunpack.c.l.b16 %v5820
        %v6273 = vunpack.c.l.b16 %v5821
        %v6274 = vunpack.c.l.b16 %v5822
        %v6275 = vunpack.c.l.b16 %v5823
        %v6276 = vunpack.c.l.b16 %v5824
        %v6277 = vunpack.c.l.b16 %v5825
        %v6278 = vunpack.c.l.b16 %v5826
        %v6279 = vunpack.c.l.b16 %v5827
        %v6280 = vunpack.c.l.b16 %v5828
        %v6281 = vunpack.c.l.b16 %v5829
        %v6282 = vunpack.c.l.b16 %v5830
        %v6283 = vunpack.c.l.b16 %v5831
        %v6284 = vunpack.c.l.b16 %v5832
        %v6285 = vunpack.c.l.b16 %v5833
        %v6286 = vunpack.c.l.b16 %v5834
        %v6287 = vunpack.c.l.b16 %v5835
        %v6288 = vunpack.c.l.b16 %v5836
        %v6289 = vunpack.c.l.b16 %v5837
        %v6290 = vunpack.c.l.b16 %v5838
        %v6291 = vunpack.c.l.b16 %v5839
        %v6292 = vunpack.c.l.b16 %v5840
        %v6293 = vunpack.c.l.b16 %v5841
        %v6294 = vunpack.c.l.b16 %v5842
        %v6295 = vunpack.c.l.b16 %v5843
        %v6296 = vunpack.c.l.b16 %v5844
        %v6297 = vunpack.c.l.b16 %v5845
        %v6298 = vunpack.c.l.b16 %v5846
        %v6299 = vunpack.c.l.b16 %v5847
        %v6300 = vunpack.c.l.b16 %v5848
        %v6301 = vunpack.c.l.b16 %v5849
        %v6302 = vunpack.c.l.b16 %v5850
        %v6303 = vunpack.c.l.b16 %v5851
        %v6304 = vunpack.c.l.b16 %v5852
        %v6305 = vunpack.c.l.b16 %v5853
        %v6306 = vunpack.c.l.b16 %v5854
        %v6307 = vunpack.c.l.b16 %v5855
        %v6308 = vunpack.c.l.b16 %v5856
        %v6309 = vunpack.c.l.b16 %v5857
        %v6310 = vunpack.c.l.b16 %v5858
        %v6311 = vunpack.c.l.b16 %v5859
        %v6312 = vunpack.c.l.b16 %v5860
        %v6313 = vunpack.c.l.b16 %v5861
        %v6314 = vunpack.c.l.b16 %v5862
        %v6315 = vunpack.c.l.b16 %v5863
        %v6316 = vunpack.c.l.b16 %v5864
        %v6317 = vunpack.c.l.b16 %v5865
        %v6318 = vunpack.c.l.b16 %v5866
        %v6319 = vunpack.c.l.b16 %v5867
        %v6320 = vunpack.c.l.b16 %v5868
        %v6321 = vunpack.c.l.b16 %v5869
        %v6322 = vunpack.c.l.b16 %v5870
        %v6323 = vunpack.c.l.b16 %v5871
        %v6324 = vunpack.c.l.b16 %v5872
        %v6325 = vunpack.c.l.b16 %v5873
        %v6326 = vunpack.c.l.b16 %v5874
        %v6327 = vunpack.c.l.b16 %v5875
        %v6328 = vunpack.c.l.b16 %v5876
        %v6329 = vunpack.c.l.b16 %v5877
        %v6330 = vunpack.c.l.b16 %v5878
        %v6331 = vunpack.c.l.b16 %v5879
        %v6332 = vunpack.c.l.b16 %v5880
        %v6333 = vunpack.c.l.b16 %v5881
        %v6334 = vunpack.c.l.b16 %v5882
        %v6335 = vunpack.c.l.b16 %v5883
        %v6336 = vunpack.c.l.b16 %v5884
        %v6337 = vunpack.c.l.b16 %v5885
        %v6338 = vunpack.c.l.b16 %v5886
        %v6339 = vunpack.c.l.b16 %v5887
        %v6340 = vunpack.c.l.b16 %v5888
        %v6341 = vunpack.c.l.b16 %v5889
        %v6342 = vunpack.c.l.b16 %v5890
        %v6343 = vunpack.c.l.b16 %v5891
        %v6344 = vunpack.c.l.b16 %v5892
        %v6345 = vunpack.c.l.b16 %v5893
        %v6346 = vunpack.c.l.b16 %v5894
        %v6347 = vunpack.c.l.b16 %v5895
        %v6348 = vunpack.c.l.b16 %v5896
        %v6349 = vunpack.c.l.b16 %v5897
        %v6350 = vunpack.c.l.b16 %v5898
        %v6351 = vunpack.c.l.b16 %v5899
        %v6352 = vunpack.c.l.b16 %v5900
        %v6353 = vunpack.c.l.b16 %v5901
        %v6354 = vunpack.c.l.b16 %v5902
        %v6355 = vunpack.c.l.b16 %v5903
        %v6356 = vunpack.c.l.b16 %v5904
        %v6357 = vunpack.c.l.b16 %v5905
        %v6358 = vunpack.c.l.b16 %v5906
        %v6359 = vunpack.c.l.b16 %v5907
        %v6360 = vunpack.c.l.b16 %v5908
        %v6361 = vunpack.c.l.b16 %v5909
        %v6362 = vunpack.c.l.b16 %v5910
        %v6363 = vunpack.c.l.b16 %v5911
        %v6364 = vunpack.c.l.b16 %v5912
        %v6365 = vunpack.c.l.b16 %v5913
        %v6366 = vunpack.c.l.b16 %v5914
        %v6367 = vunpack.c.l.b16 %v5915
        %v6368 = vunpack.c.l.b16 %v5916
        %v6369 = vunpack.c.l.b16 %v5917
        %v6370 = vunpack.c.l.b16 %v5918
        %v6371 = vunpack.c.l.b16 %v5919
        %v6372 = vunpack.c.l.b16 %v5920
        %v6373 = vunpack.c.l.b16 %v5921
        %v6374 = vunpack.c.l.b16 %v5922
        %v6375 = vunpack.c.l.b16 %v5923
        %v6376 = vunpack.c.l.b16 %v5924
        %v6377 = vunpack.c.l.b16 %v5925
        %v6378 = vunpack.c.l.b16 %v5926
        %v6379 = vunpack.c.l.b16 %v5927
        %v6380 = vunpack.c.l.b16 %v5928
        %v6381 = vunpack.c.l.b16 %v5929
        %v6382 = vunpack.c.l.b16 %v5930
        %v6383 = vunpack.c.l.b16 %v5931
        %v6384 = vunpack.c.l.b16 %v5932
        %v6385 = vunpack.c.l.b16 %v5933
        %v6386 = vunpack.c.l.b16 %v5934
        %v6387 = vunpack.c.l.b16 %v5935
        %v6388 = vunpack.c.l.b16 %v5936
        %v6389 = vunpack.c.l.b16 %v5937
        %v6390 = vunpack.c.l.b16 %v5938
        %v6391 = vunpack.c.l.b16 %v5939
        %v6392 = vunpack.c.l.b16 %v5940
        %v6393 = vunpack.c.l.b16 %v5941
        %v6394 = vunpack.c.l.b16 %v5942
        %v6395 = vunpack.c.l.b16 %v5943
        %v6396 = vunpack.c.l.b16 %v5944
        %v6397 = vunpack.c.l.b16 %v5945
        %v6398 = vunpack.c.l.b16 %v5946
        %v6399 = vunpack.c.l.b16 %v5947
        %v6400 = vunpack.c.l.b16 %v5948
        %v6401 = vunpack.c.l.b16 %v5949
        %v6402 = vunpack.c.l.b16 %v5950
        %v6403 = vunpack.c.l.b16 %v5951
        %v6404 = vunpack.c.l.b16 %v5952
        %v6405 = vunpack.c.l.b16 %v5953
        %v6406 = vunpack.c.l.b16 %v5954
        %v6407 = vunpack.c.l.b16 %v5955
        %v6408 = vunpack.c.l.b16 %v5956
        %v6409 = vunpack.c.l.b16 %v5957
        %v6410 = vunpack.c.l.b16 %v5958
        %v6411 = vunpack.c.l.b16 %v5959
        %v6412 = vunpack.c.l.b16 %v5960
        %v6413 = vunpack.c.l.b16 %v5961
        %v6414 = vunpack.c.l.b16 %v5962
        %v6415 = vunpack.c.l.b16 %v5963
        %v6416 = vunpack.c.l.b16 %v5964
        %v6417 = vunpack.c.l.b16 %v5965
        %v6418 = vunpack.c.l.b16 %v5966
        %v6419 = vunpack.c.l.b16 %v5967
        %v6420 = vunpack.c.l.b16 %v5968
        %v6421 = vunpack.c.l.b16 %v5969
        %v6422 = vunpack.c.l.b16 %v5970
        %v6423 = vunpack.c.l.b16 %v5971
        %v6424 = vunpack.c.l.b16 %v5972
        %v6425 = vunpack.c.l.b16 %v5973
        %v6426 = vunpack.c.l.b16 %v5974
        %v6427 = vunpack.c.l.b16 %v5975
        %v6428 = vunpack.c.l.b16 %v5976
        %v6429 = vunpack.c.l.b16 %v5977
        %v6430 = vunpack.c.l.b16 %v5978
        %v6431 = vunpack.c.l.b16 %v5979
        %v6432 = vunpack.c.l.b16 %v5980
        %v6433 = vunpack.c.l.b16 %v5981
        %v6434 = vunpack.c.l.b16 %v5982
        %v6435 = vunpack.c.l.b16 %v5983
        %v6436 = vunpack.c.l.b16 %v5984
        %v6437 = vunpack.c.l.b16 %v5985
        %v6438 = vunpack.c.l.b16 %v5986
        %v6439 = vunpack.c.l.b16 %v5987
        %v6440 = vunpack.c.l.b16 %v5988
        %v6441 = vunpack.c.l.b16 %v5989
        %v6442 = vunpack.c.l.b16 %v5990
        %v6443 = vunpack.c.l.b16 %v5991
        %v6444 = vunpack.c.l.b16 %v5992
        %v6445 = vunpack.c.l.b16 %v5993
        %v6446 = vunpack.c.l.b16 %v5994
        %v6447 = vunpack.c.l.b16 %v5995
        %v6448 = vunpack.c.l.b16 %v5996
        %v6449 = vunpack.c.l.b16 %v5997
        %v6450 = vunpack.c.l.b16 %v5998
        %v6451 = vunpack.c.l.b16 %v5999
        %v6452 = vunpack.c.l.b16 %v6000
        %v6453 = vunpack.c.l.b16 %v6001
        %v6454 = vunpack.c.l.b16 %v6002
        %v6455 = vunpack.c.l.b16 %v6003
        %v6456 = vunpack.c.l.b16 %v6004
        %v6457 = vunpack.c.l.b16 %v6005
        %v6458 = vunpack.c.l.b16 %v6006
        %v6459 = vunpack.c.l.b16 %v6007
        %v6460 = vunpack.c.l.b16 %v6008
        %v6461 = vunpack.c.l.b16 %v6009
        %v6462 = vunpack.c.l.b16 %v6010
        %v6463 = vunpack.c.l.b16 %v6011
        %v6464 = vunpack.c.l.b16 %v6012
        %v6465 = vunpack.c.l.b16 %v6013
        %v6466 = vunpack.c.l.b16 %v6014
        %v6467 = vunpack.c.l.b16 %v6015
        %v6468 = vunpack.c.l.b16 %v6016
        %v6469 = vunpack.c.l.b16 %v6017
        %v6470 = vunpack.c.l.b16 %v6018
        %v6471 = vunpack.c.l.b16 %v6019
        %v6472 = vunpack.c.l.b16 %v6020
        %v6473 = vunpack.c.l.b16 %v6021
        %v6474 = vpack.c.b16 %v6251, %v6250
        %v6475 = vpack.c.b16 %v6253, %v6252
        %v6476 = vpack.c.b16 %v6255, %v6254
        %v6477 = vpack.c.b16 %v6257, %v6256
        %v6478 = vpack.c.b16 %v6259, %v6258
        %v6479 = vpack.c.b16 %v6261, %v6260
        %v6480 = vpack.c.b16 %v6263, %v6262
        %v6481 = vpack.c.b16 %v6265, %v6264
        %v6482 = vpack.c.b16 %v6267, %v6266
        %v6483 = vpack.c.b16 %v6269, %v6268
        %v6484 = vpack.c.b16 %v6271, %v6270
        %v6485 = vpack.c.b16 %v6273, %v6272
        %v6486 = vpack.c.b16 %v6275, %v6274
        %v6487 = vpack.c.b16 %v6277, %v6276
        %v6488 = vpack.c.b16 %v6279, %v6278
        %v6489 = vpack.c.b16 %v6281, %v6280
        %v6490 = vpack.c.b16 %v6283, %v6282
        %v6491 = vpack.c.b16 %v6285, %v6284
        %v6492 = vpack.c.b16 %v6287, %v6286
        %v6493 = vpack.c.b16 %v6289, %v6288
        %v6494 = vpack.c.b16 %v6291, %v6290
        %v6495 = vpack.c.b16 %v6293, %v6292
        %v6496 = vpack.c.b16 %v6295, %v6294
        %v6497 = vpack.c.b16 %v6297, %v6296
        %v6498 = vpack.c.b16 %v6299, %v6298
        %v6499 = vpack.c.b16 %v6301, %v6300
        %v6500 = vpack.c.b16 %v6303, %v6302
        %v6501 = vpack.c.b16 %v6305, %v6304
        %v6502 = vpack.c.b16 %v6307, %v6306
        %v6503 = vpack.c.b16 %v6309, %v6308
        %v6504 = vpack.c.b16 %v6311, %v6310
        %v6505 = vpack.c.b16 %v6313, %v6312
        %v6506 = vpack.c.b16 %v6315, %v6314
        %v6507 = vpack.c.b16 %v6317, %v6316
        %v6508 = vpack.c.b16 %v6319, %v6318
        %v6509 = vpack.c.b16 %v6321, %v6320
        %v6510 = vpack.c.b16 %v6323, %v6322
        %v6511 = vpack.c.b16 %v6325, %v6324
        %v6512 = vpack.c.b16 %v6327, %v6326
        %v6513 = vpack.c.b16 %v6329, %v6328
        %v6514 = vpack.c.b16 %v6331, %v6330
        %v6515 = vpack.c.b16 %v6333, %v6332
        %v6516 = vpack.c.b16 %v6335, %v6334
        %v6517 = vpack.c.b16 %v6337, %v6336
        %v6518 = vpack.c.b16 %v6339, %v6338
        %v6519 = vpack.c.b16 %v6341, %v6340
        %v6520 = vpack.c.b16 %v6343, %v6342
        %v6521 = vpack.c.b16 %v6345, %v6344
        %v6522 = vpack.c.b16 %v6347, %v6346
        %v6523 = vpack.c.b16 %v6349, %v6348
        %v6524 = vpack.c.b16 %v6351, %v6350
        %v6525 = vpack.c.b16 %v6353, %v6352
        %v6526 = vpack.c.b16 %v6355, %v6354
        %v6527 = vpack.c.b16 %v6357, %v6356
        %v6528 = vpack.c.b16 %v6359, %v6358
        %v6529 = vpack.c.b16 %v6361, %v6360
        %v6530 = vpack.c.b16 %v6363, %v6362
        %v6531 = vpack.c.b16 %v6365, %v6364
        %v6532 = vpack.c.b16 %v6367, %v6366
        %v6533 = vpack.c.b16 %v6369, %v6368
        %v6534 = vpack.c.b16 %v6371, %v6370
        %v6535 = vpack.c.b16 %v6373, %v6372
        %v6536 = vpack.c.b16 %v6375, %v6374
        %v6537 = vpack.c.b16 %v6377, %v6376
        %v6538 = vpack.c.b16 %v6379, %v6378
        %v6539 = vpack.c.b16 %v6381, %v6380
        %v6540 = vpack.c.b16 %v6383, %v6382
        %v6541 = vpack.c.b16 %v6385, %v6384
        %v6542 = vpack.c.b16 %v6387, %v6386
        %v6543 = vpack.c.b16 %v6389, %v6388
        %v6544 = vpack.c.b16 %v6391, %v6390
        %v6545 = vpack.c.b16 %v6393, %v6392
        %v6546 = vpack.c.b16 %v6395, %v6394
        %v6547 = vpack.c.b16 %v6397, %v6396
        %v6548 = vpack.c.b16 %v6399, %v6398
        %v6549 = vpack.c.b16 %v6401, %v6400
        %v6550 = vpack.c.b16 %v6403, %v6402
        %v6551 = vpack.c.b16 %v6405, %v6404
        %v6552 = vpack.c.b16 %v6407, %v6406
        %v6553 = vpack.c.b16 %v6409, %v6408
        %v6554 = vpack.c.b16 %v6411, %v6410
        %v6555 = vpack.c.b16 %v6413, %v6412
        %v6556 = vpack.c.b16 %v6415, %v6414
        %v6557 = vpack.c.b16 %v6417, %v6416
        %v6558 = vpack.c.b16 %v6419, %v6418
        %v6559 = vpack.c.b16 %v6421, %v6420
        %v6560 = vpack.c.b16 %v6423, %v6422
        %v6561 = vpack.c.b16 %v6425, %v6424
        %v6562 = vpack.c.b16 %v6427, %v6426
        %v6563 = vpack.c.b16 %v6429, %v6428
        %v6564 = vpack.c.b16 %v6431, %v6430
        %v6565 = vpack.c.b16 %v6433, %v6432
        %v6566 = vpack.c.b16 %v6435, %v6434
        %v6567 = vpack.c.b16 %v6437, %v6436
        %v6568 = vpack.c.b16 %v6439, %v6438
        %v6569 = vpack.c.b16 %v6441, %v6440
        %v6570 = vpack.c.b16 %v6443, %v6442
        %v6571 = vpack.c.b16 %v6445, %v6444
        %v6572 = vpack.c.b16 %v6447, %v6446
        %v6573 = vpack.c.b16 %v6449, %v6448
        %v6574 = vpack.c.b16 %v6451, %v6450
        %v6575 = vpack.c.b16 %v6453, %v6452
        %v6576 = vpack.c.b16 %v6455, %v6454
        %v6577 = vpack.c.b16 %v6457, %v6456
        %v6578 = vpack.c.b16 %v6459, %v6458
        %v6579 = vpack.c.b16 %v6461, %v6460
        %v6580 = vpack.c.b16 %v6463, %v6462
        %v6581 = vpack.c.b16 %v6465, %v6464
        %v6582 = vpack.c.b16 %v6467, %v6466
        %v6583 = vpack.c.b16 %v6469, %v6468
        %v6584 = vpack.c.b16 %v6471, %v6470
        %v6585 = vpack.c.b16 %v6473, %v6472
        %6698 = vmatpush.bf16.msra.mxu0 %v6481
        %6699 = vmatpush.bf16.msra.mxu0 %v6480
        %6700 = vmatpush.bf16.msra.mxu0 %v6479
        %6701 = vmatpush.bf16.msra.mxu0 %v6478
        %6702 = vmatpush.bf16.msra.mxu0 %v6477
        %6703 = vmatpush.bf16.msra.mxu0 %v6476
        %6704 = vmatpush.bf16.msra.mxu0 %v6475
        %6705 = vmatpush.bf16.msra.mxu0 %v6474
        %6706 = vmatmul.bf16.gmra.mxu0 %v5784
        %v6707 = vpop.f32.mrf.mxu0
        %v6708 = vadd.f32 %v6024, %v6707
        %v6709 = vpop.f32.mrf.mxu0
        %6710 = vdwg.mxu0
        %6711 = vmatpush.bf16.msra.mxu0 %v6489
        %6712 = vmatpush.bf16.msra.mxu0 %v6488
        %6713 = vmatpush.bf16.msra.mxu0 %v6487
        %6714 = vmatpush.bf16.msra.mxu0 %v6486
        %6715 = vmatpush.bf16.msra.mxu0 %v6485
        %6716 = vmatpush.bf16.msra.mxu0 %v6484
        %6717 = vmatpush.bf16.msra.mxu0 %v6483
        %6718 = vmatpush.bf16.msra.mxu0 %v6482
        %6719 = vmatmul.bf16.gmra.mxu0 %v5785
        %v6720 = vpop.f32.mrf.mxu0
        %v6721 = vadd.f32 %v6708, %v6720
        %v6722 = vpop.f32.mrf.mxu0
        %6723 = vdwg.mxu0
        %6724 = vmatpush.bf16.msra.mxu0 %v6497
        %6725 = vmatpush.bf16.msra.mxu0 %v6496
        %6726 = vmatpush.bf16.msra.mxu0 %v6495
        %6727 = vmatpush.bf16.msra.mxu0 %v6494
        %6728 = vmatpush.bf16.msra.mxu0 %v6493
        %6729 = vmatpush.bf16.msra.mxu0 %v6492
        %6730 = vmatpush.bf16.msra.mxu0 %v6491
        %6731 = vmatpush.bf16.msra.mxu0 %v6490
        %6732 = vmatmul.bf16.gmra.mxu0 %v5786
        %v6733 = vpop.f32.mrf.mxu0
        %v6734 = vadd.f32 %v6721, %v6733
        %v6735 = vpop.f32.mrf.mxu0
        %6736 = vdwg.mxu0
        %6737 = vmatpush.bf16.msra.mxu0 %v6505
        %6738 = vmatpush.bf16.msra.mxu0 %v6504
        %6739 = vmatpush.bf16.msra.mxu0 %v6503
        %6740 = vmatpush.bf16.msra.mxu0 %v6502
        %6741 = vmatpush.bf16.msra.mxu0 %v6501
        %6742 = vmatpush.bf16.msra.mxu0 %v6500
        %6743 = vmatpush.bf16.msra.mxu0 %v6499
        %6744 = vmatpush.bf16.msra.mxu0 %v6498
        %6745 = vmatmul.bf16.gmra.mxu0 %v5787
        %v6746 = vpop.f32.mrf.mxu0
        %v6747 = vadd.f32 %v6734, %v6746
        %v6748 = vpop.f32.mrf.mxu0
        %6749 = vdwg.mxu0
        %6750 = vmatpush.bf16.msra.mxu0 %v6513
        %6751 = vmatpush.bf16.msra.mxu0 %v6512
        %6752 = vmatpush.bf16.msra.mxu0 %v6511
        %6753 = vmatpush.bf16.msra.mxu0 %v6510
        %6754 = vmatpush.bf16.msra.mxu0 %v6509
        %6755 = vmatpush.bf16.msra.mxu0 %v6508
        %6756 = vmatpush.bf16.msra.mxu0 %v6507
        %6757 = vmatpush.bf16.msra.mxu0 %v6506
        %6758 = vmatmul.bf16.gmra.mxu0 %v5788
        %v6759 = vpop.f32.mrf.mxu0
        %v6760 = vadd.f32 %v6747, %v6759
        %v6761 = vpop.f32.mrf.mxu0
        %6762 = vdwg.mxu0
        %6763 = vmatpush.bf16.msra.mxu0 %v6521
        %6764 = vmatpush.bf16.msra.mxu0 %v6520
        %6765 = vmatpush.bf16.msra.mxu0 %v6519
        %6766 = vmatpush.bf16.msra.mxu0 %v6518
        %6767 = vmatpush.bf16.msra.mxu0 %v6517
        %6768 = vmatpush.bf16.msra.mxu0 %v6516
        %6769 = vmatpush.bf16.msra.mxu0 %v6515
        %6770 = vmatpush.bf16.msra.mxu0 %v6514
        %6771 = vmatmul.bf16.gmra.mxu0 %v5789
        %v6772 = vpop.f32.mrf.mxu0
        %v6773 = vadd.f32 %v6760, %v6772
        %v6774 = vpop.f32.mrf.mxu0
        %6775 = vdwg.mxu0
        %6776 = vmatpush.bf16.msra.mxu0 %v6529
        %6777 = vmatpush.bf16.msra.mxu0 %v6528
        %6778 = vmatpush.bf16.msra.mxu0 %v6527
        %6779 = vmatpush.bf16.msra.mxu0 %v6526
        %6780 = vmatpush.bf16.msra.mxu0 %v6525
        %6781 = vmatpush.bf16.msra.mxu0 %v6524
        %6782 = vmatpush.bf16.msra.mxu0 %v6523
        %6783 = vmatpush.bf16.msra.mxu0 %v6522
        %6784 = vmatmul.bf16.gmra.mxu0 %v5790
        %v6785 = vpop.f32.mrf.mxu0
        %v6786 = vadd.f32 %v6773, %v6785
        %v6787 = vpop.f32.mrf.mxu0
        %6788 = vdwg.mxu0
        %6789 = vmatpush.bf16.msra.mxu0 %v6537
        %6790 = vmatpush.bf16.msra.mxu0 %v6536
        %6791 = vmatpush.bf16.msra.mxu0 %v6535
        %6792 = vmatpush.bf16.msra.mxu0 %v6534
        %6793 = vmatpush.bf16.msra.mxu0 %v6533
        %6794 = vmatpush.bf16.msra.mxu0 %v6532
        %6795 = vmatpush.bf16.msra.mxu0 %v6531
        %6796 = vmatpush.bf16.msra.mxu0 %v6530
        %6797 = vmatmul.bf16.gmra.mxu0 %v5791
        %v6798 = vpop.f32.mrf.mxu0
        %v6799 = vadd.f32 %v6786, %v6798
        %v6800 = vpop.f32.mrf.mxu0
        %6801 = vdwg.mxu0
        %6802 = vmatpush.bf16.msra.mxu0 %v6545
        %6803 = vmatpush.bf16.msra.mxu0 %v6544
        %6804 = vmatpush.bf16.msra.mxu0 %v6543
        %6805 = vmatpush.bf16.msra.mxu0 %v6542
        %6806 = vmatpush.bf16.msra.mxu0 %v6541
        %6807 = vmatpush.bf16.msra.mxu0 %v6540
        %6808 = vmatpush.bf16.msra.mxu0 %v6539
        %6809 = vmatpush.bf16.msra.mxu0 %v6538
        %6810 = vmatmul.bf16.gmra.mxu0 %v5792
        %v6811 = vpop.f32.mrf.mxu0
        %v6812 = vadd.f32 %v6799, %v6811
        %v6813 = vpop.f32.mrf.mxu0
        %6814 = vdwg.mxu0
        %6815 = vmatpush.bf16.msra.mxu0 %v6553
        %6816 = vmatpush.bf16.msra.mxu0 %v6552
        %6817 = vmatpush.bf16.msra.mxu0 %v6551
        %6818 = vmatpush.bf16.msra.mxu0 %v6550
        %6819 = vmatpush.bf16.msra.mxu0 %v6549
        %6820 = vmatpush.bf16.msra.mxu0 %v6548
        %6821 = vmatpush.bf16.msra.mxu0 %v6547
        %6822 = vmatpush.bf16.msra.mxu0 %v6546
        %6823 = vmatmul.bf16.gmra.mxu0 %v5793
        %v6824 = vpop.f32.mrf.mxu0
        %v6825 = vadd.f32 %v6812, %v6824
        %v6826 = vpop.f32.mrf.mxu0
        %6827 = vdwg.mxu0
        %6828 = vmatpush.bf16.msra.mxu0 %v6561
        %6829 = vmatpush.bf16.msra.mxu0 %v6560
        %6830 = vmatpush.bf16.msra.mxu0 %v6559
        %6831 = vmatpush.bf16.msra.mxu0 %v6558
        %6832 = vmatpush.bf16.msra.mxu0 %v6557
        %6833 = vmatpush.bf16.msra.mxu0 %v6556
        %6834 = vmatpush.bf16.msra.mxu0 %v6555
        %6835 = vmatpush.bf16.msra.mxu0 %v6554
        %6836 = vmatmul.bf16.gmra.mxu0 %v5794
        %v6837 = vpop.f32.mrf.mxu0
        %v6838 = vadd.f32 %v6825, %v6837
        %v6839 = vpop.f32.mrf.mxu0
        %6840 = vdwg.mxu0
        %6841 = vmatpush.bf16.msra.mxu0 %v6569
        %6842 = vmatpush.bf16.msra.mxu0 %v6568
        %6843 = vmatpush.bf16.msra.mxu0 %v6567
        %6844 = vmatpush.bf16.msra.mxu0 %v6566
        %6845 = vmatpush.bf16.msra.mxu0 %v6565
        %6846 = vmatpush.bf16.msra.mxu0 %v6564
        %6847 = vmatpush.bf16.msra.mxu0 %v6563
        %6848 = vmatpush.bf16.msra.mxu0 %v6562
        %6849 = vmatmul.bf16.gmra.mxu0 %v5795
        %v6850 = vpop.f32.mrf.mxu0
        %v6851 = vadd.f32 %v6838, %v6850
        %v6852 = vpop.f32.mrf.mxu0
        %6853 = vdwg.mxu0
        %6854 = vmatpush.bf16.msra.mxu0 %v6577
        %6855 = vmatpush.bf16.msra.mxu0 %v6576
        %6856 = vmatpush.bf16.msra.mxu0 %v6575
        %6857 = vmatpush.bf16.msra.mxu0 %v6574
        %6858 = vmatpush.bf16.msra.mxu0 %v6573
        %6859 = vmatpush.bf16.msra.mxu0 %v6572
        %6860 = vmatpush.bf16.msra.mxu0 %v6571
        %6861 = vmatpush.bf16.msra.mxu0 %v6570
        %6862 = vmatmul.bf16.gmra.mxu0 %v5796
        %v6863 = vpop.f32.mrf.mxu0
        %v6864 = vadd.f32 %v6851, %v6863
        %v6865 = vpop.f32.mrf.mxu0
        %6866 = vdwg.mxu0
        %6867 = vmatpush.bf16.msra.mxu0 %v6585
        %6868 = vmatpush.bf16.msra.mxu0 %v6584
        %6869 = vmatpush.bf16.msra.mxu0 %v6583
        %6870 = vmatpush.bf16.msra.mxu0 %v6582
        %6871 = vmatpush.bf16.msra.mxu0 %v6581
        %6872 = vmatpush.bf16.msra.mxu0 %v6580
        %6873 = vmatpush.bf16.msra.mxu0 %v6579
        %6874 = vmatpush.bf16.msra.mxu0 %v6578
        %6875 = vmatmul.bf16.gmra.mxu0 %v5797
        %v6876 = vpop.f32.mrf.mxu0
        %v6877 = vadd.f32 %v6864, %v6876
        %v6878 = vpop.f32.mrf.mxu0
        %6879 = vdwg.mxu0
        %6880 = vst [vmem:[%s274] sm:$0xff] %v6877
        %s6881 = sand.u32 %s181, 1
        %s6882 = scalar_lea.sflag [#allocation5], %s6881
        %s6883 = sand.u32 %s181, 1
        %s6884 = smul.addr %s6883, 8
        %s6885 = scalar_lea.vmem [#allocation4], %s6884
        // Predicated region
        $region49: #{forward.1} parent=47 // pred_check
          %p6886 = pneg %p191
        $region50: #{forward.1} parent=47 // pred_check_branch
          %6888 = sbr.rel (%p6886) target = $region52
        $region51: #{forward.1} parent=47 // pred_region
          %6890 = vsyncadd %s6882, 0
          %s6891 = smul.addr %s21, 8
          %s6892 = scalar_lea.hbm %s7, %s6891
          %s6894 = sshll.u32 %s6885, 4
          %s6895 = int_to_ptr.vmem [resolvable:$true] %s6894
          %s6896 = sshll.u32 %s6892, 4
          %s6897 = int_to_ptr.hbm [resolvable:$true] %s6896
          %6899 = dma.vmem_to_hbm [thread:$0]  %s6895, 128, %s6897, %s6882
        $region52: #{forward.1} parent=47 // pred_fallthru
          _
      $region48: #{forward.1} parent=5 // pred_fallthru
        _
      %p6900 = scmp.le.s32.totalorder 2, %s16
      // Predicated region
      $region53: #{forward.1} parent=5 // pred_check
        %p6901 = pneg %p6900
      $region54: #{forward.1} parent=5 // pred_check_branch
        %6903 = sbr.rel (%p6901) target = $region56
      $region55: #{forward.1} parent=5 // pred_region
        %s6904 = ssub.s32 %s16, 2
        // Predicated region
        $region57: #{forward.1} parent=55 // pred_check
          %p6905 = pneg %p197
        $region58: #{forward.1} parent=55 // pred_check_branch
          %6907 = sbr.rel (%p6905) target = $region60
        $region59: #{forward.1} parent=55 // pred_region
          %s6908 = sand.u32 %s182, 1
          %s6909 = scalar_lea.sflag [#allocation5], %s6908
          %s6910 = sand.u32 %s182, 1
          %s6911 = smul.addr %s6910, 8
          %s6912 = scalar_lea.vmem [#allocation4], %s6911
          %6914 = dma.done %s6909, 128
        $region60: #{forward.1} parent=55 // pred_fallthru
          _
      $region56: #{forward.1} parent=5 // pred_fallthru
        _
    $region6: #{forward.1} parent=1 // loop_footer
      %s20 = sadd.s32 1, %s16
    $region7: #{forward.1} parent=1 // loop_footer_branch
      %15 = sbr.rel target = $region3
    $region8: #{forward.1} parent=1 // loop_exit
      _
    %6915 = vsyncpa [#allocation5], 1
    %s6916 = scalar_lea.sflag [#allocation5], 1
    %6917 = vsyncpa %s6916, 1

</llo_original>
